<compile_context>
chip_gen: v5e
topology: v5e:2x2
jax: 0.10.0
libtpu: 0.0.40
codegen_flags: <defaults>
</compile_context>

<pallas_src>
import jax
import jax.numpy as jnp
from jax.experimental import pallas as pl
from jax.experimental.pallas import tpu as pltpu


def _patchify_kernel(src_ref, x_ref, o_ref, p_ref):
    # src_ref: (1, CHWp) int32 — src[j] = input flat index feeding output col j
    # x_ref:   (F, CHWp)       — block of flattened input frames
    # o_ref:   (F, CHWp)       — patchified frames, flat (ph, pw, c, hp, wp)
    # p_ref:   (CHWp, CHWp)    — persistent VMEM scratch, 0/1 selection matrix

    # Build P in-kernel (no HBM traffic) once per outer grid step: the inner
    # axis is "arbitrary", so every core that executes an outer step starts it
    # at inner == 0, which keeps this correct under megacore sharding.
    @pl.when(pl.program_id(1) == 0)
    def _build_p():
        rows = jax.lax.broadcasted_iota(jnp.int32, p_ref.shape, 0)
        p_ref[...] = (rows == src_ref[...]).astype(p_ref.dtype)

    # One MXU matmul performs the whole per-frame space-to-depth permutation;
    # a 0/1 matrix with one nonzero per column is exact for float inputs.
    o_ref[...] = jnp.dot(
        x_ref[...], p_ref[...], preferred_element_type=jnp.float32
    ).astype(o_ref.dtype)


def _vmem_budget_bytes():
    # ~1/8 of physical VMEM: 16 MiB on v5e/v6e (128 MiB), 8 MiB on v7x
    # (64 MiB); conservative 8 MiB fallback if the query is unavailable.
    try:
        return max(pltpu.get_tpu_info().vmem_capacity_bytes // 8, 4 << 20)
    except Exception:
        return 8 << 20


def _frames_per_block(n_frames, chw_pad, itemsize, vmem_budget_bytes):
    """Rows per grid step: as large as the VMEM budget allows (in + out,
    double-buffered), dtype-aware sublane granularity, small enough to leave
    >= 4 grid steps (>= 2 per TensorCore on 2-TC chips) when there is enough
    work.  Callers pad n_frames up to a multiple of F (never a single
    full-extent block)."""
    gran = max(8, 32 // max(itemsize, 1))       # 8 f32 / 16 bf16 / 32 int8
    f = 512
    while f > gran and 4 * f * chw_pad * itemsize > vmem_budget_bytes:
        f //= 2
    while f > gran and pl.cdiv(n_frames, f) < 4:
        f //= 2
    return max(f, gran)


class RNNBasePallas:
    """Mirror of RNNBase.__init__; patchify() is the Pallas hot path."""

    def __init__(self, input_shape, num_layers, num_hidden, patch_size):
        self.input_len, self.C_img, self.H_img, self.W_img = input_shape
        self.num_layers = num_layers          # unused in the abstract base
        self.num_hidden = num_hidden          # unused in the abstract base
        self.patch_size = patch_size
        self.H_patch = self.H_img // patch_size
        self.W_patch = self.W_img // patch_size
        self.C_patch = patch_size * patch_size * self.C_img

        p, C, H, W = patch_size, self.C_img, self.H_img, self.W_img
        Hp, Wp = self.H_patch, self.W_patch
        chw = C * H * W
        # Lane-pad the flattened frame width to a multiple of 128: full
        # unmasked stores, no ragged MXU tiles.
        chw_pad = pl.cdiv(chw, 128) * 128
        self._chw = chw
        self._chw_pad = chw_pad

        # Closed-form source index of the space-to-depth permutation:
        #   out_flat[j] = x_flat[src[j]],
        #   j = ((ph*p + pw)*C + c)*Hp*Wp + hp*Wp + wp
        j = jnp.arange(chw)
        wp_ = j % Wp
        hp_ = (j // Wp) % Hp
        c_ = (j // (Wp * Hp)) % C
        pw_ = (j // (Wp * Hp * C)) % p
        ph_ = j // (Wp * Hp * C * p)
        src = c_ * (H * W) + (hp_ * p + ph_) * W + (wp_ * p + pw_)
        if chw_pad > chw:
            # Padded output columns read a zero-padded input column.
            src = jnp.concatenate(
                [src, jnp.full((chw_pad - chw,), chw, dtype=src.dtype)])
        # Tiny (1, CHWp) int32 row: the only permutation data sent to the
        # kernel (the dense P matrix is built on-chip).
        self.src = src.astype(jnp.int32).reshape(1, chw_pad)

    def patchify(self, x):
        # x: (B, T, C, H, W) -> (B, T, p*p*C, H//p, W//p)
        Bsz, T, C, H, W = x.shape
        assert (C, H, W) == (self.C_img, self.H_img, self.W_img)
        if not jnp.issubdtype(x.dtype, jnp.floating):
            # TODO(synk): integer inputs need a non-matmul copy/gather path;
            # the 0/1 selection matmul is only exact for float dtypes.
            raise NotImplementedError("patchify: float dtypes only")

        Hp, Wp, Cp = self.H_patch, self.W_patch, self.C_patch
        chw, chw_pad = self._chw, self._chw_pad
        n = Bsz * T
        itemsize = x.dtype.itemsize

        F = _frames_per_block(n, chw_pad, itemsize, _vmem_budget_bytes())
        n_pad = pl.cdiv(n, F) * F
        n_blocks = n_pad // F
        # Outer axis is megacore-"parallel"; keep it a small divisor so each
        # core retains several inner ("arbitrary") steps for DMA overlap and
        # the in-kernel P build happens at most `outer` (<= 4) times.
        outer = 4 if n_blocks % 4 == 0 else (2 if n_blocks % 2 == 0 else 1)
        inner = n_blocks // outer

        x_flat = x.reshape(n, chw)                  # free contiguous reshape
        if n_pad > n or chw_pad > chw:
            x_flat = jnp.pad(x_flat, ((0, n_pad - n), (0, chw_pad - chw)))

        vmem_need = (4 * F * chw_pad * itemsize          # in+out, dbl-buffered
                     + chw_pad * chw_pad * itemsize      # resident P scratch
                     + 4 * chw_pad * chw_pad             # i32 iota build temp
                     + (2 << 20))                        # slack
        cost = pl.CostEstimate(
            flops=2 * n_pad * chw_pad * chw_pad,
            bytes_accessed=2 * n_pad * chw_pad * itemsize + 4 * chw_pad,
            transcendentals=0)

        out_flat = pl.pallas_call(
            _patchify_kernel,
            out_shape=jax.ShapeDtypeStruct((n_pad, chw_pad), x.dtype),
            grid_spec=pltpu.PrefetchScalarGridSpec(
                num_scalar_prefetch=0,
                grid=(outer, inner),
                in_specs=[
                    # src: constant block index => DMA'd once, stays resident.
                    pl.BlockSpec((1, chw_pad), lambda i, j: (0, 0)),
                    pl.BlockSpec((F, chw_pad),
                                 lambda i, j: (i * inner + j, 0)),
                ],
                out_specs=pl.BlockSpec((F, chw_pad),
                                       lambda i, j: (i * inner + j, 0)),
                # Persistent selection matrix (built in-kernel, single copy).
                scratch_shapes=[pltpu.VMEM((chw_pad, chw_pad), x.dtype)],
            ),
            compiler_params=pltpu.CompilerParams(
                dimension_semantics=("parallel", "arbitrary"),
                vmem_limit_bytes=int(min(max(vmem_need, 16 << 20), 32 << 20)),
            ),
            cost_estimate=cost,
        )(self.src, x_flat)

        out_flat = out_flat[:n, :chw]
        # Free contiguous reshape back to the NCHW-style patch layout.
        return out_flat.reshape(Bsz, T, Cp, Hp, Wp)


def _patchify_ref(x, p):
    # Pure-JAX reference: space-to-depth with channel index (ph*p + pw)*C + c.
    Bsz, T, C, H, W = x.shape
    Hp, Wp = H // p, W // p
    y = x.reshape(Bsz, T, C, Hp, p, Wp, p)
    y = jnp.transpose(y, (0, 1, 4, 6, 2, 3, 5))      # (B, T, p, p, C, Hp, Wp)
    return y.reshape(Bsz, T, p * p * C, Hp, Wp)


if __name__ == "__main__":
    # Small deterministic config consistent with the module's __init__.
    input_len, C_img, H_img, W_img = 8, 3, 16, 16
    num_layers, num_hidden, patch_size = 2, 32, 2
    batch = 2

    model = RNNBasePallas((input_len, C_img, H_img, W_img),
                          num_layers, num_hidden, patch_size)

    key = jax.random.PRNGKey(0)
    x = jax.random.normal(key, (batch, input_len, C_img, H_img, W_img),
                          dtype=jnp.float32)

    out = jax.block_until_ready(model.patchify(x))

    ref = _patchify_ref(x, patch_size)
    assert out.shape == (batch, input_len, model.C_patch,
                         model.H_patch, model.W_patch)
    assert jnp.allclose(out, ref, atol=1e-5, rtol=1e-5)

    print("KERNEL_OK")
</pallas_src>

<mosaic_0001>
module attributes {stable_mosaic.version = 11 : i64} {
  func.func @_patchify_kernel(%arg0: i32, %arg1: i32, %arg2: memref<1x768xi32, #tpu.memory_space<vmem>>, %arg3: memref<8x768xf32, #tpu.memory_space<vmem>>, %arg4: memref<8x768xf32, #tpu.memory_space<vmem>>, %arg5: memref<768x768xf32, #tpu.memory_space<vmem>>) attributes {dimension_semantics = [#tpu.dimension_semantics<parallel>, #tpu.dimension_semantics<arbitrary>], iteration_bounds = array<i64: 2, 1>, scalar_prefetch = 0 : i64, scratch_operands = 1 : i64, tpu.core_type = #tpu.core_type<tc>, window_params = [{pipeline_mode = #tpu.pipeline_mode<synchronous>, transform_indices = @transform_0, window_bounds = array<i64: 1, 768>}, {transform_indices = @transform_1, window_bounds = array<i64: 8, 768>}, {transform_indices = @transform_2, window_bounds = array<i64: 8, 768>}]} {
    %c0_i32 = arith.constant 0 : i32
    %0 = arith.cmpi eq, %arg1, %c0_i32 : i32
    %1 = arith.extui %0 : i1 to i32
    %c0_i32_0 = arith.constant 0 : i32
    %2 = arith.cmpi ne, %1, %c0_i32_0 : i32
    scf.if %2 {
      %7 = tpu.iota {dimensions = array<i32: 0>} : vector<768x768xi32>
      %c0_6 = arith.constant 0 : index
      %c0_7 = arith.constant 0 : index
      %8 = vector.load %arg2[%c0_6, %c0_7] : memref<1x768xi32, #tpu.memory_space<vmem>>, vector<1x768xi32>
      %9 = vector.broadcast %8 : vector<1x768xi32> to vector<768x768xi32>
      %10 = arith.cmpi eq, %7, %9 : vector<768x768xi32>
      %11 = arith.extui %10 : vector<768x768xi1> to vector<768x768xi32>
      %12 = arith.sitofp %11 : vector<768x768xi32> to vector<768x768xf32>
      %c0_8 = arith.constant 0 : index
      %c0_9 = arith.constant 0 : index
      %13 = vector.load %arg5[%c0_8, %c0_9] : memref<768x768xf32, #tpu.memory_space<vmem>>, vector<768x768xf32>
      tpu.vector_store %arg5[%c0_8, %c0_9], %12 {strides = array<i32>} : memref<768x768xf32, #tpu.memory_space<vmem>>, vector<768x768xf32>,
    } else {
    }
    %c0 = arith.constant 0 : index
    %c0_1 = arith.constant 0 : index
    %3 = vector.load %arg3[%c0, %c0_1] : memref<8x768xf32, #tpu.memory_space<vmem>>, vector<8x768xf32>
    %c0_2 = arith.constant 0 : index
    %c0_3 = arith.constant 0 : index
    %4 = vector.load %arg5[%c0_2, %c0_3] : memref<768x768xf32, #tpu.memory_space<vmem>>, vector<768x768xf32>
    %cst = arith.constant dense<0.000000e+00> : vector<8x768xf32>
    %5 = tpu.matmul %3, %4, %cst {dimension_numbers = #tpu.dot_dimension_numbers<[1], [0], [0], [1], [0, 0, 1, 1], [], []>} : vector<8x768xf32>, vector<768x768xf32>, vector<8x768xf32> -> vector<8x768xf32>
    %c0_4 = arith.constant 0 : index
    %c0_5 = arith.constant 0 : index
    %6 = vector.load %arg4[%c0_4, %c0_5] : memref<8x768xf32, #tpu.memory_space<vmem>>, vector<8x768xf32>
    tpu.vector_store %arg4[%c0_4, %c0_5], %5 {strides = array<i32>} : memref<8x768xf32, #tpu.memory_space<vmem>>, vector<8x768xf32>,
    return
  }
  func.func @transform_0(%arg0: i32, %arg1: i32) -> (i32, i32) {
    %c0_i32 = arith.constant 0 : i32
    %c0_i32_0 = arith.constant 0 : i32
    %c0_i32_1 = arith.constant 0 : i32
    return %c0_i32, %c0_i32_0 : i32, i32
  }
  func.func @transform_1(%arg0: i32, %arg1: i32) -> (i32, i32) {
    %c1_i32 = arith.constant 1 : i32
    %0 = arith.muli %arg0, %c1_i32 : i32
    %1 = arith.addi %0, %arg1 : i32
    %c0_i32 = arith.constant 0 : i32
    %c0_i32_0 = arith.constant 0 : i32
    return %1, %c0_i32 : i32, i32
  }
  func.func @transform_2(%arg0: i32, %arg1: i32) -> (i32, i32) {
    %c1_i32 = arith.constant 1 : i32
    %0 = arith.muli %arg0, %c1_i32 : i32
    %1 = arith.addi %0, %arg1 : i32
    %c0_i32 = arith.constant 0 : i32
    %c0_i32_0 = arith.constant 0 : i32
    return %1, %c0_i32 : i32, i32
  }
}

</mosaic_0001>

<llo_original>
// kernel: tpu_custom_call.1
$region0: #{tpu_custom_call.1}
  #allocation0 [shape = 'u32[]', space=smem, size = 0x4, offset = 0x4, fixed_abs, tag = 'smem constant byte address 0x4 - core index']
  #allocation1 [shape = 'u32[72,128]{1,0:T(1,128)}', space=vmem, size = 0x9000, scoped, tag = 'internal scratch']
  #allocation2 [shape = 'f32[768,768]{1,0:T(8,128)}', space=vmem, size = 0x240000, scoped, tag = 'scratch operand']
  %s0 = inlined_call_operand.hbm [shape: s32[1,768], index: 0, kind: input, shape index: {}]
  %s1 = inlined_call_operand.hbm [shape: f32[16,768], index: 1, kind: input, shape index: {}]
  %s2 = inlined_call_operand.hbm [shape: f32[16,768], index: 2, kind: output, shape index: {}]
  %s3 = sld [smem:[#allocation0]]
  $region53: #{tpu_custom_call.1} parent=0
    _
  %s5 = ssub.s32 1, %s3
  %s6 = scalar_select 0, %s5, %s3
  $region1: #{tpu_custom_call.1} parent=0
    #allocation3 [shape = 'u8[3072]{0}', space=vmem, size = 0xc00, scoped, tag = 'input window, operand 0, single buffered']
    #allocation4 [shape = 's32[2]{0}', space=sflag, size = 0x8, scoped, tag = 'scoped memory for tpu_custom_call.1']
    #allocation5 [shape = 's32[2]{0}', space=sflag, size = 0x8, scoped, tag = 'scoped memory for tpu_custom_call.1']
    #allocation6 [shape = 'u8[49152]{0}', space=vmem, size = 0xc000, scoped, tag = 'input window, operand 1']
    #allocation7 [shape = 's32[2]{0}', space=sflag, size = 0x8, scoped, tag = 'scoped memory for tpu_custom_call.1']
    #allocation8 [shape = 'u8[49152]{0}', space=vmem, size = 0xc000, scoped, tag = 'output window, operand 0']
    %7 = vsyncpa [#allocation4], 0
    %8 = vsyncpa [#allocation7], 0
    %s9 = scalar_lea.sflag [#allocation7], 1
    %10 = vsyncpa %s9, 0
    %11 = vsyncpa [#allocation5], 0
    %s12 = scalar_lea.sflag [#allocation5], 1
    %13 = vsyncpa %s12, 0
    loop: start=0, step=1, limit=4
    $region2: #{tpu_custom_call.1} parent=1 // loop_pre_header
      _
    $region3: #{tpu_custom_call.1} parent=1 // loop_header
      %s15 = sphi 0, %s19
      %p16 = scmp.ge.s32.totalorder %s15, 4
      %s22 = sphi 0, %s34
      %s23 = sphi 0, %s30
      %s24 = sphi 0, %s22
      %s25 = sphi 0, %s23
      %s26 = sphi 0, %s24
      %s27 = sphi 0, %s25
      %s35 = sphi 0, %s35
      %s37 = sphi 0, %s35
      %s38 = sphi 0, %s37
      %s52 = sphi 0, %s38
      %s60 = sphi 0, %s62
      %s63 = sphi 0, %s60
      %s64 = sphi 0, %s63
      %s80 = sphi 0, %s64
      %s88 = sphi 0, %s90
      %s91 = sphi 0, %s88
      %s92 = sphi 0, %s91
      %s108 = sphi 0, %s92
    $region4: #{tpu_custom_call.1} parent=1 // loop_header_branch
      %18 = sbr.rel (%p16) target = $region8
    $region5: #{tpu_custom_call.1} parent=1 // loop_body
      %s20 = ssub.s32 %s15, 1
      %s21 = ssub.s32 %s15, 2
      %s28 = sadd.s32 1, %s23
      %p29 = scmp.ge.s32.totalorder %s28, 1
      %s30 = scalar_select %p29, 0, %s28
      %s31 = sadd.s32 1, %s22
      %s32 = scalar_select %p29, %s31, %s22
      %p33 = scmp.ge.s32.totalorder %s32, 2
      %s34 = scalar_select %p33, 0, %s32
      %s36 = sadd.s32 %s35, 1
      %p39 = scmp.eq.s32.totalorder %s15, 1
      %p40 = scmp.ne.s32.totalorder %s35, %s37
      %p41 = scmp.eq.s32.totalorder %s15, 0
      %p42 = por %p40, %p41
      %p43 = scmp.ne.s32.totalorder %s35, %s37
      %p44 = scmp.eq.s32.totalorder %s20, 1
      %p45 = por %p43, %p44
      %p46 = scmp.ne.s32.totalorder %s37, %s38
      %p47 = scmp.eq.s32.totalorder %s20, 0
      %p48 = por %p46, %p47
      %p49 = scmp.ne.s32.totalorder %s37, %s38
      %p50 = scmp.eq.s32.totalorder %s21, 1
      %p51 = por %p49, %p50
      %p53 = scmp.ne.s32.totalorder %s38, %s52
      %p54 = scmp.eq.s32.totalorder %s21, 0
      %p55 = por %p53, %p54
      %s56 = sadd.s32 %s22, %s23
      %s57 = sadd.s32 %s34, %s30
      %s58 = ssub.s32 %s56, %s57
      %p59 = scmp.eq.s32.totalorder %s58, 0
      %s61 = sadd.s32 %s60, 1
      %s62 = scalar_select %p59, %s60, %s61
      %p65 = pneg %p59
      %p66 = scmp.eq.s32.totalorder %s15, 1
      %p67 = por %p65, %p66
      %p68 = scmp.ne.s32.totalorder %s60, %s63
      %p69 = scmp.eq.s32.totalorder %s15, 0
      %p70 = por %p68, %p69
      %p71 = scmp.ne.s32.totalorder %s60, %s63
      %p72 = scmp.eq.s32.totalorder %s20, 1
      %p73 = por %p71, %p72
      %p74 = scmp.ne.s32.totalorder %s63, %s64
      %p75 = scmp.eq.s32.totalorder %s20, 0
      %p76 = por %p74, %p75
      %p77 = scmp.ne.s32.totalorder %s63, %s64
      %p78 = scmp.eq.s32.totalorder %s21, 1
      %p79 = por %p77, %p78
      %p81 = scmp.ne.s32.totalorder %s64, %s80
      %p82 = scmp.eq.s32.totalorder %s21, 0
      %p83 = por %p81, %p82
      %s84 = sadd.s32 %s22, %s23
      %s85 = sadd.s32 %s34, %s30
      %s86 = ssub.s32 %s84, %s85
      %p87 = scmp.eq.s32.totalorder %s86, 0
      %s89 = sadd.s32 %s88, 1
      %s90 = scalar_select %p87, %s88, %s89
      %p93 = pneg %p87
      %p94 = scmp.eq.s32.totalorder %s15, 1
      %p95 = por %p93, %p94
      %p96 = scmp.ne.s32.totalorder %s88, %s91
      %p97 = scmp.eq.s32.totalorder %s15, 0
      %p98 = por %p96, %p97
      %p99 = scmp.ne.s32.totalorder %s88, %s91
      %p100 = scmp.eq.s32.totalorder %s20, 1
      %p101 = por %p99, %p100
      %p102 = scmp.ne.s32.totalorder %s91, %s92
      %p103 = scmp.eq.s32.totalorder %s20, 0
      %p104 = por %p102, %p103
      %p105 = scmp.ne.s32.totalorder %s91, %s92
      %p106 = scmp.eq.s32.totalorder %s21, 1
      %p107 = por %p105, %p106
      %p109 = scmp.ne.s32.totalorder %s92, %s108
      %p110 = scmp.eq.s32.totalorder %s21, 0
      %p111 = por %p109, %p110
      %p112 = scmp.le.s32.totalorder 1, %s15
      %p113 = scmp.lt.s32.totalorder %s15, 3
      %p114 = pnand %p112, %p113
      %p115 = pneg %p114
      // Predicated region
      $region9: #{tpu_custom_call.1} parent=5 // pred_check
        _
      $region10: #{tpu_custom_call.1} parent=5 // pred_check_branch
        %117 = sbr.rel (%p114) target = $region12
      $region11: #{tpu_custom_call.1} parent=5 // pred_region
        %s118 = ssub.s32 %s15, 1
        // Predicated region
        $region13: #{tpu_custom_call.1} parent=11 // pred_check
          %p119 = pneg %p48
        $region14: #{tpu_custom_call.1} parent=11 // pred_check_branch
          %121 = sbr.rel (%p119) target = $region16
        $region15: #{tpu_custom_call.1} parent=11 // pred_region
          %123 = vsyncadd [#allocation4], 0
          %s125 = sshll.u32 %s0, 4
          %s126 = int_to_ptr.hbm [resolvable:$true] %s125
          %s127 = sshll.u32 [#allocation3], 4
          %s128 = int_to_ptr.vmem [resolvable:$true] %s127
          %130 = dma.hbm_to_vmem [thread:$0]  %s126, 96, %s128, [#allocation4]
        $region16: #{tpu_custom_call.1} parent=11 // pred_fallthru
          _
      $region12: #{tpu_custom_call.1} parent=5 // pred_fallthru
        _
      %p131 = scmp.lt.s32.totalorder %s15, 2
      // Predicated region
      $region17: #{tpu_custom_call.1} parent=5 // pred_check
        %p132 = pneg %p131
      $region18: #{tpu_custom_call.1} parent=5 // pred_check_branch
        %134 = sbr.rel (%p132) target = $region20
      $region19: #{tpu_custom_call.1} parent=5 // pred_region
        // Predicated region
        $region21: #{tpu_custom_call.1} parent=19 // pred_check
          %p135 = pneg %p70
        $region22: #{tpu_custom_call.1} parent=19 // pred_check_branch
          %137 = sbr.rel (%p135) target = $region24
        $region23: #{tpu_custom_call.1} parent=19 // pred_region
          %s138 = sand.u32 %s60, 1
          %s139 = scalar_lea.sflag [#allocation7], %s138
          %s140 = sand.u32 %s60, 1
          %s141 = smul.addr %s140, 48
          %s142 = scalar_lea.vmem [#allocation6], %s141
          %s143 = sadd.s32 %s22, %s23
          %145 = vsyncadd %s139, 0
          %s146 = smul.addr %s143, 6
          %s147 = smul.addr %s146, 8
          %s148 = scalar_lea.hbm %s1, %s147
          %s150 = sshll.u32 %s148, 4
          %s151 = int_to_ptr.hbm [resolvable:$true] %s150
          %s152 = sshll.u32 %s142, 4
          %s153 = int_to_ptr.vmem [resolvable:$true] %s152
          %155 = dma.hbm_to_vmem [thread:$0]  %s151, 768, %s153, %s139
        $region24: #{tpu_custom_call.1} parent=19 // pred_fallthru
          _
      $region20: #{tpu_custom_call.1} parent=5 // pred_fallthru
        _
      %p156 = scmp.le.s32.totalorder 1, %s15
      %p157 = scmp.lt.s32.totalorder %s15, 3
      %p158 = pnand %p156, %p157
      %p159 = pneg %p158
      // Predicated region
      $region25: #{tpu_custom_call.1} parent=5 // pred_check
        _
      $region26: #{tpu_custom_call.1} parent=5 // pred_check_branch
        %161 = sbr.rel (%p158) target = $region28
      $region27: #{tpu_custom_call.1} parent=5 // pred_region
        %s162 = ssub.s32 %s15, 1
        // Predicated region
        $region29: #{tpu_custom_call.1} parent=27 // pred_check
          %p163 = pneg %p48
        $region30: #{tpu_custom_call.1} parent=27 // pred_check_branch
          %165 = sbr.rel (%p163) target = $region32
        $region31: #{tpu_custom_call.1} parent=27 // pred_region
          %167 = dma.done [#allocation4], 96
        $region32: #{tpu_custom_call.1} parent=27 // pred_fallthru
          _
        %s168 = sand.u32 %s63, 1
        %s169 = scalar_lea.sflag [#allocation7], %s168
        %s170 = sand.u32 %s63, 1
        %s171 = smul.addr %s170, 48
        %s172 = scalar_lea.vmem [#allocation6], %s171
        // Predicated region
        $region33: #{tpu_custom_call.1} parent=27 // pred_check
          %p173 = pneg %p76
        $region34: #{tpu_custom_call.1} parent=27 // pred_check_branch
          %175 = sbr.rel (%p173) target = $region36
        $region35: #{tpu_custom_call.1} parent=27 // pred_region
          %177 = dma.done %s169, 768
        $region36: #{tpu_custom_call.1} parent=27 // pred_fallthru
          _
        %p178 = pneg %p48
        %p179 = pneg %p45
        %s180 = sand.u32 %s63, 1
        %s181 = scalar_lea.sflag [#allocation7], %s180
        %s182 = sand.u32 %s63, 1
        %s183 = smul.addr %s182, 48
        %s184 = scalar_lea.vmem [#allocation6], %s183
        %p185 = pneg %p76
        %p186 = pneg %p73
        %p187 = pneg %p104
        %p188 = pneg %p101
        %s189 = sand.u32 %s91, 1
        %s190 = scalar_lea.sflag [#allocation5], %s189
        %s191 = sand.u32 %s91, 1
        %s192 = smul.addr %s191, 48
        %s193 = scalar_lea.vmem [#allocation8], %s192
        %s194 = sadd.s32 %s24, %s25
        %s195 = sadd.s32 %s24, %s25
        %p196 = scmp.eq.s32.totalorder %s25, 0
        // Predicated region
        $region37: #{tpu_custom_call.1} parent=27 // pred_check
          %p197 = pneg %p196
        $region38: #{tpu_custom_call.1} parent=27 // pred_check_branch
          %199 = sbr.rel (%p197) target = $region40
        $region39: #{tpu_custom_call.1} parent=27 // pred_region
          %v200 = vlaneseq
          %v201 = vshrl.u32 %v200, 7
          %v202 = vadd.s32 %v201, 8
          %v203 = vadd.s32 %v201, 16
          %v204 = vadd.s32 %v201, 24
          %v205 = vadd.s32 %v201, 32
          %v206 = vadd.s32 %v201, 40
          %v207 = vadd.s32 %v201, 48
          %v208 = vadd.s32 %v201, 56
          %v209 = vadd.s32 %v201, 64
          %v210 = vadd.s32 %v201, 72
          %v211 = vadd.s32 %v201, 80
          %v212 = vadd.s32 %v201, 88
          %v213 = vadd.s32 %v201, 96
          %v214 = vadd.s32 %v201, 104
          %v215 = vadd.s32 %v201, 112
          %v216 = vadd.s32 %v201, 120
          %v217 = vadd.s32 %v201, 128
          %v218 = vadd.s32 %v201, 136
          %v219 = vadd.s32 %v201, 144
          %v220 = vadd.s32 %v201, 152
          %v221 = vadd.s32 %v201, 160
          %v222 = vadd.s32 %v201, 168
          %v223 = vadd.s32 %v201, 176
          %v224 = vadd.s32 %v201, 184
          %v225 = vadd.s32 %v201, 192
          %v226 = vadd.s32 %v201, 200
          %v227 = vadd.s32 %v201, 208
          %v228 = vadd.s32 %v201, 216
          %v229 = vadd.s32 %v201, 224
          %v230 = vadd.s32 %v201, 232
          %v231 = vadd.s32 %v201, 240
          %v232 = vadd.s32 %v201, 248
          %v233 = vadd.s32 %v201, 256
          %v234 = vadd.s32 %v201, 264
          %v235 = vadd.s32 %v201, 272
          %v236 = vadd.s32 %v201, 280
          %v237 = vadd.s32 %v201, 288
          %v238 = vadd.s32 %v201, 296
          %v239 = vadd.s32 %v201, 304
          %v240 = vadd.s32 %v201, 312
          %v241 = vadd.s32 %v201, 320
          %v242 = vadd.s32 %v201, 328
          %v243 = vadd.s32 %v201, 336
          %v244 = vadd.s32 %v201, 344
          %v245 = vadd.s32 %v201, 352
          %v246 = vadd.s32 %v201, 360
          %v247 = vadd.s32 %v201, 368
          %v248 = vadd.s32 %v201, 376
          %v249 = vadd.s32 %v201, 384
          %v250 = vadd.s32 %v201, 392
          %v251 = vadd.s32 %v201, 400
          %v252 = vadd.s32 %v201, 408
          %v253 = vadd.s32 %v201, 416
          %v254 = vadd.s32 %v201, 424
          %v255 = vadd.s32 %v201, 432
          %v256 = vadd.s32 %v201, 440
          %v257 = vadd.s32 %v201, 448
          %v258 = vadd.s32 %v201, 456
          %v259 = vadd.s32 %v201, 464
          %v260 = vadd.s32 %v201, 472
          %v261 = vadd.s32 %v201, 480
          %v262 = vadd.s32 %v201, 488
          %v263 = vadd.s32 %v201, 496
          %v264 = vadd.s32 %v201, 504
          %v265 = vadd.s32 %v201, 512
          %v266 = vadd.s32 %v201, 520
          %v267 = vadd.s32 %v201, 528
          %v268 = vadd.s32 %v201, 536
          %v269 = vadd.s32 %v201, 544
          %v270 = vadd.s32 %v201, 552
          %v271 = vadd.s32 %v201, 560
          %v272 = vadd.s32 %v201, 568
          %v273 = vadd.s32 %v201, 576
          %v274 = vadd.s32 %v201, 584
          %v275 = vadd.s32 %v201, 592
          %v276 = vadd.s32 %v201, 600
          %v277 = vadd.s32 %v201, 608
          %v278 = vadd.s32 %v201, 616
          %v279 = vadd.s32 %v201, 624
          %v280 = vadd.s32 %v201, 632
          %v281 = vadd.s32 %v201, 640
          %v282 = vadd.s32 %v201, 648
          %v283 = vadd.s32 %v201, 656
          %v284 = vadd.s32 %v201, 664
          %v285 = vadd.s32 %v201, 672
          %v286 = vadd.s32 %v201, 680
          %v287 = vadd.s32 %v201, 688
          %v288 = vadd.s32 %v201, 696
          %v289 = vadd.s32 %v201, 704
          %v290 = vadd.s32 %v201, 712
          %v291 = vadd.s32 %v201, 720
          %v292 = vadd.s32 %v201, 728
          %v293 = vadd.s32 %v201, 736
          %v294 = vadd.s32 %v201, 744
          %v295 = vadd.s32 %v201, 752
          %v296 = vadd.s32 %v201, 760
          %v297 = vld [vmem:[#allocation3] sm:$0x3f]
          %v298 = vperm.slane %v297, 0
          %v299 = vperm.slane %v297, 1
          %v300 = vperm.slane %v297, 2
          %v301 = vperm.slane %v297, 3
          %v302 = vperm.slane %v297, 4
          %v303 = vperm.slane %v297, 5
          %vm304 = vcmp.eq.s32.totalorder %v201, %v298
          %vm305 = vcmp.eq.s32.totalorder %v201, %v299
          %vm306 = vcmp.eq.s32.totalorder %v201, %v300
          %vm307 = vcmp.eq.s32.totalorder %v201, %v301
          %vm308 = vcmp.eq.s32.totalorder %v201, %v302
          %vm309 = vcmp.eq.s32.totalorder %v201, %v303
          %vm310 = vcmp.eq.s32.totalorder %v202, %v298
          %vm311 = vcmp.eq.s32.totalorder %v202, %v299
          %vm312 = vcmp.eq.s32.totalorder %v202, %v300
          %vm313 = vcmp.eq.s32.totalorder %v202, %v301
          %vm314 = vcmp.eq.s32.totalorder %v202, %v302
          %vm315 = vcmp.eq.s32.totalorder %v202, %v303
          %vm316 = vcmp.eq.s32.totalorder %v203, %v298
          %vm317 = vcmp.eq.s32.totalorder %v203, %v299
          %vm318 = vcmp.eq.s32.totalorder %v203, %v300
          %vm319 = vcmp.eq.s32.totalorder %v203, %v301
          %vm320 = vcmp.eq.s32.totalorder %v203, %v302
          %vm321 = vcmp.eq.s32.totalorder %v203, %v303
          %vm322 = vcmp.eq.s32.totalorder %v204, %v298
          %vm323 = vcmp.eq.s32.totalorder %v204, %v299
          %vm324 = vcmp.eq.s32.totalorder %v204, %v300
          %vm325 = vcmp.eq.s32.totalorder %v204, %v301
          %vm326 = vcmp.eq.s32.totalorder %v204, %v302
          %vm327 = vcmp.eq.s32.totalorder %v204, %v303
          %vm328 = vcmp.eq.s32.totalorder %v205, %v298
          %vm329 = vcmp.eq.s32.totalorder %v205, %v299
          %vm330 = vcmp.eq.s32.totalorder %v205, %v300
          %vm331 = vcmp.eq.s32.totalorder %v205, %v301
          %vm332 = vcmp.eq.s32.totalorder %v205, %v302
          %vm333 = vcmp.eq.s32.totalorder %v205, %v303
          %vm334 = vcmp.eq.s32.totalorder %v206, %v298
          %vm335 = vcmp.eq.s32.totalorder %v206, %v299
          %vm336 = vcmp.eq.s32.totalorder %v206, %v300
          %vm337 = vcmp.eq.s32.totalorder %v206, %v301
          %vm338 = vcmp.eq.s32.totalorder %v206, %v302
          %vm339 = vcmp.eq.s32.totalorder %v206, %v303
          %vm340 = vcmp.eq.s32.totalorder %v207, %v298
          %vm341 = vcmp.eq.s32.totalorder %v207, %v299
          %vm342 = vcmp.eq.s32.totalorder %v207, %v300
          %vm343 = vcmp.eq.s32.totalorder %v207, %v301
          %vm344 = vcmp.eq.s32.totalorder %v207, %v302
          %vm345 = vcmp.eq.s32.totalorder %v207, %v303
          %vm346 = vcmp.eq.s32.totalorder %v208, %v298
          %vm347 = vcmp.eq.s32.totalorder %v208, %v299
          %vm348 = vcmp.eq.s32.totalorder %v208, %v300
          %vm349 = vcmp.eq.s32.totalorder %v208, %v301
          %vm350 = vcmp.eq.s32.totalorder %v208, %v302
          %vm351 = vcmp.eq.s32.totalorder %v208, %v303
          %vm352 = vcmp.eq.s32.totalorder %v209, %v298
          %vm353 = vcmp.eq.s32.totalorder %v209, %v299
          %vm354 = vcmp.eq.s32.totalorder %v209, %v300
          %vm355 = vcmp.eq.s32.totalorder %v209, %v301
          %vm356 = vcmp.eq.s32.totalorder %v209, %v302
          %vm357 = vcmp.eq.s32.totalorder %v209, %v303
          %vm358 = vcmp.eq.s32.totalorder %v210, %v298
          %vm359 = vcmp.eq.s32.totalorder %v210, %v299
          %vm360 = vcmp.eq.s32.totalorder %v210, %v300
          %vm361 = vcmp.eq.s32.totalorder %v210, %v301
          %vm362 = vcmp.eq.s32.totalorder %v210, %v302
          %vm363 = vcmp.eq.s32.totalorder %v210, %v303
          %vm364 = vcmp.eq.s32.totalorder %v211, %v298
          %vm365 = vcmp.eq.s32.totalorder %v211, %v299
          %vm366 = vcmp.eq.s32.totalorder %v211, %v300
          %vm367 = vcmp.eq.s32.totalorder %v211, %v301
          %vm368 = vcmp.eq.s32.totalorder %v211, %v302
          %vm369 = vcmp.eq.s32.totalorder %v211, %v303
          %vm370 = vcmp.eq.s32.totalorder %v212, %v298
          %vm371 = vcmp.eq.s32.totalorder %v212, %v299
          %vm372 = vcmp.eq.s32.totalorder %v212, %v300
          %vm373 = vcmp.eq.s32.totalorder %v212, %v301
          %vm374 = vcmp.eq.s32.totalorder %v212, %v302
          %vm375 = vcmp.eq.s32.totalorder %v212, %v303
          %vm376 = vcmp.eq.s32.totalorder %v213, %v298
          %vm377 = vcmp.eq.s32.totalorder %v213, %v299
          %vm378 = vcmp.eq.s32.totalorder %v213, %v300
          %vm379 = vcmp.eq.s32.totalorder %v213, %v301
          %vm380 = vcmp.eq.s32.totalorder %v213, %v302
          %vm381 = vcmp.eq.s32.totalorder %v213, %v303
          %vm382 = vcmp.eq.s32.totalorder %v214, %v298
          %vm383 = vcmp.eq.s32.totalorder %v214, %v299
          %vm384 = vcmp.eq.s32.totalorder %v214, %v300
          %vm385 = vcmp.eq.s32.totalorder %v214, %v301
          %vm386 = vcmp.eq.s32.totalorder %v214, %v302
          %vm387 = vcmp.eq.s32.totalorder %v214, %v303
          %vm388 = vcmp.eq.s32.totalorder %v215, %v298
          %vm389 = vcmp.eq.s32.totalorder %v215, %v299
          %vm390 = vcmp.eq.s32.totalorder %v215, %v300
          %vm391 = vcmp.eq.s32.totalorder %v215, %v301
          %vm392 = vcmp.eq.s32.totalorder %v215, %v302
          %vm393 = vcmp.eq.s32.totalorder %v215, %v303
          %vm394 = vcmp.eq.s32.totalorder %v216, %v298
          %vm395 = vcmp.eq.s32.totalorder %v216, %v299
          %vm396 = vcmp.eq.s32.totalorder %v216, %v300
          %vm397 = vcmp.eq.s32.totalorder %v216, %v301
          %vm398 = vcmp.eq.s32.totalorder %v216, %v302
          %vm399 = vcmp.eq.s32.totalorder %v216, %v303
          %vm400 = vcmp.eq.s32.totalorder %v217, %v298
          %vm401 = vcmp.eq.s32.totalorder %v217, %v299
          %vm402 = vcmp.eq.s32.totalorder %v217, %v300
          %vm403 = vcmp.eq.s32.totalorder %v217, %v301
          %vm404 = vcmp.eq.s32.totalorder %v217, %v302
          %vm405 = vcmp.eq.s32.totalorder %v217, %v303
          %vm406 = vcmp.eq.s32.totalorder %v218, %v298
          %vm407 = vcmp.eq.s32.totalorder %v218, %v299
          %vm408 = vcmp.eq.s32.totalorder %v218, %v300
          %vm409 = vcmp.eq.s32.totalorder %v218, %v301
          %vm410 = vcmp.eq.s32.totalorder %v218, %v302
          %vm411 = vcmp.eq.s32.totalorder %v218, %v303
          %vm412 = vcmp.eq.s32.totalorder %v219, %v298
          %vm413 = vcmp.eq.s32.totalorder %v219, %v299
          %vm414 = vcmp.eq.s32.totalorder %v219, %v300
          %vm415 = vcmp.eq.s32.totalorder %v219, %v301
          %vm416 = vcmp.eq.s32.totalorder %v219, %v302
          %vm417 = vcmp.eq.s32.totalorder %v219, %v303
          %vm418 = vcmp.eq.s32.totalorder %v220, %v298
          %vm419 = vcmp.eq.s32.totalorder %v220, %v299
          %vm420 = vcmp.eq.s32.totalorder %v220, %v300
          %vm421 = vcmp.eq.s32.totalorder %v220, %v301
          %vm422 = vcmp.eq.s32.totalorder %v220, %v302
          %vm423 = vcmp.eq.s32.totalorder %v220, %v303
          %vm424 = vcmp.eq.s32.totalorder %v221, %v298
          %vm425 = vcmp.eq.s32.totalorder %v221, %v299
          %vm426 = vcmp.eq.s32.totalorder %v221, %v300
          %vm427 = vcmp.eq.s32.totalorder %v221, %v301
          %vm428 = vcmp.eq.s32.totalorder %v221, %v302
          %vm429 = vcmp.eq.s32.totalorder %v221, %v303
          %vm430 = vcmp.eq.s32.totalorder %v222, %v298
          %vm431 = vcmp.eq.s32.totalorder %v222, %v299
          %vm432 = vcmp.eq.s32.totalorder %v222, %v300
          %vm433 = vcmp.eq.s32.totalorder %v222, %v301
          %vm434 = vcmp.eq.s32.totalorder %v222, %v302
          %vm435 = vcmp.eq.s32.totalorder %v222, %v303
          %vm436 = vcmp.eq.s32.totalorder %v223, %v298
          %vm437 = vcmp.eq.s32.totalorder %v223, %v299
          %vm438 = vcmp.eq.s32.totalorder %v223, %v300
          %vm439 = vcmp.eq.s32.totalorder %v223, %v301
          %vm440 = vcmp.eq.s32.totalorder %v223, %v302
          %vm441 = vcmp.eq.s32.totalorder %v223, %v303
          %vm442 = vcmp.eq.s32.totalorder %v224, %v298
          %vm443 = vcmp.eq.s32.totalorder %v224, %v299
          %vm444 = vcmp.eq.s32.totalorder %v224, %v300
          %vm445 = vcmp.eq.s32.totalorder %v224, %v301
          %vm446 = vcmp.eq.s32.totalorder %v224, %v302
          %vm447 = vcmp.eq.s32.totalorder %v224, %v303
          %vm448 = vcmp.eq.s32.totalorder %v225, %v298
          %vm449 = vcmp.eq.s32.totalorder %v225, %v299
          %vm450 = vcmp.eq.s32.totalorder %v225, %v300
          %vm451 = vcmp.eq.s32.totalorder %v225, %v301
          %vm452 = vcmp.eq.s32.totalorder %v225, %v302
          %vm453 = vcmp.eq.s32.totalorder %v225, %v303
          %vm454 = vcmp.eq.s32.totalorder %v226, %v298
          %vm455 = vcmp.eq.s32.totalorder %v226, %v299
          %vm456 = vcmp.eq.s32.totalorder %v226, %v300
          %vm457 = vcmp.eq.s32.totalorder %v226, %v301
          %vm458 = vcmp.eq.s32.totalorder %v226, %v302
          %vm459 = vcmp.eq.s32.totalorder %v226, %v303
          %vm460 = vcmp.eq.s32.totalorder %v227, %v298
          %vm461 = vcmp.eq.s32.totalorder %v227, %v299
          %vm462 = vcmp.eq.s32.totalorder %v227, %v300
          %vm463 = vcmp.eq.s32.totalorder %v227, %v301
          %vm464 = vcmp.eq.s32.totalorder %v227, %v302
          %vm465 = vcmp.eq.s32.totalorder %v227, %v303
          %vm466 = vcmp.eq.s32.totalorder %v228, %v298
          %vm467 = vcmp.eq.s32.totalorder %v228, %v299
          %vm468 = vcmp.eq.s32.totalorder %v228, %v300
          %vm469 = vcmp.eq.s32.totalorder %v228, %v301
          %vm470 = vcmp.eq.s32.totalorder %v228, %v302
          %vm471 = vcmp.eq.s32.totalorder %v228, %v303
          %vm472 = vcmp.eq.s32.totalorder %v229, %v298
          %vm473 = vcmp.eq.s32.totalorder %v229, %v299
          %vm474 = vcmp.eq.s32.totalorder %v229, %v300
          %vm475 = vcmp.eq.s32.totalorder %v229, %v301
          %vm476 = vcmp.eq.s32.totalorder %v229, %v302
          %vm477 = vcmp.eq.s32.totalorder %v229, %v303
          %vm478 = vcmp.eq.s32.totalorder %v230, %v298
          %vm479 = vcmp.eq.s32.totalorder %v230, %v299
          %vm480 = vcmp.eq.s32.totalorder %v230, %v300
          %vm481 = vcmp.eq.s32.totalorder %v230, %v301
          %vm482 = vcmp.eq.s32.totalorder %v230, %v302
          %vm483 = vcmp.eq.s32.totalorder %v230, %v303
          %vm484 = vcmp.eq.s32.totalorder %v231, %v298
          %vm485 = vcmp.eq.s32.totalorder %v231, %v299
          %vm486 = vcmp.eq.s32.totalorder %v231, %v300
          %vm487 = vcmp.eq.s32.totalorder %v231, %v301
          %vm488 = vcmp.eq.s32.totalorder %v231, %v302
          %vm489 = vcmp.eq.s32.totalorder %v231, %v303
          %vm490 = vcmp.eq.s32.totalorder %v232, %v298
          %vm491 = vcmp.eq.s32.totalorder %v232, %v299
          %vm492 = vcmp.eq.s32.totalorder %v232, %v300
          %vm493 = vcmp.eq.s32.totalorder %v232, %v301
          %vm494 = vcmp.eq.s32.totalorder %v232, %v302
          %vm495 = vcmp.eq.s32.totalorder %v232, %v303
          %vm496 = vcmp.eq.s32.totalorder %v233, %v298
          %vm497 = vcmp.eq.s32.totalorder %v233, %v299
          %vm498 = vcmp.eq.s32.totalorder %v233, %v300
          %vm499 = vcmp.eq.s32.totalorder %v233, %v301
          %vm500 = vcmp.eq.s32.totalorder %v233, %v302
          %vm501 = vcmp.eq.s32.totalorder %v233, %v303
          %vm502 = vcmp.eq.s32.totalorder %v234, %v298
          %vm503 = vcmp.eq.s32.totalorder %v234, %v299
          %vm504 = vcmp.eq.s32.totalorder %v234, %v300
          %vm505 = vcmp.eq.s32.totalorder %v234, %v301
          %vm506 = vcmp.eq.s32.totalorder %v234, %v302
          %vm507 = vcmp.eq.s32.totalorder %v234, %v303
          %vm508 = vcmp.eq.s32.totalorder %v235, %v298
          %vm509 = vcmp.eq.s32.totalorder %v235, %v299
          %vm510 = vcmp.eq.s32.totalorder %v235, %v300
          %vm511 = vcmp.eq.s32.totalorder %v235, %v301
          %vm512 = vcmp.eq.s32.totalorder %v235, %v302
          %vm513 = vcmp.eq.s32.totalorder %v235, %v303
          %vm514 = vcmp.eq.s32.totalorder %v236, %v298
          %vm515 = vcmp.eq.s32.totalorder %v236, %v299
          %vm516 = vcmp.eq.s32.totalorder %v236, %v300
          %vm517 = vcmp.eq.s32.totalorder %v236, %v301
          %vm518 = vcmp.eq.s32.totalorder %v236, %v302
          %vm519 = vcmp.eq.s32.totalorder %v236, %v303
          %vm520 = vcmp.eq.s32.totalorder %v237, %v298
          %vm521 = vcmp.eq.s32.totalorder %v237, %v299
          %vm522 = vcmp.eq.s32.totalorder %v237, %v300
          %vm523 = vcmp.eq.s32.totalorder %v237, %v301
          %vm524 = vcmp.eq.s32.totalorder %v237, %v302
          %vm525 = vcmp.eq.s32.totalorder %v237, %v303
          %vm526 = vcmp.eq.s32.totalorder %v238, %v298
          %vm527 = vcmp.eq.s32.totalorder %v238, %v299
          %vm528 = vcmp.eq.s32.totalorder %v238, %v300
          %vm529 = vcmp.eq.s32.totalorder %v238, %v301
          %vm530 = vcmp.eq.s32.totalorder %v238, %v302
          %vm531 = vcmp.eq.s32.totalorder %v238, %v303
          %vm532 = vcmp.eq.s32.totalorder %v239, %v298
          %vm533 = vcmp.eq.s32.totalorder %v239, %v299
          %vm534 = vcmp.eq.s32.totalorder %v239, %v300
          %vm535 = vcmp.eq.s32.totalorder %v239, %v301
          %vm536 = vcmp.eq.s32.totalorder %v239, %v302
          %vm537 = vcmp.eq.s32.totalorder %v239, %v303
          %vm538 = vcmp.eq.s32.totalorder %v240, %v298
          %vm539 = vcmp.eq.s32.totalorder %v240, %v299
          %vm540 = vcmp.eq.s32.totalorder %v240, %v300
          %vm541 = vcmp.eq.s32.totalorder %v240, %v301
          %vm542 = vcmp.eq.s32.totalorder %v240, %v302
          %vm543 = vcmp.eq.s32.totalorder %v240, %v303
          %vm544 = vcmp.eq.s32.totalorder %v241, %v298
          %vm545 = vcmp.eq.s32.totalorder %v241, %v299
          %vm546 = vcmp.eq.s32.totalorder %v241, %v300
          %vm547 = vcmp.eq.s32.totalorder %v241, %v301
          %vm548 = vcmp.eq.s32.totalorder %v241, %v302
          %vm549 = vcmp.eq.s32.totalorder %v241, %v303
          %vm550 = vcmp.eq.s32.totalorder %v242, %v298
          %vm551 = vcmp.eq.s32.totalorder %v242, %v299
          %vm552 = vcmp.eq.s32.totalorder %v242, %v300
          %vm553 = vcmp.eq.s32.totalorder %v242, %v301
          %vm554 = vcmp.eq.s32.totalorder %v242, %v302
          %vm555 = vcmp.eq.s32.totalorder %v242, %v303
          %vm556 = vcmp.eq.s32.totalorder %v243, %v298
          %vm557 = vcmp.eq.s32.totalorder %v243, %v299
          %vm558 = vcmp.eq.s32.totalorder %v243, %v300
          %vm559 = vcmp.eq.s32.totalorder %v243, %v301
          %vm560 = vcmp.eq.s32.totalorder %v243, %v302
          %vm561 = vcmp.eq.s32.totalorder %v243, %v303
          %vm562 = vcmp.eq.s32.totalorder %v244, %v298
          %vm563 = vcmp.eq.s32.totalorder %v244, %v299
          %vm564 = vcmp.eq.s32.totalorder %v244, %v300
          %vm565 = vcmp.eq.s32.totalorder %v244, %v301
          %vm566 = vcmp.eq.s32.totalorder %v244, %v302
          %vm567 = vcmp.eq.s32.totalorder %v244, %v303
          %vm568 = vcmp.eq.s32.totalorder %v245, %v298
          %vm569 = vcmp.eq.s32.totalorder %v245, %v299
          %vm570 = vcmp.eq.s32.totalorder %v245, %v300
          %vm571 = vcmp.eq.s32.totalorder %v245, %v301
          %vm572 = vcmp.eq.s32.totalorder %v245, %v302
          %vm573 = vcmp.eq.s32.totalorder %v245, %v303
          %vm574 = vcmp.eq.s32.totalorder %v246, %v298
          %vm575 = vcmp.eq.s32.totalorder %v246, %v299
          %vm576 = vcmp.eq.s32.totalorder %v246, %v300
          %vm577 = vcmp.eq.s32.totalorder %v246, %v301
          %vm578 = vcmp.eq.s32.totalorder %v246, %v302
          %vm579 = vcmp.eq.s32.totalorder %v246, %v303
          %vm580 = vcmp.eq.s32.totalorder %v247, %v298
          %vm581 = vcmp.eq.s32.totalorder %v247, %v299
          %vm582 = vcmp.eq.s32.totalorder %v247, %v300
          %vm583 = vcmp.eq.s32.totalorder %v247, %v301
          %vm584 = vcmp.eq.s32.totalorder %v247, %v302
          %vm585 = vcmp.eq.s32.totalorder %v247, %v303
          %vm586 = vcmp.eq.s32.totalorder %v248, %v298
          %vm587 = vcmp.eq.s32.totalorder %v248, %v299
          %vm588 = vcmp.eq.s32.totalorder %v248, %v300
          %vm589 = vcmp.eq.s32.totalorder %v248, %v301
          %vm590 = vcmp.eq.s32.totalorder %v248, %v302
          %vm591 = vcmp.eq.s32.totalorder %v248, %v303
          %vm592 = vcmp.eq.s32.totalorder %v249, %v298
          %vm593 = vcmp.eq.s32.totalorder %v249, %v299
          %vm594 = vcmp.eq.s32.totalorder %v249, %v300
          %vm595 = vcmp.eq.s32.totalorder %v249, %v301
          %vm596 = vcmp.eq.s32.totalorder %v249, %v302
          %vm597 = vcmp.eq.s32.totalorder %v249, %v303
          %vm598 = vcmp.eq.s32.totalorder %v250, %v298
          %vm599 = vcmp.eq.s32.totalorder %v250, %v299
          %vm600 = vcmp.eq.s32.totalorder %v250, %v300
          %vm601 = vcmp.eq.s32.totalorder %v250, %v301
          %vm602 = vcmp.eq.s32.totalorder %v250, %v302
          %vm603 = vcmp.eq.s32.totalorder %v250, %v303
          %vm604 = vcmp.eq.s32.totalorder %v251, %v298
          %vm605 = vcmp.eq.s32.totalorder %v251, %v299
          %vm606 = vcmp.eq.s32.totalorder %v251, %v300
          %vm607 = vcmp.eq.s32.totalorder %v251, %v301
          %vm608 = vcmp.eq.s32.totalorder %v251, %v302
          %vm609 = vcmp.eq.s32.totalorder %v251, %v303
          %vm610 = vcmp.eq.s32.totalorder %v252, %v298
          %vm611 = vcmp.eq.s32.totalorder %v252, %v299
          %vm612 = vcmp.eq.s32.totalorder %v252, %v300
          %vm613 = vcmp.eq.s32.totalorder %v252, %v301
          %vm614 = vcmp.eq.s32.totalorder %v252, %v302
          %vm615 = vcmp.eq.s32.totalorder %v252, %v303
          %vm616 = vcmp.eq.s32.totalorder %v253, %v298
          %vm617 = vcmp.eq.s32.totalorder %v253, %v299
          %vm618 = vcmp.eq.s32.totalorder %v253, %v300
          %vm619 = vcmp.eq.s32.totalorder %v253, %v301
          %vm620 = vcmp.eq.s32.totalorder %v253, %v302
          %vm621 = vcmp.eq.s32.totalorder %v253, %v303
          %vm622 = vcmp.eq.s32.totalorder %v254, %v298
          %vm623 = vcmp.eq.s32.totalorder %v254, %v299
          %vm624 = vcmp.eq.s32.totalorder %v254, %v300
          %vm625 = vcmp.eq.s32.totalorder %v254, %v301
          %vm626 = vcmp.eq.s32.totalorder %v254, %v302
          %vm627 = vcmp.eq.s32.totalorder %v254, %v303
          %vm628 = vcmp.eq.s32.totalorder %v255, %v298
          %vm629 = vcmp.eq.s32.totalorder %v255, %v299
          %vm630 = vcmp.eq.s32.totalorder %v255, %v300
          %vm631 = vcmp.eq.s32.totalorder %v255, %v301
          %vm632 = vcmp.eq.s32.totalorder %v255, %v302
          %vm633 = vcmp.eq.s32.totalorder %v255, %v303
          %vm634 = vcmp.eq.s32.totalorder %v256, %v298
          %vm635 = vcmp.eq.s32.totalorder %v256, %v299
          %vm636 = vcmp.eq.s32.totalorder %v256, %v300
          %vm637 = vcmp.eq.s32.totalorder %v256, %v301
          %vm638 = vcmp.eq.s32.totalorder %v256, %v302
          %vm639 = vcmp.eq.s32.totalorder %v256, %v303
          %vm640 = vcmp.eq.s32.totalorder %v257, %v298
          %vm641 = vcmp.eq.s32.totalorder %v257, %v299
          %vm642 = vcmp.eq.s32.totalorder %v257, %v300
          %vm643 = vcmp.eq.s32.totalorder %v257, %v301
          %vm644 = vcmp.eq.s32.totalorder %v257, %v302
          %vm645 = vcmp.eq.s32.totalorder %v257, %v303
          %vm646 = vcmp.eq.s32.totalorder %v258, %v298
          %vm647 = vcmp.eq.s32.totalorder %v258, %v299
          %vm648 = vcmp.eq.s32.totalorder %v258, %v300
          %vm649 = vcmp.eq.s32.totalorder %v258, %v301
          %vm650 = vcmp.eq.s32.totalorder %v258, %v302
          %vm651 = vcmp.eq.s32.totalorder %v258, %v303
          %vm652 = vcmp.eq.s32.totalorder %v259, %v298
          %vm653 = vcmp.eq.s32.totalorder %v259, %v299
          %vm654 = vcmp.eq.s32.totalorder %v259, %v300
          %vm655 = vcmp.eq.s32.totalorder %v259, %v301
          %vm656 = vcmp.eq.s32.totalorder %v259, %v302
          %vm657 = vcmp.eq.s32.totalorder %v259, %v303
          %vm658 = vcmp.eq.s32.totalorder %v260, %v298
          %vm659 = vcmp.eq.s32.totalorder %v260, %v299
          %vm660 = vcmp.eq.s32.totalorder %v260, %v300
          %vm661 = vcmp.eq.s32.totalorder %v260, %v301
          %vm662 = vcmp.eq.s32.totalorder %v260, %v302
          %vm663 = vcmp.eq.s32.totalorder %v260, %v303
          %vm664 = vcmp.eq.s32.totalorder %v261, %v298
          %vm665 = vcmp.eq.s32.totalorder %v261, %v299
          %vm666 = vcmp.eq.s32.totalorder %v261, %v300
          %vm667 = vcmp.eq.s32.totalorder %v261, %v301
          %vm668 = vcmp.eq.s32.totalorder %v261, %v302
          %vm669 = vcmp.eq.s32.totalorder %v261, %v303
          %vm670 = vcmp.eq.s32.totalorder %v262, %v298
          %vm671 = vcmp.eq.s32.totalorder %v262, %v299
          %vm672 = vcmp.eq.s32.totalorder %v262, %v300
          %vm673 = vcmp.eq.s32.totalorder %v262, %v301
          %vm674 = vcmp.eq.s32.totalorder %v262, %v302
          %vm675 = vcmp.eq.s32.totalorder %v262, %v303
          %vm676 = vcmp.eq.s32.totalorder %v263, %v298
          %vm677 = vcmp.eq.s32.totalorder %v263, %v299
          %vm678 = vcmp.eq.s32.totalorder %v263, %v300
          %vm679 = vcmp.eq.s32.totalorder %v263, %v301
          %vm680 = vcmp.eq.s32.totalorder %v263, %v302
          %vm681 = vcmp.eq.s32.totalorder %v263, %v303
          %vm682 = vcmp.eq.s32.totalorder %v264, %v298
          %vm683 = vcmp.eq.s32.totalorder %v264, %v299
          %vm684 = vcmp.eq.s32.totalorder %v264, %v300
          %vm685 = vcmp.eq.s32.totalorder %v264, %v301
          %vm686 = vcmp.eq.s32.totalorder %v264, %v302
          %vm687 = vcmp.eq.s32.totalorder %v264, %v303
          %vm688 = vcmp.eq.s32.totalorder %v265, %v298
          %vm689 = vcmp.eq.s32.totalorder %v265, %v299
          %vm690 = vcmp.eq.s32.totalorder %v265, %v300
          %vm691 = vcmp.eq.s32.totalorder %v265, %v301
          %vm692 = vcmp.eq.s32.totalorder %v265, %v302
          %vm693 = vcmp.eq.s32.totalorder %v265, %v303
          %vm694 = vcmp.eq.s32.totalorder %v266, %v298
          %vm695 = vcmp.eq.s32.totalorder %v266, %v299
          %vm696 = vcmp.eq.s32.totalorder %v266, %v300
          %vm697 = vcmp.eq.s32.totalorder %v266, %v301
          %vm698 = vcmp.eq.s32.totalorder %v266, %v302
          %vm699 = vcmp.eq.s32.totalorder %v266, %v303
          %vm700 = vcmp.eq.s32.totalorder %v267, %v298
          %vm701 = vcmp.eq.s32.totalorder %v267, %v299
          %vm702 = vcmp.eq.s32.totalorder %v267, %v300
          %vm703 = vcmp.eq.s32.totalorder %v267, %v301
          %vm704 = vcmp.eq.s32.totalorder %v267, %v302
          %vm705 = vcmp.eq.s32.totalorder %v267, %v303
          %vm706 = vcmp.eq.s32.totalorder %v268, %v298
          %vm707 = vcmp.eq.s32.totalorder %v268, %v299
          %vm708 = vcmp.eq.s32.totalorder %v268, %v300
          %vm709 = vcmp.eq.s32.totalorder %v268, %v301
          %vm710 = vcmp.eq.s32.totalorder %v268, %v302
          %vm711 = vcmp.eq.s32.totalorder %v268, %v303
          %vm712 = vcmp.eq.s32.totalorder %v269, %v298
          %vm713 = vcmp.eq.s32.totalorder %v269, %v299
          %vm714 = vcmp.eq.s32.totalorder %v269, %v300
          %vm715 = vcmp.eq.s32.totalorder %v269, %v301
          %vm716 = vcmp.eq.s32.totalorder %v269, %v302
          %vm717 = vcmp.eq.s32.totalorder %v269, %v303
          %vm718 = vcmp.eq.s32.totalorder %v270, %v298
          %vm719 = vcmp.eq.s32.totalorder %v270, %v299
          %vm720 = vcmp.eq.s32.totalorder %v270, %v300
          %vm721 = vcmp.eq.s32.totalorder %v270, %v301
          %vm722 = vcmp.eq.s32.totalorder %v270, %v302
          %vm723 = vcmp.eq.s32.totalorder %v270, %v303
          %vm724 = vcmp.eq.s32.totalorder %v271, %v298
          %vm725 = vcmp.eq.s32.totalorder %v271, %v299
          %vm726 = vcmp.eq.s32.totalorder %v271, %v300
          %vm727 = vcmp.eq.s32.totalorder %v271, %v301
          %vm728 = vcmp.eq.s32.totalorder %v271, %v302
          %vm729 = vcmp.eq.s32.totalorder %v271, %v303
          %vm730 = vcmp.eq.s32.totalorder %v272, %v298
          %vm731 = vcmp.eq.s32.totalorder %v272, %v299
          %vm732 = vcmp.eq.s32.totalorder %v272, %v300
          %vm733 = vcmp.eq.s32.totalorder %v272, %v301
          %vm734 = vcmp.eq.s32.totalorder %v272, %v302
          %vm735 = vcmp.eq.s32.totalorder %v272, %v303
          %vm736 = vcmp.eq.s32.totalorder %v273, %v298
          %vm737 = vcmp.eq.s32.totalorder %v273, %v299
          %vm738 = vcmp.eq.s32.totalorder %v273, %v300
          %vm739 = vcmp.eq.s32.totalorder %v273, %v301
          %vm740 = vcmp.eq.s32.totalorder %v273, %v302
          %vm741 = vcmp.eq.s32.totalorder %v273, %v303
          %vm742 = vcmp.eq.s32.totalorder %v274, %v298
          %vm743 = vcmp.eq.s32.totalorder %v274, %v299
          %vm744 = vcmp.eq.s32.totalorder %v274, %v300
          %vm745 = vcmp.eq.s32.totalorder %v274, %v301
          %vm746 = vcmp.eq.s32.totalorder %v274, %v302
          %vm747 = vcmp.eq.s32.totalorder %v274, %v303
          %vm748 = vcmp.eq.s32.totalorder %v275, %v298
          %vm749 = vcmp.eq.s32.totalorder %v275, %v299
          %vm750 = vcmp.eq.s32.totalorder %v275, %v300
          %vm751 = vcmp.eq.s32.totalorder %v275, %v301
          %vm752 = vcmp.eq.s32.totalorder %v275, %v302
          %vm753 = vcmp.eq.s32.totalorder %v275, %v303
          %vm754 = vcmp.eq.s32.totalorder %v276, %v298
          %vm755 = vcmp.eq.s32.totalorder %v276, %v299
          %vm756 = vcmp.eq.s32.totalorder %v276, %v300
          %vm757 = vcmp.eq.s32.totalorder %v276, %v301
          %vm758 = vcmp.eq.s32.totalorder %v276, %v302
          %vm759 = vcmp.eq.s32.totalorder %v276, %v303
          %vm760 = vcmp.eq.s32.totalorder %v277, %v298
          %vm761 = vcmp.eq.s32.totalorder %v277, %v299
          %vm762 = vcmp.eq.s32.totalorder %v277, %v300
          %vm763 = vcmp.eq.s32.totalorder %v277, %v301
          %vm764 = vcmp.eq.s32.totalorder %v277, %v302
          %vm765 = vcmp.eq.s32.totalorder %v277, %v303
          %vm766 = vcmp.eq.s32.totalorder %v278, %v298
          %vm767 = vcmp.eq.s32.totalorder %v278, %v299
          %vm768 = vcmp.eq.s32.totalorder %v278, %v300
          %vm769 = vcmp.eq.s32.totalorder %v278, %v301
          %vm770 = vcmp.eq.s32.totalorder %v278, %v302
          %vm771 = vcmp.eq.s32.totalorder %v278, %v303
          %vm772 = vcmp.eq.s32.totalorder %v279, %v298
          %vm773 = vcmp.eq.s32.totalorder %v279, %v299
          %vm774 = vcmp.eq.s32.totalorder %v279, %v300
          %vm775 = vcmp.eq.s32.totalorder %v279, %v301
          %vm776 = vcmp.eq.s32.totalorder %v279, %v302
          %vm777 = vcmp.eq.s32.totalorder %v279, %v303
          %vm778 = vcmp.eq.s32.totalorder %v280, %v298
          %vm779 = vcmp.eq.s32.totalorder %v280, %v299
          %vm780 = vcmp.eq.s32.totalorder %v280, %v300
          %vm781 = vcmp.eq.s32.totalorder %v280, %v301
          %vm782 = vcmp.eq.s32.totalorder %v280, %v302
          %vm783 = vcmp.eq.s32.totalorder %v280, %v303
          %vm784 = vcmp.eq.s32.totalorder %v281, %v298
          %vm785 = vcmp.eq.s32.totalorder %v281, %v299
          %vm786 = vcmp.eq.s32.totalorder %v281, %v300
          %vm787 = vcmp.eq.s32.totalorder %v281, %v301
          %vm788 = vcmp.eq.s32.totalorder %v281, %v302
          %vm789 = vcmp.eq.s32.totalorder %v281, %v303
          %vm790 = vcmp.eq.s32.totalorder %v282, %v298
          %vm791 = vcmp.eq.s32.totalorder %v282, %v299
          %vm792 = vcmp.eq.s32.totalorder %v282, %v300
          %vm793 = vcmp.eq.s32.totalorder %v282, %v301
          %vm794 = vcmp.eq.s32.totalorder %v282, %v302
          %vm795 = vcmp.eq.s32.totalorder %v282, %v303
          %vm796 = vcmp.eq.s32.totalorder %v283, %v298
          %vm797 = vcmp.eq.s32.totalorder %v283, %v299
          %vm798 = vcmp.eq.s32.totalorder %v283, %v300
          %vm799 = vcmp.eq.s32.totalorder %v283, %v301
          %vm800 = vcmp.eq.s32.totalorder %v283, %v302
          %vm801 = vcmp.eq.s32.totalorder %v283, %v303
          %vm802 = vcmp.eq.s32.totalorder %v284, %v298
          %vm803 = vcmp.eq.s32.totalorder %v284, %v299
          %vm804 = vcmp.eq.s32.totalorder %v284, %v300
          %vm805 = vcmp.eq.s32.totalorder %v284, %v301
          %vm806 = vcmp.eq.s32.totalorder %v284, %v302
          %vm807 = vcmp.eq.s32.totalorder %v284, %v303
          %vm808 = vcmp.eq.s32.totalorder %v285, %v298
          %vm809 = vcmp.eq.s32.totalorder %v285, %v299
          %vm810 = vcmp.eq.s32.totalorder %v285, %v300
          %vm811 = vcmp.eq.s32.totalorder %v285, %v301
          %vm812 = vcmp.eq.s32.totalorder %v285, %v302
          %vm813 = vcmp.eq.s32.totalorder %v285, %v303
          %vm814 = vcmp.eq.s32.totalorder %v286, %v298
          %vm815 = vcmp.eq.s32.totalorder %v286, %v299
          %vm816 = vcmp.eq.s32.totalorder %v286, %v300
          %vm817 = vcmp.eq.s32.totalorder %v286, %v301
          %vm818 = vcmp.eq.s32.totalorder %v286, %v302
          %vm819 = vcmp.eq.s32.totalorder %v286, %v303
          %vm820 = vcmp.eq.s32.totalorder %v287, %v298
          %vm821 = vcmp.eq.s32.totalorder %v287, %v299
          %vm822 = vcmp.eq.s32.totalorder %v287, %v300
          %vm823 = vcmp.eq.s32.totalorder %v287, %v301
          %vm824 = vcmp.eq.s32.totalorder %v287, %v302
          %vm825 = vcmp.eq.s32.totalorder %v287, %v303
          %vm826 = vcmp.eq.s32.totalorder %v288, %v298
          %vm827 = vcmp.eq.s32.totalorder %v288, %v299
          %vm828 = vcmp.eq.s32.totalorder %v288, %v300
          %vm829 = vcmp.eq.s32.totalorder %v288, %v301
          %vm830 = vcmp.eq.s32.totalorder %v288, %v302
          %vm831 = vcmp.eq.s32.totalorder %v288, %v303
          %vm832 = vcmp.eq.s32.totalorder %v289, %v298
          %vm833 = vcmp.eq.s32.totalorder %v289, %v299
          %vm834 = vcmp.eq.s32.totalorder %v289, %v300
          %vm835 = vcmp.eq.s32.totalorder %v289, %v301
          %vm836 = vcmp.eq.s32.totalorder %v289, %v302
          %vm837 = vcmp.eq.s32.totalorder %v289, %v303
          %vm838 = vcmp.eq.s32.totalorder %v290, %v298
          %vm839 = vcmp.eq.s32.totalorder %v290, %v299
          %vm840 = vcmp.eq.s32.totalorder %v290, %v300
          %vm841 = vcmp.eq.s32.totalorder %v290, %v301
          %vm842 = vcmp.eq.s32.totalorder %v290, %v302
          %vm843 = vcmp.eq.s32.totalorder %v290, %v303
          %vm844 = vcmp.eq.s32.totalorder %v291, %v298
          %vm845 = vcmp.eq.s32.totalorder %v291, %v299
          %vm846 = vcmp.eq.s32.totalorder %v291, %v300
          %vm847 = vcmp.eq.s32.totalorder %v291, %v301
          %vm848 = vcmp.eq.s32.totalorder %v291, %v302
          %vm849 = vcmp.eq.s32.totalorder %v291, %v303
          %vm850 = vcmp.eq.s32.totalorder %v292, %v298
          %vm851 = vcmp.eq.s32.totalorder %v292, %v299
          %vm852 = vcmp.eq.s32.totalorder %v292, %v300
          %vm853 = vcmp.eq.s32.totalorder %v292, %v301
          %vm854 = vcmp.eq.s32.totalorder %v292, %v302
          %vm855 = vcmp.eq.s32.totalorder %v292, %v303
          %vm856 = vcmp.eq.s32.totalorder %v293, %v298
          %vm857 = vcmp.eq.s32.totalorder %v293, %v299
          %vm858 = vcmp.eq.s32.totalorder %v293, %v300
          %vm859 = vcmp.eq.s32.totalorder %v293, %v301
          %vm860 = vcmp.eq.s32.totalorder %v293, %v302
          %vm861 = vcmp.eq.s32.totalorder %v293, %v303
          %vm862 = vcmp.eq.s32.totalorder %v294, %v298
          %vm863 = vcmp.eq.s32.totalorder %v294, %v299
          %vm864 = vcmp.eq.s32.totalorder %v294, %v300
          %vm865 = vcmp.eq.s32.totalorder %v294, %v301
          %vm866 = vcmp.eq.s32.totalorder %v294, %v302
          %vm867 = vcmp.eq.s32.totalorder %v294, %v303
          %vm868 = vcmp.eq.s32.totalorder %v295, %v298
          %vm869 = vcmp.eq.s32.totalorder %v295, %v299
          %vm870 = vcmp.eq.s32.totalorder %v295, %v300
          %vm871 = vcmp.eq.s32.totalorder %v295, %v301
          %vm872 = vcmp.eq.s32.totalorder %v295, %v302
          %vm873 = vcmp.eq.s32.totalorder %v295, %v303
          %vm874 = vcmp.eq.s32.totalorder %v296, %v298
          %vm875 = vcmp.eq.s32.totalorder %v296, %v299
          %vm876 = vcmp.eq.s32.totalorder %v296, %v300
          %vm877 = vcmp.eq.s32.totalorder %v296, %v301
          %vm878 = vcmp.eq.s32.totalorder %v296, %v302
          %vm879 = vcmp.eq.s32.totalorder %v296, %v303
          %v880 = vsel %vm304, 1, 0
          %v881 = vsel %vm305, 1, 0
          %v882 = vsel %vm306, 1, 0
          %v883 = vsel %vm307, 1, 0
          %v884 = vsel %vm308, 1, 0
          %v885 = vsel %vm309, 1, 0
          %v886 = vsel %vm310, 1, 0
          %v887 = vsel %vm311, 1, 0
          %v888 = vsel %vm312, 1, 0
          %v889 = vsel %vm313, 1, 0
          %v890 = vsel %vm314, 1, 0
          %v891 = vsel %vm315, 1, 0
          %v892 = vsel %vm316, 1, 0
          %v893 = vsel %vm317, 1, 0
          %v894 = vsel %vm318, 1, 0
          %v895 = vsel %vm319, 1, 0
          %v896 = vsel %vm320, 1, 0
          %v897 = vsel %vm321, 1, 0
          %v898 = vsel %vm322, 1, 0
          %v899 = vsel %vm323, 1, 0
          %v900 = vsel %vm324, 1, 0
          %v901 = vsel %vm325, 1, 0
          %v902 = vsel %vm326, 1, 0
          %v903 = vsel %vm327, 1, 0
          %v904 = vsel %vm328, 1, 0
          %v905 = vsel %vm329, 1, 0
          %v906 = vsel %vm330, 1, 0
          %v907 = vsel %vm331, 1, 0
          %v908 = vsel %vm332, 1, 0
          %v909 = vsel %vm333, 1, 0
          %v910 = vsel %vm334, 1, 0
          %v911 = vsel %vm335, 1, 0
          %v912 = vsel %vm336, 1, 0
          %v913 = vsel %vm337, 1, 0
          %v914 = vsel %vm338, 1, 0
          %v915 = vsel %vm339, 1, 0
          %v916 = vsel %vm340, 1, 0
          %v917 = vsel %vm341, 1, 0
          %v918 = vsel %vm342, 1, 0
          %v919 = vsel %vm343, 1, 0
          %v920 = vsel %vm344, 1, 0
          %v921 = vsel %vm345, 1, 0
          %v922 = vsel %vm346, 1, 0
          %v923 = vsel %vm347, 1, 0
          %v924 = vsel %vm348, 1, 0
          %v925 = vsel %vm349, 1, 0
          %v926 = vsel %vm350, 1, 0
          %v927 = vsel %vm351, 1, 0
          %v928 = vsel %vm352, 1, 0
          %v929 = vsel %vm353, 1, 0
          %v930 = vsel %vm354, 1, 0
          %v931 = vsel %vm355, 1, 0
          %v932 = vsel %vm356, 1, 0
          %v933 = vsel %vm357, 1, 0
          %v934 = vsel %vm358, 1, 0
          %v935 = vsel %vm359, 1, 0
          %v936 = vsel %vm360, 1, 0
          %v937 = vsel %vm361, 1, 0
          %v938 = vsel %vm362, 1, 0
          %v939 = vsel %vm363, 1, 0
          %v940 = vsel %vm364, 1, 0
          %v941 = vsel %vm365, 1, 0
          %v942 = vsel %vm366, 1, 0
          %v943 = vsel %vm367, 1, 0
          %v944 = vsel %vm368, 1, 0
          %v945 = vsel %vm369, 1, 0
          %v946 = vsel %vm370, 1, 0
          %v947 = vsel %vm371, 1, 0
          %v948 = vsel %vm372, 1, 0
          %v949 = vsel %vm373, 1, 0
          %v950 = vsel %vm374, 1, 0
          %v951 = vsel %vm375, 1, 0
          %v952 = vsel %vm376, 1, 0
          %v953 = vsel %vm377, 1, 0
          %v954 = vsel %vm378, 1, 0
          %v955 = vsel %vm379, 1, 0
          %v956 = vsel %vm380, 1, 0
          %v957 = vsel %vm381, 1, 0
          %v958 = vsel %vm382, 1, 0
          %v959 = vsel %vm383, 1, 0
          %v960 = vsel %vm384, 1, 0
          %v961 = vsel %vm385, 1, 0
          %v962 = vsel %vm386, 1, 0
          %v963 = vsel %vm387, 1, 0
          %v964 = vsel %vm388, 1, 0
          %v965 = vsel %vm389, 1, 0
          %v966 = vsel %vm390, 1, 0
          %v967 = vsel %vm391, 1, 0
          %v968 = vsel %vm392, 1, 0
          %v969 = vsel %vm393, 1, 0
          %v970 = vsel %vm394, 1, 0
          %v971 = vsel %vm395, 1, 0
          %v972 = vsel %vm396, 1, 0
          %v973 = vsel %vm397, 1, 0
          %v974 = vsel %vm398, 1, 0
          %v975 = vsel %vm399, 1, 0
          %v976 = vsel %vm400, 1, 0
          %v977 = vsel %vm401, 1, 0
          %v978 = vsel %vm402, 1, 0
          %v979 = vsel %vm403, 1, 0
          %v980 = vsel %vm404, 1, 0
          %v981 = vsel %vm405, 1, 0
          %v982 = vsel %vm406, 1, 0
          %v983 = vsel %vm407, 1, 0
          %v984 = vsel %vm408, 1, 0
          %v985 = vsel %vm409, 1, 0
          %v986 = vsel %vm410, 1, 0
          %v987 = vsel %vm411, 1, 0
          %v988 = vsel %vm412, 1, 0
          %v989 = vsel %vm413, 1, 0
          %v990 = vsel %vm414, 1, 0
          %v991 = vsel %vm415, 1, 0
          %v992 = vsel %vm416, 1, 0
          %v993 = vsel %vm417, 1, 0
          %v994 = vsel %vm418, 1, 0
          %v995 = vsel %vm419, 1, 0
          %v996 = vsel %vm420, 1, 0
          %v997 = vsel %vm421, 1, 0
          %v998 = vsel %vm422, 1, 0
          %v999 = vsel %vm423, 1, 0
          %v1000 = vsel %vm424, 1, 0
          %v1001 = vsel %vm425, 1, 0
          %v1002 = vsel %vm426, 1, 0
          %v1003 = vsel %vm427, 1, 0
          %v1004 = vsel %vm428, 1, 0
          %v1005 = vsel %vm429, 1, 0
          %v1006 = vsel %vm430, 1, 0
          %v1007 = vsel %vm431, 1, 0
          %v1008 = vsel %vm432, 1, 0
          %v1009 = vsel %vm433, 1, 0
          %v1010 = vsel %vm434, 1, 0
          %v1011 = vsel %vm435, 1, 0
          %v1012 = vsel %vm436, 1, 0
          %v1013 = vsel %vm437, 1, 0
          %v1014 = vsel %vm438, 1, 0
          %v1015 = vsel %vm439, 1, 0
          %v1016 = vsel %vm440, 1, 0
          %v1017 = vsel %vm441, 1, 0
          %v1018 = vsel %vm442, 1, 0
          %v1019 = vsel %vm443, 1, 0
          %v1020 = vsel %vm444, 1, 0
          %v1021 = vsel %vm445, 1, 0
          %v1022 = vsel %vm446, 1, 0
          %v1023 = vsel %vm447, 1, 0
          %v1024 = vsel %vm448, 1, 0
          %v1025 = vsel %vm449, 1, 0
          %v1026 = vsel %vm450, 1, 0
          %v1027 = vsel %vm451, 1, 0
          %v1028 = vsel %vm452, 1, 0
          %v1029 = vsel %vm453, 1, 0
          %v1030 = vsel %vm454, 1, 0
          %v1031 = vsel %vm455, 1, 0
          %v1032 = vsel %vm456, 1, 0
          %v1033 = vsel %vm457, 1, 0
          %v1034 = vsel %vm458, 1, 0
          %v1035 = vsel %vm459, 1, 0
          %v1036 = vsel %vm460, 1, 0
          %v1037 = vsel %vm461, 1, 0
          %v1038 = vsel %vm462, 1, 0
          %v1039 = vsel %vm463, 1, 0
          %v1040 = vsel %vm464, 1, 0
          %v1041 = vsel %vm465, 1, 0
          %v1042 = vsel %vm466, 1, 0
          %v1043 = vsel %vm467, 1, 0
          %v1044 = vsel %vm468, 1, 0
          %v1045 = vsel %vm469, 1, 0
          %v1046 = vsel %vm470, 1, 0
          %v1047 = vsel %vm471, 1, 0
          %v1048 = vsel %vm472, 1, 0
          %v1049 = vsel %vm473, 1, 0
          %v1050 = vsel %vm474, 1, 0
          %v1051 = vsel %vm475, 1, 0
          %v1052 = vsel %vm476, 1, 0
          %v1053 = vsel %vm477, 1, 0
          %v1054 = vsel %vm478, 1, 0
          %v1055 = vsel %vm479, 1, 0
          %v1056 = vsel %vm480, 1, 0
          %v1057 = vsel %vm481, 1, 0
          %v1058 = vsel %vm482, 1, 0
          %v1059 = vsel %vm483, 1, 0
          %v1060 = vsel %vm484, 1, 0
          %v1061 = vsel %vm485, 1, 0
          %v1062 = vsel %vm486, 1, 0
          %v1063 = vsel %vm487, 1, 0
          %v1064 = vsel %vm488, 1, 0
          %v1065 = vsel %vm489, 1, 0
          %v1066 = vsel %vm490, 1, 0
          %v1067 = vsel %vm491, 1, 0
          %v1068 = vsel %vm492, 1, 0
          %v1069 = vsel %vm493, 1, 0
          %v1070 = vsel %vm494, 1, 0
          %v1071 = vsel %vm495, 1, 0
          %v1072 = vsel %vm496, 1, 0
          %v1073 = vsel %vm497, 1, 0
          %v1074 = vsel %vm498, 1, 0
          %v1075 = vsel %vm499, 1, 0
          %v1076 = vsel %vm500, 1, 0
          %v1077 = vsel %vm501, 1, 0
          %v1078 = vsel %vm502, 1, 0
          %v1079 = vsel %vm503, 1, 0
          %v1080 = vsel %vm504, 1, 0
          %v1081 = vsel %vm505, 1, 0
          %v1082 = vsel %vm506, 1, 0
          %v1083 = vsel %vm507, 1, 0
          %v1084 = vsel %vm508, 1, 0
          %v1085 = vsel %vm509, 1, 0
          %v1086 = vsel %vm510, 1, 0
          %v1087 = vsel %vm511, 1, 0
          %v1088 = vsel %vm512, 1, 0
          %v1089 = vsel %vm513, 1, 0
          %v1090 = vsel %vm514, 1, 0
          %v1091 = vsel %vm515, 1, 0
          %v1092 = vsel %vm516, 1, 0
          %v1093 = vsel %vm517, 1, 0
          %v1094 = vsel %vm518, 1, 0
          %v1095 = vsel %vm519, 1, 0
          %v1096 = vsel %vm520, 1, 0
          %v1097 = vsel %vm521, 1, 0
          %v1098 = vsel %vm522, 1, 0
          %v1099 = vsel %vm523, 1, 0
          %v1100 = vsel %vm524, 1, 0
          %v1101 = vsel %vm525, 1, 0
          %v1102 = vsel %vm526, 1, 0
          %v1103 = vsel %vm527, 1, 0
          %v1104 = vsel %vm528, 1, 0
          %v1105 = vsel %vm529, 1, 0
          %v1106 = vsel %vm530, 1, 0
          %v1107 = vsel %vm531, 1, 0
          %v1108 = vsel %vm532, 1, 0
          %v1109 = vsel %vm533, 1, 0
          %v1110 = vsel %vm534, 1, 0
          %v1111 = vsel %vm535, 1, 0
          %v1112 = vsel %vm536, 1, 0
          %v1113 = vsel %vm537, 1, 0
          %v1114 = vsel %vm538, 1, 0
          %v1115 = vsel %vm539, 1, 0
          %v1116 = vsel %vm540, 1, 0
          %v1117 = vsel %vm541, 1, 0
          %v1118 = vsel %vm542, 1, 0
          %v1119 = vsel %vm543, 1, 0
          %v1120 = vsel %vm544, 1, 0
          %v1121 = vsel %vm545, 1, 0
          %v1122 = vsel %vm546, 1, 0
          %v1123 = vsel %vm547, 1, 0
          %v1124 = vsel %vm548, 1, 0
          %v1125 = vsel %vm549, 1, 0
          %v1126 = vsel %vm550, 1, 0
          %v1127 = vsel %vm551, 1, 0
          %v1128 = vsel %vm552, 1, 0
          %v1129 = vsel %vm553, 1, 0
          %v1130 = vsel %vm554, 1, 0
          %v1131 = vsel %vm555, 1, 0
          %v1132 = vsel %vm556, 1, 0
          %v1133 = vsel %vm557, 1, 0
          %v1134 = vsel %vm558, 1, 0
          %v1135 = vsel %vm559, 1, 0
          %v1136 = vsel %vm560, 1, 0
          %v1137 = vsel %vm561, 1, 0
          %v1138 = vsel %vm562, 1, 0
          %v1139 = vsel %vm563, 1, 0
          %v1140 = vsel %vm564, 1, 0
          %v1141 = vsel %vm565, 1, 0
          %v1142 = vsel %vm566, 1, 0
          %v1143 = vsel %vm567, 1, 0
          %v1144 = vsel %vm568, 1, 0
          %v1145 = vsel %vm569, 1, 0
          %v1146 = vsel %vm570, 1, 0
          %v1147 = vsel %vm571, 1, 0
          %v1148 = vsel %vm572, 1, 0
          %v1149 = vsel %vm573, 1, 0
          %v1150 = vsel %vm574, 1, 0
          %v1151 = vsel %vm575, 1, 0
          %v1152 = vsel %vm576, 1, 0
          %v1153 = vsel %vm577, 1, 0
          %v1154 = vsel %vm578, 1, 0
          %v1155 = vsel %vm579, 1, 0
          %v1156 = vsel %vm580, 1, 0
          %v1157 = vsel %vm581, 1, 0
          %v1158 = vsel %vm582, 1, 0
          %v1159 = vsel %vm583, 1, 0
          %v1160 = vsel %vm584, 1, 0
          %v1161 = vsel %vm585, 1, 0
          %v1162 = vsel %vm586, 1, 0
          %v1163 = vsel %vm587, 1, 0
          %v1164 = vsel %vm588, 1, 0
          %v1165 = vsel %vm589, 1, 0
          %v1166 = vsel %vm590, 1, 0
          %v1167 = vsel %vm591, 1, 0
          %v1168 = vsel %vm592, 1, 0
          %v1169 = vsel %vm593, 1, 0
          %v1170 = vsel %vm594, 1, 0
          %v1171 = vsel %vm595, 1, 0
          %v1172 = vsel %vm596, 1, 0
          %v1173 = vsel %vm597, 1, 0
          %v1174 = vsel %vm598, 1, 0
          %v1175 = vsel %vm599, 1, 0
          %v1176 = vsel %vm600, 1, 0
          %v1177 = vsel %vm601, 1, 0
          %v1178 = vsel %vm602, 1, 0
          %v1179 = vsel %vm603, 1, 0
          %v1180 = vsel %vm604, 1, 0
          %v1181 = vsel %vm605, 1, 0
          %v1182 = vsel %vm606, 1, 0
          %v1183 = vsel %vm607, 1, 0
          %v1184 = vsel %vm608, 1, 0
          %v1185 = vsel %vm609, 1, 0
          %v1186 = vsel %vm610, 1, 0
          %v1187 = vsel %vm611, 1, 0
          %v1188 = vsel %vm612, 1, 0
          %v1189 = vsel %vm613, 1, 0
          %v1190 = vsel %vm614, 1, 0
          %v1191 = vsel %vm615, 1, 0
          %v1192 = vsel %vm616, 1, 0
          %v1193 = vsel %vm617, 1, 0
          %v1194 = vsel %vm618, 1, 0
          %v1195 = vsel %vm619, 1, 0
          %v1196 = vsel %vm620, 1, 0
          %v1197 = vsel %vm621, 1, 0
          %v1198 = vsel %vm622, 1, 0
          %v1199 = vsel %vm623, 1, 0
          %v1200 = vsel %vm624, 1, 0
          %v1201 = vsel %vm625, 1, 0
          %v1202 = vsel %vm626, 1, 0
          %v1203 = vsel %vm627, 1, 0
          %v1204 = vsel %vm628, 1, 0
          %v1205 = vsel %vm629, 1, 0
          %v1206 = vsel %vm630, 1, 0
          %v1207 = vsel %vm631, 1, 0
          %v1208 = vsel %vm632, 1, 0
          %v1209 = vsel %vm633, 1, 0
          %v1210 = vsel %vm634, 1, 0
          %v1211 = vsel %vm635, 1, 0
          %v1212 = vsel %vm636, 1, 0
          %v1213 = vsel %vm637, 1, 0
          %v1214 = vsel %vm638, 1, 0
          %v1215 = vsel %vm639, 1, 0
          %v1216 = vsel %vm640, 1, 0
          %v1217 = vsel %vm641, 1, 0
          %v1218 = vsel %vm642, 1, 0
          %v1219 = vsel %vm643, 1, 0
          %v1220 = vsel %vm644, 1, 0
          %v1221 = vsel %vm645, 1, 0
          %v1222 = vsel %vm646, 1, 0
          %v1223 = vsel %vm647, 1, 0
          %v1224 = vsel %vm648, 1, 0
          %v1225 = vsel %vm649, 1, 0
          %v1226 = vsel %vm650, 1, 0
          %v1227 = vsel %vm651, 1, 0
          %v1228 = vsel %vm652, 1, 0
          %v1229 = vsel %vm653, 1, 0
          %v1230 = vsel %vm654, 1, 0
          %v1231 = vsel %vm655, 1, 0
          %v1232 = vsel %vm656, 1, 0
          %v1233 = vsel %vm657, 1, 0
          %v1234 = vsel %vm658, 1, 0
          %v1235 = vsel %vm659, 1, 0
          %v1236 = vsel %vm660, 1, 0
          %v1237 = vsel %vm661, 1, 0
          %v1238 = vsel %vm662, 1, 0
          %v1239 = vsel %vm663, 1, 0
          %v1240 = vsel %vm664, 1, 0
          %v1241 = vsel %vm665, 1, 0
          %v1242 = vsel %vm666, 1, 0
          %v1243 = vsel %vm667, 1, 0
          %v1244 = vsel %vm668, 1, 0
          %v1245 = vsel %vm669, 1, 0
          %v1246 = vsel %vm670, 1, 0
          %v1247 = vsel %vm671, 1, 0
          %v1248 = vsel %vm672, 1, 0
          %v1249 = vsel %vm673, 1, 0
          %v1250 = vsel %vm674, 1, 0
          %v1251 = vsel %vm675, 1, 0
          %v1252 = vsel %vm676, 1, 0
          %v1253 = vsel %vm677, 1, 0
          %v1254 = vsel %vm678, 1, 0
          %v1255 = vsel %vm679, 1, 0
          %v1256 = vsel %vm680, 1, 0
          %v1257 = vsel %vm681, 1, 0
          %v1258 = vsel %vm682, 1, 0
          %v1259 = vsel %vm683, 1, 0
          %v1260 = vsel %vm684, 1, 0
          %v1261 = vsel %vm685, 1, 0
          %v1262 = vsel %vm686, 1, 0
          %v1263 = vsel %vm687, 1, 0
          %v1264 = vsel %vm688, 1, 0
          %v1265 = vsel %vm689, 1, 0
          %v1266 = vsel %vm690, 1, 0
          %v1267 = vsel %vm691, 1, 0
          %v1268 = vsel %vm692, 1, 0
          %v1269 = vsel %vm693, 1, 0
          %v1270 = vsel %vm694, 1, 0
          %v1271 = vsel %vm695, 1, 0
          %v1272 = vsel %vm696, 1, 0
          %v1273 = vsel %vm697, 1, 0
          %v1274 = vsel %vm698, 1, 0
          %v1275 = vsel %vm699, 1, 0
          %v1276 = vsel %vm700, 1, 0
          %v1277 = vsel %vm701, 1, 0
          %v1278 = vsel %vm702, 1, 0
          %v1279 = vsel %vm703, 1, 0
          %v1280 = vsel %vm704, 1, 0
          %v1281 = vsel %vm705, 1, 0
          %v1282 = vsel %vm706, 1, 0
          %v1283 = vsel %vm707, 1, 0
          %v1284 = vsel %vm708, 1, 0
          %v1285 = vsel %vm709, 1, 0
          %v1286 = vsel %vm710, 1, 0
          %v1287 = vsel %vm711, 1, 0
          %v1288 = vsel %vm712, 1, 0
          %v1289 = vsel %vm713, 1, 0
          %v1290 = vsel %vm714, 1, 0
          %v1291 = vsel %vm715, 1, 0
          %v1292 = vsel %vm716, 1, 0
          %v1293 = vsel %vm717, 1, 0
          %v1294 = vsel %vm718, 1, 0
          %v1295 = vsel %vm719, 1, 0
          %v1296 = vsel %vm720, 1, 0
          %v1297 = vsel %vm721, 1, 0
          %v1298 = vsel %vm722, 1, 0
          %v1299 = vsel %vm723, 1, 0
          %v1300 = vsel %vm724, 1, 0
          %v1301 = vsel %vm725, 1, 0
          %v1302 = vsel %vm726, 1, 0
          %v1303 = vsel %vm727, 1, 0
          %v1304 = vsel %vm728, 1, 0
          %v1305 = vsel %vm729, 1, 0
          %v1306 = vsel %vm730, 1, 0
          %v1307 = vsel %vm731, 1, 0
          %v1308 = vsel %vm732, 1, 0
          %v1309 = vsel %vm733, 1, 0
          %v1310 = vsel %vm734, 1, 0
          %v1311 = vsel %vm735, 1, 0
          %v1312 = vsel %vm736, 1, 0
          %v1313 = vsel %vm737, 1, 0
          %v1314 = vsel %vm738, 1, 0
          %v1315 = vsel %vm739, 1, 0
          %v1316 = vsel %vm740, 1, 0
          %v1317 = vsel %vm741, 1, 0
          %v1318 = vsel %vm742, 1, 0
          %v1319 = vsel %vm743, 1, 0
          %v1320 = vsel %vm744, 1, 0
          %v1321 = vsel %vm745, 1, 0
          %v1322 = vsel %vm746, 1, 0
          %v1323 = vsel %vm747, 1, 0
          %v1324 = vsel %vm748, 1, 0
          %v1325 = vsel %vm749, 1, 0
          %v1326 = vsel %vm750, 1, 0
          %v1327 = vsel %vm751, 1, 0
          %v1328 = vsel %vm752, 1, 0
          %v1329 = vsel %vm753, 1, 0
          %v1330 = vsel %vm754, 1, 0
          %v1331 = vsel %vm755, 1, 0
          %v1332 = vsel %vm756, 1, 0
          %v1333 = vsel %vm757, 1, 0
          %v1334 = vsel %vm758, 1, 0
          %v1335 = vsel %vm759, 1, 0
          %v1336 = vsel %vm760, 1, 0
          %v1337 = vsel %vm761, 1, 0
          %v1338 = vsel %vm762, 1, 0
          %v1339 = vsel %vm763, 1, 0
          %v1340 = vsel %vm764, 1, 0
          %v1341 = vsel %vm765, 1, 0
          %v1342 = vsel %vm766, 1, 0
          %v1343 = vsel %vm767, 1, 0
          %v1344 = vsel %vm768, 1, 0
          %v1345 = vsel %vm769, 1, 0
          %v1346 = vsel %vm770, 1, 0
          %v1347 = vsel %vm771, 1, 0
          %v1348 = vsel %vm772, 1, 0
          %v1349 = vsel %vm773, 1, 0
          %v1350 = vsel %vm774, 1, 0
          %v1351 = vsel %vm775, 1, 0
          %v1352 = vsel %vm776, 1, 0
          %v1353 = vsel %vm777, 1, 0
          %v1354 = vsel %vm778, 1, 0
          %v1355 = vsel %vm779, 1, 0
          %v1356 = vsel %vm780, 1, 0
          %v1357 = vsel %vm781, 1, 0
          %v1358 = vsel %vm782, 1, 0
          %v1359 = vsel %vm783, 1, 0
          %v1360 = vsel %vm784, 1, 0
          %v1361 = vsel %vm785, 1, 0
          %v1362 = vsel %vm786, 1, 0
          %v1363 = vsel %vm787, 1, 0
          %v1364 = vsel %vm788, 1, 0
          %v1365 = vsel %vm789, 1, 0
          %v1366 = vsel %vm790, 1, 0
          %v1367 = vsel %vm791, 1, 0
          %v1368 = vsel %vm792, 1, 0
          %v1369 = vsel %vm793, 1, 0
          %v1370 = vsel %vm794, 1, 0
          %v1371 = vsel %vm795, 1, 0
          %v1372 = vsel %vm796, 1, 0
          %v1373 = vsel %vm797, 1, 0
          %v1374 = vsel %vm798, 1, 0
          %v1375 = vsel %vm799, 1, 0
          %v1376 = vsel %vm800, 1, 0
          %v1377 = vsel %vm801, 1, 0
          %v1378 = vsel %vm802, 1, 0
          %v1379 = vsel %vm803, 1, 0
          %v1380 = vsel %vm804, 1, 0
          %v1381 = vsel %vm805, 1, 0
          %v1382 = vsel %vm806, 1, 0
          %v1383 = vsel %vm807, 1, 0
          %v1384 = vsel %vm808, 1, 0
          %v1385 = vsel %vm809, 1, 0
          %v1386 = vsel %vm810, 1, 0
          %v1387 = vsel %vm811, 1, 0
          %v1388 = vsel %vm812, 1, 0
          %v1389 = vsel %vm813, 1, 0
          %v1390 = vsel %vm814, 1, 0
          %v1391 = vsel %vm815, 1, 0
          %v1392 = vsel %vm816, 1, 0
          %v1393 = vsel %vm817, 1, 0
          %v1394 = vsel %vm818, 1, 0
          %v1395 = vsel %vm819, 1, 0
          %v1396 = vsel %vm820, 1, 0
          %v1397 = vsel %vm821, 1, 0
          %v1398 = vsel %vm822, 1, 0
          %v1399 = vsel %vm823, 1, 0
          %v1400 = vsel %vm824, 1, 0
          %v1401 = vsel %vm825, 1, 0
          %v1402 = vsel %vm826, 1, 0
          %v1403 = vsel %vm827, 1, 0
          %v1404 = vsel %vm828, 1, 0
          %v1405 = vsel %vm829, 1, 0
          %v1406 = vsel %vm830, 1, 0
          %v1407 = vsel %vm831, 1, 0
          %v1408 = vsel %vm832, 1, 0
          %v1409 = vsel %vm833, 1, 0
          %v1410 = vsel %vm834, 1, 0
          %v1411 = vsel %vm835, 1, 0
          %v1412 = vsel %vm836, 1, 0
          %v1413 = vsel %vm837, 1, 0
          %v1414 = vsel %vm838, 1, 0
          %v1415 = vsel %vm839, 1, 0
          %v1416 = vsel %vm840, 1, 0
          %v1417 = vsel %vm841, 1, 0
          %v1418 = vsel %vm842, 1, 0
          %v1419 = vsel %vm843, 1, 0
          %v1420 = vsel %vm844, 1, 0
          %v1421 = vsel %vm845, 1, 0
          %v1422 = vsel %vm846, 1, 0
          %v1423 = vsel %vm847, 1, 0
          %v1424 = vsel %vm848, 1, 0
          %v1425 = vsel %vm849, 1, 0
          %v1426 = vsel %vm850, 1, 0
          %v1427 = vsel %vm851, 1, 0
          %v1428 = vsel %vm852, 1, 0
          %v1429 = vsel %vm853, 1, 0
          %v1430 = vsel %vm854, 1, 0
          %v1431 = vsel %vm855, 1, 0
          %v1432 = vsel %vm856, 1, 0
          %v1433 = vsel %vm857, 1, 0
          %v1434 = vsel %vm858, 1, 0
          %v1435 = vsel %vm859, 1, 0
          %v1436 = vsel %vm860, 1, 0
          %v1437 = vsel %vm861, 1, 0
          %v1438 = vsel %vm862, 1, 0
          %v1439 = vsel %vm863, 1, 0
          %v1440 = vsel %vm864, 1, 0
          %v1441 = vsel %vm865, 1, 0
          %v1442 = vsel %vm866, 1, 0
          %v1443 = vsel %vm867, 1, 0
          %v1444 = vsel %vm868, 1, 0
          %v1445 = vsel %vm869, 1, 0
          %v1446 = vsel %vm870, 1, 0
          %v1447 = vsel %vm871, 1, 0
          %v1448 = vsel %vm872, 1, 0
          %v1449 = vsel %vm873, 1, 0
          %v1450 = vsel %vm874, 1, 0
          %v1451 = vsel %vm875, 1, 0
          %v1452 = vsel %vm876, 1, 0
          %v1453 = vsel %vm877, 1, 0
          %v1454 = vsel %vm878, 1, 0
          %v1455 = vsel %vm879, 1, 0
          %v1456 = vcvt.s32.f32 %v880
          %v1457 = vcvt.s32.f32 %v881
          %v1458 = vcvt.s32.f32 %v882
          %v1459 = vcvt.s32.f32 %v883
          %v1460 = vcvt.s32.f32 %v884
          %v1461 = vcvt.s32.f32 %v885
          %v1462 = vcvt.s32.f32 %v886
          %v1463 = vcvt.s32.f32 %v887
          %v1464 = vcvt.s32.f32 %v888
          %v1465 = vcvt.s32.f32 %v889
          %v1466 = vcvt.s32.f32 %v890
          %v1467 = vcvt.s32.f32 %v891
          %v1468 = vcvt.s32.f32 %v892
          %v1469 = vcvt.s32.f32 %v893
          %v1470 = vcvt.s32.f32 %v894
          %v1471 = vcvt.s32.f32 %v895
          %v1472 = vcvt.s32.f32 %v896
          %v1473 = vcvt.s32.f32 %v897
          %v1474 = vcvt.s32.f32 %v898
          %v1475 = vcvt.s32.f32 %v899
          %v1476 = vcvt.s32.f32 %v900
          %v1477 = vcvt.s32.f32 %v901
          %v1478 = vcvt.s32.f32 %v902
          %v1479 = vcvt.s32.f32 %v903
          %v1480 = vcvt.s32.f32 %v904
          %v1481 = vcvt.s32.f32 %v905
          %v1482 = vcvt.s32.f32 %v906
          %v1483 = vcvt.s32.f32 %v907
          %v1484 = vcvt.s32.f32 %v908
          %v1485 = vcvt.s32.f32 %v909
          %v1486 = vcvt.s32.f32 %v910
          %v1487 = vcvt.s32.f32 %v911
          %v1488 = vcvt.s32.f32 %v912
          %v1489 = vcvt.s32.f32 %v913
          %v1490 = vcvt.s32.f32 %v914
          %v1491 = vcvt.s32.f32 %v915
          %v1492 = vcvt.s32.f32 %v916
          %v1493 = vcvt.s32.f32 %v917
          %v1494 = vcvt.s32.f32 %v918
          %v1495 = vcvt.s32.f32 %v919
          %v1496 = vcvt.s32.f32 %v920
          %v1497 = vcvt.s32.f32 %v921
          %v1498 = vcvt.s32.f32 %v922
          %v1499 = vcvt.s32.f32 %v923
          %v1500 = vcvt.s32.f32 %v924
          %v1501 = vcvt.s32.f32 %v925
          %v1502 = vcvt.s32.f32 %v926
          %v1503 = vcvt.s32.f32 %v927
          %v1504 = vcvt.s32.f32 %v928
          %v1505 = vcvt.s32.f32 %v929
          %v1506 = vcvt.s32.f32 %v930
          %v1507 = vcvt.s32.f32 %v931
          %v1508 = vcvt.s32.f32 %v932
          %v1509 = vcvt.s32.f32 %v933
          %v1510 = vcvt.s32.f32 %v934
          %v1511 = vcvt.s32.f32 %v935
          %v1512 = vcvt.s32.f32 %v936
          %v1513 = vcvt.s32.f32 %v937
          %v1514 = vcvt.s32.f32 %v938
          %v1515 = vcvt.s32.f32 %v939
          %v1516 = vcvt.s32.f32 %v940
          %v1517 = vcvt.s32.f32 %v941
          %v1518 = vcvt.s32.f32 %v942
          %v1519 = vcvt.s32.f32 %v943
          %v1520 = vcvt.s32.f32 %v944
          %v1521 = vcvt.s32.f32 %v945
          %v1522 = vcvt.s32.f32 %v946
          %v1523 = vcvt.s32.f32 %v947
          %v1524 = vcvt.s32.f32 %v948
          %v1525 = vcvt.s32.f32 %v949
          %v1526 = vcvt.s32.f32 %v950
          %v1527 = vcvt.s32.f32 %v951
          %v1528 = vcvt.s32.f32 %v952
          %v1529 = vcvt.s32.f32 %v953
          %v1530 = vcvt.s32.f32 %v954
          %v1531 = vcvt.s32.f32 %v955
          %v1532 = vcvt.s32.f32 %v956
          %v1533 = vcvt.s32.f32 %v957
          %v1534 = vcvt.s32.f32 %v958
          %v1535 = vcvt.s32.f32 %v959
          %v1536 = vcvt.s32.f32 %v960
          %v1537 = vcvt.s32.f32 %v961
          %v1538 = vcvt.s32.f32 %v962
          %v1539 = vcvt.s32.f32 %v963
          %v1540 = vcvt.s32.f32 %v964
          %v1541 = vcvt.s32.f32 %v965
          %v1542 = vcvt.s32.f32 %v966
          %v1543 = vcvt.s32.f32 %v967
          %v1544 = vcvt.s32.f32 %v968
          %v1545 = vcvt.s32.f32 %v969
          %v1546 = vcvt.s32.f32 %v970
          %v1547 = vcvt.s32.f32 %v971
          %v1548 = vcvt.s32.f32 %v972
          %v1549 = vcvt.s32.f32 %v973
          %v1550 = vcvt.s32.f32 %v974
          %v1551 = vcvt.s32.f32 %v975
          %v1552 = vcvt.s32.f32 %v976
          %v1553 = vcvt.s32.f32 %v977
          %v1554 = vcvt.s32.f32 %v978
          %v1555 = vcvt.s32.f32 %v979
          %v1556 = vcvt.s32.f32 %v980
          %v1557 = vcvt.s32.f32 %v981
          %v1558 = vcvt.s32.f32 %v982
          %v1559 = vcvt.s32.f32 %v983
          %v1560 = vcvt.s32.f32 %v984
          %v1561 = vcvt.s32.f32 %v985
          %v1562 = vcvt.s32.f32 %v986
          %v1563 = vcvt.s32.f32 %v987
          %v1564 = vcvt.s32.f32 %v988
          %v1565 = vcvt.s32.f32 %v989
          %v1566 = vcvt.s32.f32 %v990
          %v1567 = vcvt.s32.f32 %v991
          %v1568 = vcvt.s32.f32 %v992
          %v1569 = vcvt.s32.f32 %v993
          %v1570 = vcvt.s32.f32 %v994
          %v1571 = vcvt.s32.f32 %v995
          %v1572 = vcvt.s32.f32 %v996
          %v1573 = vcvt.s32.f32 %v997
          %v1574 = vcvt.s32.f32 %v998
          %v1575 = vcvt.s32.f32 %v999
          %v1576 = vcvt.s32.f32 %v1000
          %v1577 = vcvt.s32.f32 %v1001
          %v1578 = vcvt.s32.f32 %v1002
          %v1579 = vcvt.s32.f32 %v1003
          %v1580 = vcvt.s32.f32 %v1004
          %v1581 = vcvt.s32.f32 %v1005
          %v1582 = vcvt.s32.f32 %v1006
          %v1583 = vcvt.s32.f32 %v1007
          %v1584 = vcvt.s32.f32 %v1008
          %v1585 = vcvt.s32.f32 %v1009
          %v1586 = vcvt.s32.f32 %v1010
          %v1587 = vcvt.s32.f32 %v1011
          %v1588 = vcvt.s32.f32 %v1012
          %v1589 = vcvt.s32.f32 %v1013
          %v1590 = vcvt.s32.f32 %v1014
          %v1591 = vcvt.s32.f32 %v1015
          %v1592 = vcvt.s32.f32 %v1016
          %v1593 = vcvt.s32.f32 %v1017
          %v1594 = vcvt.s32.f32 %v1018
          %v1595 = vcvt.s32.f32 %v1019
          %v1596 = vcvt.s32.f32 %v1020
          %v1597 = vcvt.s32.f32 %v1021
          %v1598 = vcvt.s32.f32 %v1022
          %v1599 = vcvt.s32.f32 %v1023
          %v1600 = vcvt.s32.f32 %v1024
          %v1601 = vcvt.s32.f32 %v1025
          %v1602 = vcvt.s32.f32 %v1026
          %v1603 = vcvt.s32.f32 %v1027
          %v1604 = vcvt.s32.f32 %v1028
          %v1605 = vcvt.s32.f32 %v1029
          %v1606 = vcvt.s32.f32 %v1030
          %v1607 = vcvt.s32.f32 %v1031
          %v1608 = vcvt.s32.f32 %v1032
          %v1609 = vcvt.s32.f32 %v1033
          %v1610 = vcvt.s32.f32 %v1034
          %v1611 = vcvt.s32.f32 %v1035
          %v1612 = vcvt.s32.f32 %v1036
          %v1613 = vcvt.s32.f32 %v1037
          %v1614 = vcvt.s32.f32 %v1038
          %v1615 = vcvt.s32.f32 %v1039
          %v1616 = vcvt.s32.f32 %v1040
          %v1617 = vcvt.s32.f32 %v1041
          %v1618 = vcvt.s32.f32 %v1042
          %v1619 = vcvt.s32.f32 %v1043
          %v1620 = vcvt.s32.f32 %v1044
          %v1621 = vcvt.s32.f32 %v1045
          %v1622 = vcvt.s32.f32 %v1046
          %v1623 = vcvt.s32.f32 %v1047
          %v1624 = vcvt.s32.f32 %v1048
          %v1625 = vcvt.s32.f32 %v1049
          %v1626 = vcvt.s32.f32 %v1050
          %v1627 = vcvt.s32.f32 %v1051
          %v1628 = vcvt.s32.f32 %v1052
          %v1629 = vcvt.s32.f32 %v1053
          %v1630 = vcvt.s32.f32 %v1054
          %v1631 = vcvt.s32.f32 %v1055
          %v1632 = vcvt.s32.f32 %v1056
          %v1633 = vcvt.s32.f32 %v1057
          %v1634 = vcvt.s32.f32 %v1058
          %v1635 = vcvt.s32.f32 %v1059
          %v1636 = vcvt.s32.f32 %v1060
          %v1637 = vcvt.s32.f32 %v1061
          %v1638 = vcvt.s32.f32 %v1062
          %v1639 = vcvt.s32.f32 %v1063
          %v1640 = vcvt.s32.f32 %v1064
          %v1641 = vcvt.s32.f32 %v1065
          %v1642 = vcvt.s32.f32 %v1066
          %v1643 = vcvt.s32.f32 %v1067
          %v1644 = vcvt.s32.f32 %v1068
          %v1645 = vcvt.s32.f32 %v1069
          %v1646 = vcvt.s32.f32 %v1070
          %v1647 = vcvt.s32.f32 %v1071
          %v1648 = vcvt.s32.f32 %v1072
          %v1649 = vcvt.s32.f32 %v1073
          %v1650 = vcvt.s32.f32 %v1074
          %v1651 = vcvt.s32.f32 %v1075
          %v1652 = vcvt.s32.f32 %v1076
          %v1653 = vcvt.s32.f32 %v1077
          %v1654 = vcvt.s32.f32 %v1078
          %v1655 = vcvt.s32.f32 %v1079
          %v1656 = vcvt.s32.f32 %v1080
          %v1657 = vcvt.s32.f32 %v1081
          %v1658 = vcvt.s32.f32 %v1082
          %v1659 = vcvt.s32.f32 %v1083
          %v1660 = vcvt.s32.f32 %v1084
          %v1661 = vcvt.s32.f32 %v1085
          %v1662 = vcvt.s32.f32 %v1086
          %v1663 = vcvt.s32.f32 %v1087
          %v1664 = vcvt.s32.f32 %v1088
          %v1665 = vcvt.s32.f32 %v1089
          %v1666 = vcvt.s32.f32 %v1090
          %v1667 = vcvt.s32.f32 %v1091
          %v1668 = vcvt.s32.f32 %v1092
          %v1669 = vcvt.s32.f32 %v1093
          %v1670 = vcvt.s32.f32 %v1094
          %v1671 = vcvt.s32.f32 %v1095
          %v1672 = vcvt.s32.f32 %v1096
          %v1673 = vcvt.s32.f32 %v1097
          %v1674 = vcvt.s32.f32 %v1098
          %v1675 = vcvt.s32.f32 %v1099
          %v1676 = vcvt.s32.f32 %v1100
          %v1677 = vcvt.s32.f32 %v1101
          %v1678 = vcvt.s32.f32 %v1102
          %v1679 = vcvt.s32.f32 %v1103
          %v1680 = vcvt.s32.f32 %v1104
          %v1681 = vcvt.s32.f32 %v1105
          %v1682 = vcvt.s32.f32 %v1106
          %v1683 = vcvt.s32.f32 %v1107
          %v1684 = vcvt.s32.f32 %v1108
          %v1685 = vcvt.s32.f32 %v1109
          %v1686 = vcvt.s32.f32 %v1110
          %v1687 = vcvt.s32.f32 %v1111
          %v1688 = vcvt.s32.f32 %v1112
          %v1689 = vcvt.s32.f32 %v1113
          %v1690 = vcvt.s32.f32 %v1114
          %v1691 = vcvt.s32.f32 %v1115
          %v1692 = vcvt.s32.f32 %v1116
          %v1693 = vcvt.s32.f32 %v1117
          %v1694 = vcvt.s32.f32 %v1118
          %v1695 = vcvt.s32.f32 %v1119
          %v1696 = vcvt.s32.f32 %v1120
          %v1697 = vcvt.s32.f32 %v1121
          %v1698 = vcvt.s32.f32 %v1122
          %v1699 = vcvt.s32.f32 %v1123
          %v1700 = vcvt.s32.f32 %v1124
          %v1701 = vcvt.s32.f32 %v1125
          %v1702 = vcvt.s32.f32 %v1126
          %v1703 = vcvt.s32.f32 %v1127
          %v1704 = vcvt.s32.f32 %v1128
          %v1705 = vcvt.s32.f32 %v1129
          %v1706 = vcvt.s32.f32 %v1130
          %v1707 = vcvt.s32.f32 %v1131
          %v1708 = vcvt.s32.f32 %v1132
          %v1709 = vcvt.s32.f32 %v1133
          %v1710 = vcvt.s32.f32 %v1134
          %v1711 = vcvt.s32.f32 %v1135
          %v1712 = vcvt.s32.f32 %v1136
          %v1713 = vcvt.s32.f32 %v1137
          %v1714 = vcvt.s32.f32 %v1138
          %v1715 = vcvt.s32.f32 %v1139
          %v1716 = vcvt.s32.f32 %v1140
          %v1717 = vcvt.s32.f32 %v1141
          %v1718 = vcvt.s32.f32 %v1142
          %v1719 = vcvt.s32.f32 %v1143
          %v1720 = vcvt.s32.f32 %v1144
          %v1721 = vcvt.s32.f32 %v1145
          %v1722 = vcvt.s32.f32 %v1146
          %v1723 = vcvt.s32.f32 %v1147
          %v1724 = vcvt.s32.f32 %v1148
          %v1725 = vcvt.s32.f32 %v1149
          %v1726 = vcvt.s32.f32 %v1150
          %v1727 = vcvt.s32.f32 %v1151
          %v1728 = vcvt.s32.f32 %v1152
          %v1729 = vcvt.s32.f32 %v1153
          %v1730 = vcvt.s32.f32 %v1154
          %v1731 = vcvt.s32.f32 %v1155
          %v1732 = vcvt.s32.f32 %v1156
          %v1733 = vcvt.s32.f32 %v1157
          %v1734 = vcvt.s32.f32 %v1158
          %v1735 = vcvt.s32.f32 %v1159
          %v1736 = vcvt.s32.f32 %v1160
          %v1737 = vcvt.s32.f32 %v1161
          %v1738 = vcvt.s32.f32 %v1162
          %v1739 = vcvt.s32.f32 %v1163
          %v1740 = vcvt.s32.f32 %v1164
          %v1741 = vcvt.s32.f32 %v1165
          %v1742 = vcvt.s32.f32 %v1166
          %v1743 = vcvt.s32.f32 %v1167
          %v1744 = vcvt.s32.f32 %v1168
          %v1745 = vcvt.s32.f32 %v1169
          %v1746 = vcvt.s32.f32 %v1170
          %v1747 = vcvt.s32.f32 %v1171
          %v1748 = vcvt.s32.f32 %v1172
          %v1749 = vcvt.s32.f32 %v1173
          %v1750 = vcvt.s32.f32 %v1174
          %v1751 = vcvt.s32.f32 %v1175
          %v1752 = vcvt.s32.f32 %v1176
          %v1753 = vcvt.s32.f32 %v1177
          %v1754 = vcvt.s32.f32 %v1178
          %v1755 = vcvt.s32.f32 %v1179
          %v1756 = vcvt.s32.f32 %v1180
          %v1757 = vcvt.s32.f32 %v1181
          %v1758 = vcvt.s32.f32 %v1182
          %v1759 = vcvt.s32.f32 %v1183
          %v1760 = vcvt.s32.f32 %v1184
          %v1761 = vcvt.s32.f32 %v1185
          %v1762 = vcvt.s32.f32 %v1186
          %v1763 = vcvt.s32.f32 %v1187
          %v1764 = vcvt.s32.f32 %v1188
          %v1765 = vcvt.s32.f32 %v1189
          %v1766 = vcvt.s32.f32 %v1190
          %v1767 = vcvt.s32.f32 %v1191
          %v1768 = vcvt.s32.f32 %v1192
          %v1769 = vcvt.s32.f32 %v1193
          %v1770 = vcvt.s32.f32 %v1194
          %v1771 = vcvt.s32.f32 %v1195
          %v1772 = vcvt.s32.f32 %v1196
          %v1773 = vcvt.s32.f32 %v1197
          %v1774 = vcvt.s32.f32 %v1198
          %v1775 = vcvt.s32.f32 %v1199
          %v1776 = vcvt.s32.f32 %v1200
          %v1777 = vcvt.s32.f32 %v1201
          %v1778 = vcvt.s32.f32 %v1202
          %v1779 = vcvt.s32.f32 %v1203
          %v1780 = vcvt.s32.f32 %v1204
          %v1781 = vcvt.s32.f32 %v1205
          %v1782 = vcvt.s32.f32 %v1206
          %v1783 = vcvt.s32.f32 %v1207
          %v1784 = vcvt.s32.f32 %v1208
          %v1785 = vcvt.s32.f32 %v1209
          %v1786 = vcvt.s32.f32 %v1210
          %v1787 = vcvt.s32.f32 %v1211
          %v1788 = vcvt.s32.f32 %v1212
          %v1789 = vcvt.s32.f32 %v1213
          %v1790 = vcvt.s32.f32 %v1214
          %v1791 = vcvt.s32.f32 %v1215
          %v1792 = vcvt.s32.f32 %v1216
          %v1793 = vcvt.s32.f32 %v1217
          %v1794 = vcvt.s32.f32 %v1218
          %v1795 = vcvt.s32.f32 %v1219
          %v1796 = vcvt.s32.f32 %v1220
          %v1797 = vcvt.s32.f32 %v1221
          %v1798 = vcvt.s32.f32 %v1222
          %v1799 = vcvt.s32.f32 %v1223
          %v1800 = vcvt.s32.f32 %v1224
          %v1801 = vcvt.s32.f32 %v1225
          %v1802 = vcvt.s32.f32 %v1226
          %v1803 = vcvt.s32.f32 %v1227
          %v1804 = vcvt.s32.f32 %v1228
          %v1805 = vcvt.s32.f32 %v1229
          %v1806 = vcvt.s32.f32 %v1230
          %v1807 = vcvt.s32.f32 %v1231
          %v1808 = vcvt.s32.f32 %v1232
          %v1809 = vcvt.s32.f32 %v1233
          %v1810 = vcvt.s32.f32 %v1234
          %v1811 = vcvt.s32.f32 %v1235
          %v1812 = vcvt.s32.f32 %v1236
          %v1813 = vcvt.s32.f32 %v1237
          %v1814 = vcvt.s32.f32 %v1238
          %v1815 = vcvt.s32.f32 %v1239
          %v1816 = vcvt.s32.f32 %v1240
          %v1817 = vcvt.s32.f32 %v1241
          %v1818 = vcvt.s32.f32 %v1242
          %v1819 = vcvt.s32.f32 %v1243
          %v1820 = vcvt.s32.f32 %v1244
          %v1821 = vcvt.s32.f32 %v1245
          %v1822 = vcvt.s32.f32 %v1246
          %v1823 = vcvt.s32.f32 %v1247
          %v1824 = vcvt.s32.f32 %v1248
          %v1825 = vcvt.s32.f32 %v1249
          %v1826 = vcvt.s32.f32 %v1250
          %v1827 = vcvt.s32.f32 %v1251
          %v1828 = vcvt.s32.f32 %v1252
          %v1829 = vcvt.s32.f32 %v1253
          %v1830 = vcvt.s32.f32 %v1254
          %v1831 = vcvt.s32.f32 %v1255
          %v1832 = vcvt.s32.f32 %v1256
          %v1833 = vcvt.s32.f32 %v1257
          %v1834 = vcvt.s32.f32 %v1258
          %v1835 = vcvt.s32.f32 %v1259
          %v1836 = vcvt.s32.f32 %v1260
          %v1837 = vcvt.s32.f32 %v1261
          %v1838 = vcvt.s32.f32 %v1262
          %v1839 = vcvt.s32.f32 %v1263
          %v1840 = vcvt.s32.f32 %v1264
          %v1841 = vcvt.s32.f32 %v1265
          %v1842 = vcvt.s32.f32 %v1266
          %v1843 = vcvt.s32.f32 %v1267
          %v1844 = vcvt.s32.f32 %v1268
          %v1845 = vcvt.s32.f32 %v1269
          %v1846 = vcvt.s32.f32 %v1270
          %v1847 = vcvt.s32.f32 %v1271
          %v1848 = vcvt.s32.f32 %v1272
          %v1849 = vcvt.s32.f32 %v1273
          %v1850 = vcvt.s32.f32 %v1274
          %v1851 = vcvt.s32.f32 %v1275
          %v1852 = vcvt.s32.f32 %v1276
          %v1853 = vcvt.s32.f32 %v1277
          %v1854 = vcvt.s32.f32 %v1278
          %v1855 = vcvt.s32.f32 %v1279
          %v1856 = vcvt.s32.f32 %v1280
          %v1857 = vcvt.s32.f32 %v1281
          %v1858 = vcvt.s32.f32 %v1282
          %v1859 = vcvt.s32.f32 %v1283
          %v1860 = vcvt.s32.f32 %v1284
          %v1861 = vcvt.s32.f32 %v1285
          %v1862 = vcvt.s32.f32 %v1286
          %v1863 = vcvt.s32.f32 %v1287
          %v1864 = vcvt.s32.f32 %v1288
          %v1865 = vcvt.s32.f32 %v1289
          %v1866 = vcvt.s32.f32 %v1290
          %v1867 = vcvt.s32.f32 %v1291
          %v1868 = vcvt.s32.f32 %v1292
          %v1869 = vcvt.s32.f32 %v1293
          %v1870 = vcvt.s32.f32 %v1294
          %v1871 = vcvt.s32.f32 %v1295
          %v1872 = vcvt.s32.f32 %v1296
          %v1873 = vcvt.s32.f32 %v1297
          %v1874 = vcvt.s32.f32 %v1298
          %v1875 = vcvt.s32.f32 %v1299
          %v1876 = vcvt.s32.f32 %v1300
          %v1877 = vcvt.s32.f32 %v1301
          %v1878 = vcvt.s32.f32 %v1302
          %v1879 = vcvt.s32.f32 %v1303
          %v1880 = vcvt.s32.f32 %v1304
          %v1881 = vcvt.s32.f32 %v1305
          %v1882 = vcvt.s32.f32 %v1306
          %v1883 = vcvt.s32.f32 %v1307
          %v1884 = vcvt.s32.f32 %v1308
          %v1885 = vcvt.s32.f32 %v1309
          %v1886 = vcvt.s32.f32 %v1310
          %v1887 = vcvt.s32.f32 %v1311
          %v1888 = vcvt.s32.f32 %v1312
          %v1889 = vcvt.s32.f32 %v1313
          %v1890 = vcvt.s32.f32 %v1314
          %v1891 = vcvt.s32.f32 %v1315
          %v1892 = vcvt.s32.f32 %v1316
          %v1893 = vcvt.s32.f32 %v1317
          %v1894 = vcvt.s32.f32 %v1318
          %v1895 = vcvt.s32.f32 %v1319
          %v1896 = vcvt.s32.f32 %v1320
          %v1897 = vcvt.s32.f32 %v1321
          %v1898 = vcvt.s32.f32 %v1322
          %v1899 = vcvt.s32.f32 %v1323
          %v1900 = vcvt.s32.f32 %v1324
          %v1901 = vcvt.s32.f32 %v1325
          %v1902 = vcvt.s32.f32 %v1326
          %v1903 = vcvt.s32.f32 %v1327
          %v1904 = vcvt.s32.f32 %v1328
          %v1905 = vcvt.s32.f32 %v1329
          %v1906 = vcvt.s32.f32 %v1330
          %v1907 = vcvt.s32.f32 %v1331
          %v1908 = vcvt.s32.f32 %v1332
          %v1909 = vcvt.s32.f32 %v1333
          %v1910 = vcvt.s32.f32 %v1334
          %v1911 = vcvt.s32.f32 %v1335
          %v1912 = vcvt.s32.f32 %v1336
          %v1913 = vcvt.s32.f32 %v1337
          %v1914 = vcvt.s32.f32 %v1338
          %v1915 = vcvt.s32.f32 %v1339
          %v1916 = vcvt.s32.f32 %v1340
          %v1917 = vcvt.s32.f32 %v1341
          %v1918 = vcvt.s32.f32 %v1342
          %v1919 = vcvt.s32.f32 %v1343
          %v1920 = vcvt.s32.f32 %v1344
          %v1921 = vcvt.s32.f32 %v1345
          %v1922 = vcvt.s32.f32 %v1346
          %v1923 = vcvt.s32.f32 %v1347
          %v1924 = vcvt.s32.f32 %v1348
          %v1925 = vcvt.s32.f32 %v1349
          %v1926 = vcvt.s32.f32 %v1350
          %v1927 = vcvt.s32.f32 %v1351
          %v1928 = vcvt.s32.f32 %v1352
          %v1929 = vcvt.s32.f32 %v1353
          %v1930 = vcvt.s32.f32 %v1354
          %v1931 = vcvt.s32.f32 %v1355
          %v1932 = vcvt.s32.f32 %v1356
          %v1933 = vcvt.s32.f32 %v1357
          %v1934 = vcvt.s32.f32 %v1358
          %v1935 = vcvt.s32.f32 %v1359
          %v1936 = vcvt.s32.f32 %v1360
          %v1937 = vcvt.s32.f32 %v1361
          %v1938 = vcvt.s32.f32 %v1362
          %v1939 = vcvt.s32.f32 %v1363
          %v1940 = vcvt.s32.f32 %v1364
          %v1941 = vcvt.s32.f32 %v1365
          %v1942 = vcvt.s32.f32 %v1366
          %v1943 = vcvt.s32.f32 %v1367
          %v1944 = vcvt.s32.f32 %v1368
          %v1945 = vcvt.s32.f32 %v1369
          %v1946 = vcvt.s32.f32 %v1370
          %v1947 = vcvt.s32.f32 %v1371
          %v1948 = vcvt.s32.f32 %v1372
          %v1949 = vcvt.s32.f32 %v1373
          %v1950 = vcvt.s32.f32 %v1374
          %v1951 = vcvt.s32.f32 %v1375
          %v1952 = vcvt.s32.f32 %v1376
          %v1953 = vcvt.s32.f32 %v1377
          %v1954 = vcvt.s32.f32 %v1378
          %v1955 = vcvt.s32.f32 %v1379
          %v1956 = vcvt.s32.f32 %v1380
          %v1957 = vcvt.s32.f32 %v1381
          %v1958 = vcvt.s32.f32 %v1382
          %v1959 = vcvt.s32.f32 %v1383
          %v1960 = vcvt.s32.f32 %v1384
          %v1961 = vcvt.s32.f32 %v1385
          %v1962 = vcvt.s32.f32 %v1386
          %v1963 = vcvt.s32.f32 %v1387
          %v1964 = vcvt.s32.f32 %v1388
          %v1965 = vcvt.s32.f32 %v1389
          %v1966 = vcvt.s32.f32 %v1390
          %v1967 = vcvt.s32.f32 %v1391
          %v1968 = vcvt.s32.f32 %v1392
          %v1969 = vcvt.s32.f32 %v1393
          %v1970 = vcvt.s32.f32 %v1394
          %v1971 = vcvt.s32.f32 %v1395
          %v1972 = vcvt.s32.f32 %v1396
          %v1973 = vcvt.s32.f32 %v1397
          %v1974 = vcvt.s32.f32 %v1398
          %v1975 = vcvt.s32.f32 %v1399
          %v1976 = vcvt.s32.f32 %v1400
          %v1977 = vcvt.s32.f32 %v1401
          %v1978 = vcvt.s32.f32 %v1402
          %v1979 = vcvt.s32.f32 %v1403
          %v1980 = vcvt.s32.f32 %v1404
          %v1981 = vcvt.s32.f32 %v1405
          %v1982 = vcvt.s32.f32 %v1406
          %v1983 = vcvt.s32.f32 %v1407
          %v1984 = vcvt.s32.f32 %v1408
          %v1985 = vcvt.s32.f32 %v1409
          %v1986 = vcvt.s32.f32 %v1410
          %v1987 = vcvt.s32.f32 %v1411
          %v1988 = vcvt.s32.f32 %v1412
          %v1989 = vcvt.s32.f32 %v1413
          %v1990 = vcvt.s32.f32 %v1414
          %v1991 = vcvt.s32.f32 %v1415
          %v1992 = vcvt.s32.f32 %v1416
          %v1993 = vcvt.s32.f32 %v1417
          %v1994 = vcvt.s32.f32 %v1418
          %v1995 = vcvt.s32.f32 %v1419
          %v1996 = vcvt.s32.f32 %v1420
          %v1997 = vcvt.s32.f32 %v1421
          %v1998 = vcvt.s32.f32 %v1422
          %v1999 = vcvt.s32.f32 %v1423
          %v2000 = vcvt.s32.f32 %v1424
          %v2001 = vcvt.s32.f32 %v1425
          %v2002 = vcvt.s32.f32 %v1426
          %v2003 = vcvt.s32.f32 %v1427
          %v2004 = vcvt.s32.f32 %v1428
          %v2005 = vcvt.s32.f32 %v1429
          %v2006 = vcvt.s32.f32 %v1430
          %v2007 = vcvt.s32.f32 %v1431
          %v2008 = vcvt.s32.f32 %v1432
          %v2009 = vcvt.s32.f32 %v1433
          %v2010 = vcvt.s32.f32 %v1434
          %v2011 = vcvt.s32.f32 %v1435
          %v2012 = vcvt.s32.f32 %v1436
          %v2013 = vcvt.s32.f32 %v1437
          %v2014 = vcvt.s32.f32 %v1438
          %v2015 = vcvt.s32.f32 %v1439
          %v2016 = vcvt.s32.f32 %v1440
          %v2017 = vcvt.s32.f32 %v1441
          %v2018 = vcvt.s32.f32 %v1442
          %v2019 = vcvt.s32.f32 %v1443
          %v2020 = vcvt.s32.f32 %v1444
          %v2021 = vcvt.s32.f32 %v1445
          %v2022 = vcvt.s32.f32 %v1446
          %v2023 = vcvt.s32.f32 %v1447
          %v2024 = vcvt.s32.f32 %v1448
          %v2025 = vcvt.s32.f32 %v1449
          %v2026 = vcvt.s32.f32 %v1450
          %v2027 = vcvt.s32.f32 %v1451
          %v2028 = vcvt.s32.f32 %v1452
          %v2029 = vcvt.s32.f32 %v1453
          %v2030 = vcvt.s32.f32 %v1454
          %v2031 = vcvt.s32.f32 %v1455
          %2032 = vst [vmem:[#allocation2] sm:$0xff] %v1456
          %2033 = vst [vmem:[#allocation2 + $0x8] sm:$0xff] %v1457
          %2034 = vst [vmem:[#allocation2 + $0x10] sm:$0xff] %v1458
          %2035 = vst [vmem:[#allocation2 + $0x18] sm:$0xff] %v1459
          %2036 = vst [vmem:[#allocation2 + $0x20] sm:$0xff] %v1460
          %2037 = vst [vmem:[#allocation2 + $0x28] sm:$0xff] %v1461
          %2038 = vst [vmem:[#allocation2 + $0x30] sm:$0xff] %v1462
          %2039 = vst [vmem:[#allocation2 + $0x38] sm:$0xff] %v1463
          %2040 = vst [vmem:[#allocation2 + $0x40] sm:$0xff] %v1464
          %2041 = vst [vmem:[#allocation2 + $0x48] sm:$0xff] %v1465
          %2042 = vst [vmem:[#allocation2 + $0x50] sm:$0xff] %v1466
          %2043 = vst [vmem:[#allocation2 + $0x58] sm:$0xff] %v1467
          %2044 = vst [vmem:[#allocation2 + $0x60] sm:$0xff] %v1468
          %2045 = vst [vmem:[#allocation2 + $0x68] sm:$0xff] %v1469
          %2046 = vst [vmem:[#allocation2 + $0x70] sm:$0xff] %v1470
          %2047 = vst [vmem:[#allocation2 + $0x78] sm:$0xff] %v1471
          %2048 = vst [vmem:[#allocation2 + $0x80] sm:$0xff] %v1472
          %2049 = vst [vmem:[#allocation2 + $0x88] sm:$0xff] %v1473
          %2050 = vst [vmem:[#allocation2 + $0x90] sm:$0xff] %v1474
          %2051 = vst [vmem:[#allocation2 + $0x98] sm:$0xff] %v1475
          %2052 = vst [vmem:[#allocation2 + $0xa0] sm:$0xff] %v1476
          %2053 = vst [vmem:[#allocation2 + $0xa8] sm:$0xff] %v1477
          %2054 = vst [vmem:[#allocation2 + $0xb0] sm:$0xff] %v1478
          %2055 = vst [vmem:[#allocation2 + $0xb8] sm:$0xff] %v1479
          %2056 = vst [vmem:[#allocation2 + $0xc0] sm:$0xff] %v1480
          %2057 = vst [vmem:[#allocation2 + $0xc8] sm:$0xff] %v1481
          %2058 = vst [vmem:[#allocation2 + $0xd0] sm:$0xff] %v1482
          %2059 = vst [vmem:[#allocation2 + $0xd8] sm:$0xff] %v1483
          %2060 = vst [vmem:[#allocation2 + $0xe0] sm:$0xff] %v1484
          %2061 = vst [vmem:[#allocation2 + $0xe8] sm:$0xff] %v1485
          %2062 = vst [vmem:[#allocation2 + $0xf0] sm:$0xff] %v1486
          %2063 = vst [vmem:[#allocation2 + $0xf8] sm:$0xff] %v1487
          %2064 = vst [vmem:[#allocation2 + $0x100] sm:$0xff] %v1488
          %2065 = vst [vmem:[#allocation2 + $0x108] sm:$0xff] %v1489
          %2066 = vst [vmem:[#allocation2 + $0x110] sm:$0xff] %v1490
          %2067 = vst [vmem:[#allocation2 + $0x118] sm:$0xff] %v1491
          %2068 = vst [vmem:[#allocation2 + $0x120] sm:$0xff] %v1492
          %2069 = vst [vmem:[#allocation2 + $0x128] sm:$0xff] %v1493
          %2070 = vst [vmem:[#allocation2 + $0x130] sm:$0xff] %v1494
          %2071 = vst [vmem:[#allocation2 + $0x138] sm:$0xff] %v1495
          %2072 = vst [vmem:[#allocation2 + $0x140] sm:$0xff] %v1496
          %2073 = vst [vmem:[#allocation2 + $0x148] sm:$0xff] %v1497
          %2074 = vst [vmem:[#allocation2 + $0x150] sm:$0xff] %v1498
          %2075 = vst [vmem:[#allocation2 + $0x158] sm:$0xff] %v1499
          %2076 = vst [vmem:[#allocation2 + $0x160] sm:$0xff] %v1500
          %2077 = vst [vmem:[#allocation2 + $0x168] sm:$0xff] %v1501
          %2078 = vst [vmem:[#allocation2 + $0x170] sm:$0xff] %v1502
          %2079 = vst [vmem:[#allocation2 + $0x178] sm:$0xff] %v1503
          %2080 = vst [vmem:[#allocation2 + $0x180] sm:$0xff] %v1504
          %2081 = vst [vmem:[#allocation2 + $0x188] sm:$0xff] %v1505
          %2082 = vst [vmem:[#allocation2 + $0x190] sm:$0xff] %v1506
          %2083 = vst [vmem:[#allocation2 + $0x198] sm:$0xff] %v1507
          %2084 = vst [vmem:[#allocation2 + $0x1a0] sm:$0xff] %v1508
          %2085 = vst [vmem:[#allocation2 + $0x1a8] sm:$0xff] %v1509
          %2086 = vst [vmem:[#allocation2 + $0x1b0] sm:$0xff] %v1510
          %2087 = vst [vmem:[#allocation2 + $0x1b8] sm:$0xff] %v1511
          %2088 = vst [vmem:[#allocation2 + $0x1c0] sm:$0xff] %v1512
          %2089 = vst [vmem:[#allocation2 + $0x1c8] sm:$0xff] %v1513
          %2090 = vst [vmem:[#allocation2 + $0x1d0] sm:$0xff] %v1514
          %2091 = vst [vmem:[#allocation2 + $0x1d8] sm:$0xff] %v1515
          %2092 = vst [vmem:[#allocation2 + $0x1e0] sm:$0xff] %v1516
          %2093 = vst [vmem:[#allocation2 + $0x1e8] sm:$0xff] %v1517
          %2094 = vst [vmem:[#allocation2 + $0x1f0] sm:$0xff] %v1518
          %2095 = vst [vmem:[#allocation2 + $0x1f8] sm:$0xff] %v1519
          %2096 = vst [vmem:[#allocation2 + $0x200] sm:$0xff] %v1520
          %2097 = vst [vmem:[#allocation2 + $0x208] sm:$0xff] %v1521
          %2098 = vst [vmem:[#allocation2 + $0x210] sm:$0xff] %v1522
          %2099 = vst [vmem:[#allocation2 + $0x218] sm:$0xff] %v1523
          %2100 = vst [vmem:[#allocation2 + $0x220] sm:$0xff] %v1524
          %2101 = vst [vmem:[#allocation2 + $0x228] sm:$0xff] %v1525
          %2102 = vst [vmem:[#allocation2 + $0x230] sm:$0xff] %v1526
          %2103 = vst [vmem:[#allocation2 + $0x238] sm:$0xff] %v1527
          %2104 = vst [vmem:[#allocation2 + $0x240] sm:$0xff] %v1528
          %2105 = vst [vmem:[#allocation2 + $0x248] sm:$0xff] %v1529
          %2106 = vst [vmem:[#allocation2 + $0x250] sm:$0xff] %v1530
          %2107 = vst [vmem:[#allocation2 + $0x258] sm:$0xff] %v1531
          %2108 = vst [vmem:[#allocation2 + $0x260] sm:$0xff] %v1532
          %2109 = vst [vmem:[#allocation2 + $0x268] sm:$0xff] %v1533
          %2110 = vst [vmem:[#allocation2 + $0x270] sm:$0xff] %v1534
          %2111 = vst [vmem:[#allocation2 + $0x278] sm:$0xff] %v1535
          %2112 = vst [vmem:[#allocation2 + $0x280] sm:$0xff] %v1536
          %2113 = vst [vmem:[#allocation2 + $0x288] sm:$0xff] %v1537
          %2114 = vst [vmem:[#allocation2 + $0x290] sm:$0xff] %v1538
          %2115 = vst [vmem:[#allocation2 + $0x298] sm:$0xff] %v1539
          %2116 = vst [vmem:[#allocation2 + $0x2a0] sm:$0xff] %v1540
          %2117 = vst [vmem:[#allocation2 + $0x2a8] sm:$0xff] %v1541
          %2118 = vst [vmem:[#allocation2 + $0x2b0] sm:$0xff] %v1542
          %2119 = vst [vmem:[#allocation2 + $0x2b8] sm:$0xff] %v1543
          %2120 = vst [vmem:[#allocation2 + $0x2c0] sm:$0xff] %v1544
          %2121 = vst [vmem:[#allocation2 + $0x2c8] sm:$0xff] %v1545
          %2122 = vst [vmem:[#allocation2 + $0x2d0] sm:$0xff] %v1546
          %2123 = vst [vmem:[#allocation2 + $0x2d8] sm:$0xff] %v1547
          %2124 = vst [vmem:[#allocation2 + $0x2e0] sm:$0xff] %v1548
          %2125 = vst [vmem:[#allocation2 + $0x2e8] sm:$0xff] %v1549
          %2126 = vst [vmem:[#allocation2 + $0x2f0] sm:$0xff] %v1550
          %2127 = vst [vmem:[#allocation2 + $0x2f8] sm:$0xff] %v1551
          %2128 = vst [vmem:[#allocation2 + $0x300] sm:$0xff] %v1552
          %2129 = vst [vmem:[#allocation2 + $0x308] sm:$0xff] %v1553
          %2130 = vst [vmem:[#allocation2 + $0x310] sm:$0xff] %v1554
          %2131 = vst [vmem:[#allocation2 + $0x318] sm:$0xff] %v1555
          %2132 = vst [vmem:[#allocation2 + $0x320] sm:$0xff] %v1556
          %2133 = vst [vmem:[#allocation2 + $0x328] sm:$0xff] %v1557
          %2134 = vst [vmem:[#allocation2 + $0x330] sm:$0xff] %v1558
          %2135 = vst [vmem:[#allocation2 + $0x338] sm:$0xff] %v1559
          %2136 = vst [vmem:[#allocation2 + $0x340] sm:$0xff] %v1560
          %2137 = vst [vmem:[#allocation2 + $0x348] sm:$0xff] %v1561
          %2138 = vst [vmem:[#allocation2 + $0x350] sm:$0xff] %v1562
          %2139 = vst [vmem:[#allocation2 + $0x358] sm:$0xff] %v1563
          %2140 = vst [vmem:[#allocation2 + $0x360] sm:$0xff] %v1564
          %2141 = vst [vmem:[#allocation2 + $0x368] sm:$0xff] %v1565
          %2142 = vst [vmem:[#allocation2 + $0x370] sm:$0xff] %v1566
          %2143 = vst [vmem:[#allocation2 + $0x378] sm:$0xff] %v1567
          %2144 = vst [vmem:[#allocation2 + $0x380] sm:$0xff] %v1568
          %2145 = vst [vmem:[#allocation2 + $0x388] sm:$0xff] %v1569
          %2146 = vst [vmem:[#allocation2 + $0x390] sm:$0xff] %v1570
          %2147 = vst [vmem:[#allocation2 + $0x398] sm:$0xff] %v1571
          %2148 = vst [vmem:[#allocation2 + $0x3a0] sm:$0xff] %v1572
          %2149 = vst [vmem:[#allocation2 + $0x3a8] sm:$0xff] %v1573
          %2150 = vst [vmem:[#allocation2 + $0x3b0] sm:$0xff] %v1574
          %2151 = vst [vmem:[#allocation2 + $0x3b8] sm:$0xff] %v1575
          %2152 = vst [vmem:[#allocation2 + $0x3c0] sm:$0xff] %v1576
          %2153 = vst [vmem:[#allocation2 + $0x3c8] sm:$0xff] %v1577
          %2154 = vst [vmem:[#allocation2 + $0x3d0] sm:$0xff] %v1578
          %2155 = vst [vmem:[#allocation2 + $0x3d8] sm:$0xff] %v1579
          %2156 = vst [vmem:[#allocation2 + $0x3e0] sm:$0xff] %v1580
          %2157 = vst [vmem:[#allocation2 + $0x3e8] sm:$0xff] %v1581
          %2158 = vst [vmem:[#allocation2 + $0x3f0] sm:$0xff] %v1582
          %2159 = vst [vmem:[#allocation2 + $0x3f8] sm:$0xff] %v1583
          %2160 = vst [vmem:[#allocation2 + $0x400] sm:$0xff] %v1584
          %2161 = vst [vmem:[#allocation2 + $0x408] sm:$0xff] %v1585
          %2162 = vst [vmem:[#allocation2 + $0x410] sm:$0xff] %v1586
          %2163 = vst [vmem:[#allocation2 + $0x418] sm:$0xff] %v1587
          %2164 = vst [vmem:[#allocation2 + $0x420] sm:$0xff] %v1588
          %2165 = vst [vmem:[#allocation2 + $0x428] sm:$0xff] %v1589
          %2166 = vst [vmem:[#allocation2 + $0x430] sm:$0xff] %v1590
          %2167 = vst [vmem:[#allocation2 + $0x438] sm:$0xff] %v1591
          %2168 = vst [vmem:[#allocation2 + $0x440] sm:$0xff] %v1592
          %2169 = vst [vmem:[#allocation2 + $0x448] sm:$0xff] %v1593
          %2170 = vst [vmem:[#allocation2 + $0x450] sm:$0xff] %v1594
          %2171 = vst [vmem:[#allocation2 + $0x458] sm:$0xff] %v1595
          %2172 = vst [vmem:[#allocation2 + $0x460] sm:$0xff] %v1596
          %2173 = vst [vmem:[#allocation2 + $0x468] sm:$0xff] %v1597
          %2174 = vst [vmem:[#allocation2 + $0x470] sm:$0xff] %v1598
          %2175 = vst [vmem:[#allocation2 + $0x478] sm:$0xff] %v1599
          %2176 = vst [vmem:[#allocation2 + $0x480] sm:$0xff] %v1600
          %2177 = vst [vmem:[#allocation2 + $0x488] sm:$0xff] %v1601
          %2178 = vst [vmem:[#allocation2 + $0x490] sm:$0xff] %v1602
          %2179 = vst [vmem:[#allocation2 + $0x498] sm:$0xff] %v1603
          %2180 = vst [vmem:[#allocation2 + $0x4a0] sm:$0xff] %v1604
          %2181 = vst [vmem:[#allocation2 + $0x4a8] sm:$0xff] %v1605
          %2182 = vst [vmem:[#allocation2 + $0x4b0] sm:$0xff] %v1606
          %2183 = vst [vmem:[#allocation2 + $0x4b8] sm:$0xff] %v1607
          %2184 = vst [vmem:[#allocation2 + $0x4c0] sm:$0xff] %v1608
          %2185 = vst [vmem:[#allocation2 + $0x4c8] sm:$0xff] %v1609
          %2186 = vst [vmem:[#allocation2 + $0x4d0] sm:$0xff] %v1610
          %2187 = vst [vmem:[#allocation2 + $0x4d8] sm:$0xff] %v1611
          %2188 = vst [vmem:[#allocation2 + $0x4e0] sm:$0xff] %v1612
          %2189 = vst [vmem:[#allocation2 + $0x4e8] sm:$0xff] %v1613
          %2190 = vst [vmem:[#allocation2 + $0x4f0] sm:$0xff] %v1614
          %2191 = vst [vmem:[#allocation2 + $0x4f8] sm:$0xff] %v1615
          %2192 = vst [vmem:[#allocation2 + $0x500] sm:$0xff] %v1616
          %2193 = vst [vmem:[#allocation2 + $0x508] sm:$0xff] %v1617
          %2194 = vst [vmem:[#allocation2 + $0x510] sm:$0xff] %v1618
          %2195 = vst [vmem:[#allocation2 + $0x518] sm:$0xff] %v1619
          %2196 = vst [vmem:[#allocation2 + $0x520] sm:$0xff] %v1620
          %2197 = vst [vmem:[#allocation2 + $0x528] sm:$0xff] %v1621
          %2198 = vst [vmem:[#allocation2 + $0x530] sm:$0xff] %v1622
          %2199 = vst [vmem:[#allocation2 + $0x538] sm:$0xff] %v1623
          %2200 = vst [vmem:[#allocation2 + $0x540] sm:$0xff] %v1624
          %2201 = vst [vmem:[#allocation2 + $0x548] sm:$0xff] %v1625
          %2202 = vst [vmem:[#allocation2 + $0x550] sm:$0xff] %v1626
          %2203 = vst [vmem:[#allocation2 + $0x558] sm:$0xff] %v1627
          %2204 = vst [vmem:[#allocation2 + $0x560] sm:$0xff] %v1628
          %2205 = vst [vmem:[#allocation2 + $0x568] sm:$0xff] %v1629
          %2206 = vst [vmem:[#allocation2 + $0x570] sm:$0xff] %v1630
          %2207 = vst [vmem:[#allocation2 + $0x578] sm:$0xff] %v1631
          %2208 = vst [vmem:[#allocation2 + $0x580] sm:$0xff] %v1632
          %2209 = vst [vmem:[#allocation2 + $0x588] sm:$0xff] %v1633
          %2210 = vst [vmem:[#allocation2 + $0x590] sm:$0xff] %v1634
          %2211 = vst [vmem:[#allocation2 + $0x598] sm:$0xff] %v1635
          %2212 = vst [vmem:[#allocation2 + $0x5a0] sm:$0xff] %v1636
          %2213 = vst [vmem:[#allocation2 + $0x5a8] sm:$0xff] %v1637
          %2214 = vst [vmem:[#allocation2 + $0x5b0] sm:$0xff] %v1638
          %2215 = vst [vmem:[#allocation2 + $0x5b8] sm:$0xff] %v1639
          %2216 = vst [vmem:[#allocation2 + $0x5c0] sm:$0xff] %v1640
          %2217 = vst [vmem:[#allocation2 + $0x5c8] sm:$0xff] %v1641
          %2218 = vst [vmem:[#allocation2 + $0x5d0] sm:$0xff] %v1642
          %2219 = vst [vmem:[#allocation2 + $0x5d8] sm:$0xff] %v1643
          %2220 = vst [vmem:[#allocation2 + $0x5e0] sm:$0xff] %v1644
          %2221 = vst [vmem:[#allocation2 + $0x5e8] sm:$0xff] %v1645
          %2222 = vst [vmem:[#allocation2 + $0x5f0] sm:$0xff] %v1646
          %2223 = vst [vmem:[#allocation2 + $0x5f8] sm:$0xff] %v1647
          %2224 = vst [vmem:[#allocation2 + $0x600] sm:$0xff] %v1648
          %2225 = vst [vmem:[#allocation2 + $0x608] sm:$0xff] %v1649
          %2226 = vst [vmem:[#allocation2 + $0x610] sm:$0xff] %v1650
          %2227 = vst [vmem:[#allocation2 + $0x618] sm:$0xff] %v1651
          %2228 = vst [vmem:[#allocation2 + $0x620] sm:$0xff] %v1652
          %2229 = vst [vmem:[#allocation2 + $0x628] sm:$0xff] %v1653
          %2230 = vst [vmem:[#allocation2 + $0x630] sm:$0xff] %v1654
          %2231 = vst [vmem:[#allocation2 + $0x638] sm:$0xff] %v1655
          %2232 = vst [vmem:[#allocation2 + $0x640] sm:$0xff] %v1656
          %2233 = vst [vmem:[#allocation2 + $0x648] sm:$0xff] %v1657
          %2234 = vst [vmem:[#allocation2 + $0x650] sm:$0xff] %v1658
          %2235 = vst [vmem:[#allocation2 + $0x658] sm:$0xff] %v1659
          %2236 = vst [vmem:[#allocation2 + $0x660] sm:$0xff] %v1660
          %2237 = vst [vmem:[#allocation2 + $0x668] sm:$0xff] %v1661
          %2238 = vst [vmem:[#allocation2 + $0x670] sm:$0xff] %v1662
          %2239 = vst [vmem:[#allocation2 + $0x678] sm:$0xff] %v1663
          %2240 = vst [vmem:[#allocation2 + $0x680] sm:$0xff] %v1664
          %2241 = vst [vmem:[#allocation2 + $0x688] sm:$0xff] %v1665
          %2242 = vst [vmem:[#allocation2 + $0x690] sm:$0xff] %v1666
          %2243 = vst [vmem:[#allocation2 + $0x698] sm:$0xff] %v1667
          %2244 = vst [vmem:[#allocation2 + $0x6a0] sm:$0xff] %v1668
          %2245 = vst [vmem:[#allocation2 + $0x6a8] sm:$0xff] %v1669
          %2246 = vst [vmem:[#allocation2 + $0x6b0] sm:$0xff] %v1670
          %2247 = vst [vmem:[#allocation2 + $0x6b8] sm:$0xff] %v1671
          %2248 = vst [vmem:[#allocation2 + $0x6c0] sm:$0xff] %v1672
          %2249 = vst [vmem:[#allocation2 + $0x6c8] sm:$0xff] %v1673
          %2250 = vst [vmem:[#allocation2 + $0x6d0] sm:$0xff] %v1674
          %2251 = vst [vmem:[#allocation2 + $0x6d8] sm:$0xff] %v1675
          %2252 = vst [vmem:[#allocation2 + $0x6e0] sm:$0xff] %v1676
          %2253 = vst [vmem:[#allocation2 + $0x6e8] sm:$0xff] %v1677
          %2254 = vst [vmem:[#allocation2 + $0x6f0] sm:$0xff] %v1678
          %2255 = vst [vmem:[#allocation2 + $0x6f8] sm:$0xff] %v1679
          %2256 = vst [vmem:[#allocation2 + $0x700] sm:$0xff] %v1680
          %2257 = vst [vmem:[#allocation2 + $0x708] sm:$0xff] %v1681
          %2258 = vst [vmem:[#allocation2 + $0x710] sm:$0xff] %v1682
          %2259 = vst [vmem:[#allocation2 + $0x718] sm:$0xff] %v1683
          %2260 = vst [vmem:[#allocation2 + $0x720] sm:$0xff] %v1684
          %2261 = vst [vmem:[#allocation2 + $0x728] sm:$0xff] %v1685
          %2262 = vst [vmem:[#allocation2 + $0x730] sm:$0xff] %v1686
          %2263 = vst [vmem:[#allocation2 + $0x738] sm:$0xff] %v1687
          %2264 = vst [vmem:[#allocation2 + $0x740] sm:$0xff] %v1688
          %2265 = vst [vmem:[#allocation2 + $0x748] sm:$0xff] %v1689
          %2266 = vst [vmem:[#allocation2 + $0x750] sm:$0xff] %v1690
          %2267 = vst [vmem:[#allocation2 + $0x758] sm:$0xff] %v1691
          %2268 = vst [vmem:[#allocation2 + $0x760] sm:$0xff] %v1692
          %2269 = vst [vmem:[#allocation2 + $0x768] sm:$0xff] %v1693
          %2270 = vst [vmem:[#allocation2 + $0x770] sm:$0xff] %v1694
          %2271 = vst [vmem:[#allocation2 + $0x778] sm:$0xff] %v1695
          %2272 = vst [vmem:[#allocation2 + $0x780] sm:$0xff] %v1696
          %2273 = vst [vmem:[#allocation2 + $0x788] sm:$0xff] %v1697
          %2274 = vst [vmem:[#allocation2 + $0x790] sm:$0xff] %v1698
          %2275 = vst [vmem:[#allocation2 + $0x798] sm:$0xff] %v1699
          %2276 = vst [vmem:[#allocation2 + $0x7a0] sm:$0xff] %v1700
          %2277 = vst [vmem:[#allocation2 + $0x7a8] sm:$0xff] %v1701
          %2278 = vst [vmem:[#allocation2 + $0x7b0] sm:$0xff] %v1702
          %2279 = vst [vmem:[#allocation2 + $0x7b8] sm:$0xff] %v1703
          %2280 = vst [vmem:[#allocation2 + $0x7c0] sm:$0xff] %v1704
          %2281 = vst [vmem:[#allocation2 + $0x7c8] sm:$0xff] %v1705
          %2282 = vst [vmem:[#allocation2 + $0x7d0] sm:$0xff] %v1706
          %2283 = vst [vmem:[#allocation2 + $0x7d8] sm:$0xff] %v1707
          %2284 = vst [vmem:[#allocation2 + $0x7e0] sm:$0xff] %v1708
          %2285 = vst [vmem:[#allocation2 + $0x7e8] sm:$0xff] %v1709
          %2286 = vst [vmem:[#allocation2 + $0x7f0] sm:$0xff] %v1710
          %2287 = vst [vmem:[#allocation2 + $0x7f8] sm:$0xff] %v1711
          %2288 = vst [vmem:[#allocation2 + $0x800] sm:$0xff] %v1712
          %2289 = vst [vmem:[#allocation2 + $0x808] sm:$0xff] %v1713
          %2290 = vst [vmem:[#allocation2 + $0x810] sm:$0xff] %v1714
          %2291 = vst [vmem:[#allocation2 + $0x818] sm:$0xff] %v1715
          %2292 = vst [vmem:[#allocation2 + $0x820] sm:$0xff] %v1716
          %2293 = vst [vmem:[#allocation2 + $0x828] sm:$0xff] %v1717
          %2294 = vst [vmem:[#allocation2 + $0x830] sm:$0xff] %v1718
          %2295 = vst [vmem:[#allocation2 + $0x838] sm:$0xff] %v1719
          %2296 = vst [vmem:[#allocation2 + $0x840] sm:$0xff] %v1720
          %2297 = vst [vmem:[#allocation2 + $0x848] sm:$0xff] %v1721
          %2298 = vst [vmem:[#allocation2 + $0x850] sm:$0xff] %v1722
          %2299 = vst [vmem:[#allocation2 + $0x858] sm:$0xff] %v1723
          %2300 = vst [vmem:[#allocation2 + $0x860] sm:$0xff] %v1724
          %2301 = vst [vmem:[#allocation2 + $0x868] sm:$0xff] %v1725
          %2302 = vst [vmem:[#allocation2 + $0x870] sm:$0xff] %v1726
          %2303 = vst [vmem:[#allocation2 + $0x878] sm:$0xff] %v1727
          %2304 = vst [vmem:[#allocation2 + $0x880] sm:$0xff] %v1728
          %2305 = vst [vmem:[#allocation2 + $0x888] sm:$0xff] %v1729
          %2306 = vst [vmem:[#allocation2 + $0x890] sm:$0xff] %v1730
          %2307 = vst [vmem:[#allocation2 + $0x898] sm:$0xff] %v1731
          %2308 = vst [vmem:[#allocation2 + $0x8a0] sm:$0xff] %v1732
          %2309 = vst [vmem:[#allocation2 + $0x8a8] sm:$0xff] %v1733
          %2310 = vst [vmem:[#allocation2 + $0x8b0] sm:$0xff] %v1734
          %2311 = vst [vmem:[#allocation2 + $0x8b8] sm:$0xff] %v1735
          %2312 = vst [vmem:[#allocation2 + $0x8c0] sm:$0xff] %v1736
          %2313 = vst [vmem:[#allocation2 + $0x8c8] sm:$0xff] %v1737
          %2314 = vst [vmem:[#allocation2 + $0x8d0] sm:$0xff] %v1738
          %2315 = vst [vmem:[#allocation2 + $0x8d8] sm:$0xff] %v1739
          %2316 = vst [vmem:[#allocation2 + $0x8e0] sm:$0xff] %v1740
          %2317 = vst [vmem:[#allocation2 + $0x8e8] sm:$0xff] %v1741
          %2318 = vst [vmem:[#allocation2 + $0x8f0] sm:$0xff] %v1742
          %2319 = vst [vmem:[#allocation2 + $0x8f8] sm:$0xff] %v1743
          %2320 = vst [vmem:[#allocation2 + $0x900] sm:$0xff] %v1744
          %2321 = vst [vmem:[#allocation2 + $0x908] sm:$0xff] %v1745
          %2322 = vst [vmem:[#allocation2 + $0x910] sm:$0xff] %v1746
          %2323 = vst [vmem:[#allocation2 + $0x918] sm:$0xff] %v1747
          %2324 = vst [vmem:[#allocation2 + $0x920] sm:$0xff] %v1748
          %2325 = vst [vmem:[#allocation2 + $0x928] sm:$0xff] %v1749
          %2326 = vst [vmem:[#allocation2 + $0x930] sm:$0xff] %v1750
          %2327 = vst [vmem:[#allocation2 + $0x938] sm:$0xff] %v1751
          %2328 = vst [vmem:[#allocation2 + $0x940] sm:$0xff] %v1752
          %2329 = vst [vmem:[#allocation2 + $0x948] sm:$0xff] %v1753
          %2330 = vst [vmem:[#allocation2 + $0x950] sm:$0xff] %v1754
          %2331 = vst [vmem:[#allocation2 + $0x958] sm:$0xff] %v1755
          %2332 = vst [vmem:[#allocation2 + $0x960] sm:$0xff] %v1756
          %2333 = vst [vmem:[#allocation2 + $0x968] sm:$0xff] %v1757
          %2334 = vst [vmem:[#allocation2 + $0x970] sm:$0xff] %v1758
          %2335 = vst [vmem:[#allocation2 + $0x978] sm:$0xff] %v1759
          %2336 = vst [vmem:[#allocation2 + $0x980] sm:$0xff] %v1760
          %2337 = vst [vmem:[#allocation2 + $0x988] sm:$0xff] %v1761
          %2338 = vst [vmem:[#allocation2 + $0x990] sm:$0xff] %v1762
          %2339 = vst [vmem:[#allocation2 + $0x998] sm:$0xff] %v1763
          %2340 = vst [vmem:[#allocation2 + $0x9a0] sm:$0xff] %v1764
          %2341 = vst [vmem:[#allocation2 + $0x9a8] sm:$0xff] %v1765
          %2342 = vst [vmem:[#allocation2 + $0x9b0] sm:$0xff] %v1766
          %2343 = vst [vmem:[#allocation2 + $0x9b8] sm:$0xff] %v1767
          %2344 = vst [vmem:[#allocation2 + $0x9c0] sm:$0xff] %v1768
          %2345 = vst [vmem:[#allocation2 + $0x9c8] sm:$0xff] %v1769
          %2346 = vst [vmem:[#allocation2 + $0x9d0] sm:$0xff] %v1770
          %2347 = vst [vmem:[#allocation2 + $0x9d8] sm:$0xff] %v1771
          %2348 = vst [vmem:[#allocation2 + $0x9e0] sm:$0xff] %v1772
          %2349 = vst [vmem:[#allocation2 + $0x9e8] sm:$0xff] %v1773
          %2350 = vst [vmem:[#allocation2 + $0x9f0] sm:$0xff] %v1774
          %2351 = vst [vmem:[#allocation2 + $0x9f8] sm:$0xff] %v1775
          %2352 = vst [vmem:[#allocation2 + $0xa00] sm:$0xff] %v1776
          %2353 = vst [vmem:[#allocation2 + $0xa08] sm:$0xff] %v1777
          %2354 = vst [vmem:[#allocation2 + $0xa10] sm:$0xff] %v1778
          %2355 = vst [vmem:[#allocation2 + $0xa18] sm:$0xff] %v1779
          %2356 = vst [vmem:[#allocation2 + $0xa20] sm:$0xff] %v1780
          %2357 = vst [vmem:[#allocation2 + $0xa28] sm:$0xff] %v1781
          %2358 = vst [vmem:[#allocation2 + $0xa30] sm:$0xff] %v1782
          %2359 = vst [vmem:[#allocation2 + $0xa38] sm:$0xff] %v1783
          %2360 = vst [vmem:[#allocation2 + $0xa40] sm:$0xff] %v1784
          %2361 = vst [vmem:[#allocation2 + $0xa48] sm:$0xff] %v1785
          %2362 = vst [vmem:[#allocation2 + $0xa50] sm:$0xff] %v1786
          %2363 = vst [vmem:[#allocation2 + $0xa58] sm:$0xff] %v1787
          %2364 = vst [vmem:[#allocation2 + $0xa60] sm:$0xff] %v1788
          %2365 = vst [vmem:[#allocation2 + $0xa68] sm:$0xff] %v1789
          %2366 = vst [vmem:[#allocation2 + $0xa70] sm:$0xff] %v1790
          %2367 = vst [vmem:[#allocation2 + $0xa78] sm:$0xff] %v1791
          %2368 = vst [vmem:[#allocation2 + $0xa80] sm:$0xff] %v1792
          %2369 = vst [vmem:[#allocation2 + $0xa88] sm:$0xff] %v1793
          %2370 = vst [vmem:[#allocation2 + $0xa90] sm:$0xff] %v1794
          %2371 = vst [vmem:[#allocation2 + $0xa98] sm:$0xff] %v1795
          %2372 = vst [vmem:[#allocation2 + $0xaa0] sm:$0xff] %v1796
          %2373 = vst [vmem:[#allocation2 + $0xaa8] sm:$0xff] %v1797
          %2374 = vst [vmem:[#allocation2 + $0xab0] sm:$0xff] %v1798
          %2375 = vst [vmem:[#allocation2 + $0xab8] sm:$0xff] %v1799
          %2376 = vst [vmem:[#allocation2 + $0xac0] sm:$0xff] %v1800
          %2377 = vst [vmem:[#allocation2 + $0xac8] sm:$0xff] %v1801
          %2378 = vst [vmem:[#allocation2 + $0xad0] sm:$0xff] %v1802
          %2379 = vst [vmem:[#allocation2 + $0xad8] sm:$0xff] %v1803
          %2380 = vst [vmem:[#allocation2 + $0xae0] sm:$0xff] %v1804
          %2381 = vst [vmem:[#allocation2 + $0xae8] sm:$0xff] %v1805
          %2382 = vst [vmem:[#allocation2 + $0xaf0] sm:$0xff] %v1806
          %2383 = vst [vmem:[#allocation2 + $0xaf8] sm:$0xff] %v1807
          %2384 = vst [vmem:[#allocation2 + $0xb00] sm:$0xff] %v1808
          %2385 = vst [vmem:[#allocation2 + $0xb08] sm:$0xff] %v1809
          %2386 = vst [vmem:[#allocation2 + $0xb10] sm:$0xff] %v1810
          %2387 = vst [vmem:[#allocation2 + $0xb18] sm:$0xff] %v1811
          %2388 = vst [vmem:[#allocation2 + $0xb20] sm:$0xff] %v1812
          %2389 = vst [vmem:[#allocation2 + $0xb28] sm:$0xff] %v1813
          %2390 = vst [vmem:[#allocation2 + $0xb30] sm:$0xff] %v1814
          %2391 = vst [vmem:[#allocation2 + $0xb38] sm:$0xff] %v1815
          %2392 = vst [vmem:[#allocation2 + $0xb40] sm:$0xff] %v1816
          %2393 = vst [vmem:[#allocation2 + $0xb48] sm:$0xff] %v1817
          %2394 = vst [vmem:[#allocation2 + $0xb50] sm:$0xff] %v1818
          %2395 = vst [vmem:[#allocation2 + $0xb58] sm:$0xff] %v1819
          %2396 = vst [vmem:[#allocation2 + $0xb60] sm:$0xff] %v1820
          %2397 = vst [vmem:[#allocation2 + $0xb68] sm:$0xff] %v1821
          %2398 = vst [vmem:[#allocation2 + $0xb70] sm:$0xff] %v1822
          %2399 = vst [vmem:[#allocation2 + $0xb78] sm:$0xff] %v1823
          %2400 = vst [vmem:[#allocation2 + $0xb80] sm:$0xff] %v1824
          %2401 = vst [vmem:[#allocation2 + $0xb88] sm:$0xff] %v1825
          %2402 = vst [vmem:[#allocation2 + $0xb90] sm:$0xff] %v1826
          %2403 = vst [vmem:[#allocation2 + $0xb98] sm:$0xff] %v1827
          %2404 = vst [vmem:[#allocation2 + $0xba0] sm:$0xff] %v1828
          %2405 = vst [vmem:[#allocation2 + $0xba8] sm:$0xff] %v1829
          %2406 = vst [vmem:[#allocation2 + $0xbb0] sm:$0xff] %v1830
          %2407 = vst [vmem:[#allocation2 + $0xbb8] sm:$0xff] %v1831
          %2408 = vst [vmem:[#allocation2 + $0xbc0] sm:$0xff] %v1832
          %2409 = vst [vmem:[#allocation2 + $0xbc8] sm:$0xff] %v1833
          %2410 = vst [vmem:[#allocation2 + $0xbd0] sm:$0xff] %v1834
          %2411 = vst [vmem:[#allocation2 + $0xbd8] sm:$0xff] %v1835
          %2412 = vst [vmem:[#allocation2 + $0xbe0] sm:$0xff] %v1836
          %2413 = vst [vmem:[#allocation2 + $0xbe8] sm:$0xff] %v1837
          %2414 = vst [vmem:[#allocation2 + $0xbf0] sm:$0xff] %v1838
          %2415 = vst [vmem:[#allocation2 + $0xbf8] sm:$0xff] %v1839
          %2416 = vst [vmem:[#allocation2 + $0xc00] sm:$0xff] %v1840
          %2417 = vst [vmem:[#allocation2 + $0xc08] sm:$0xff] %v1841
          %2418 = vst [vmem:[#allocation2 + $0xc10] sm:$0xff] %v1842
          %2419 = vst [vmem:[#allocation2 + $0xc18] sm:$0xff] %v1843
          %2420 = vst [vmem:[#allocation2 + $0xc20] sm:$0xff] %v1844
          %2421 = vst [vmem:[#allocation2 + $0xc28] sm:$0xff] %v1845
          %2422 = vst [vmem:[#allocation2 + $0xc30] sm:$0xff] %v1846
          %2423 = vst [vmem:[#allocation2 + $0xc38] sm:$0xff] %v1847
          %2424 = vst [vmem:[#allocation2 + $0xc40] sm:$0xff] %v1848
          %2425 = vst [vmem:[#allocation2 + $0xc48] sm:$0xff] %v1849
          %2426 = vst [vmem:[#allocation2 + $0xc50] sm:$0xff] %v1850
          %2427 = vst [vmem:[#allocation2 + $0xc58] sm:$0xff] %v1851
          %2428 = vst [vmem:[#allocation2 + $0xc60] sm:$0xff] %v1852
          %2429 = vst [vmem:[#allocation2 + $0xc68] sm:$0xff] %v1853
          %2430 = vst [vmem:[#allocation2 + $0xc70] sm:$0xff] %v1854
          %2431 = vst [vmem:[#allocation2 + $0xc78] sm:$0xff] %v1855
          %2432 = vst [vmem:[#allocation2 + $0xc80] sm:$0xff] %v1856
          %2433 = vst [vmem:[#allocation2 + $0xc88] sm:$0xff] %v1857
          %2434 = vst [vmem:[#allocation2 + $0xc90] sm:$0xff] %v1858
          %2435 = vst [vmem:[#allocation2 + $0xc98] sm:$0xff] %v1859
          %2436 = vst [vmem:[#allocation2 + $0xca0] sm:$0xff] %v1860
          %2437 = vst [vmem:[#allocation2 + $0xca8] sm:$0xff] %v1861
          %2438 = vst [vmem:[#allocation2 + $0xcb0] sm:$0xff] %v1862
          %2439 = vst [vmem:[#allocation2 + $0xcb8] sm:$0xff] %v1863
          %2440 = vst [vmem:[#allocation2 + $0xcc0] sm:$0xff] %v1864
          %2441 = vst [vmem:[#allocation2 + $0xcc8] sm:$0xff] %v1865
          %2442 = vst [vmem:[#allocation2 + $0xcd0] sm:$0xff] %v1866
          %2443 = vst [vmem:[#allocation2 + $0xcd8] sm:$0xff] %v1867
          %2444 = vst [vmem:[#allocation2 + $0xce0] sm:$0xff] %v1868
          %2445 = vst [vmem:[#allocation2 + $0xce8] sm:$0xff] %v1869
          %2446 = vst [vmem:[#allocation2 + $0xcf0] sm:$0xff] %v1870
          %2447 = vst [vmem:[#allocation2 + $0xcf8] sm:$0xff] %v1871
          %2448 = vst [vmem:[#allocation2 + $0xd00] sm:$0xff] %v1872
          %2449 = vst [vmem:[#allocation2 + $0xd08] sm:$0xff] %v1873
          %2450 = vst [vmem:[#allocation2 + $0xd10] sm:$0xff] %v1874
          %2451 = vst [vmem:[#allocation2 + $0xd18] sm:$0xff] %v1875
          %2452 = vst [vmem:[#allocation2 + $0xd20] sm:$0xff] %v1876
          %2453 = vst [vmem:[#allocation2 + $0xd28] sm:$0xff] %v1877
          %2454 = vst [vmem:[#allocation2 + $0xd30] sm:$0xff] %v1878
          %2455 = vst [vmem:[#allocation2 + $0xd38] sm:$0xff] %v1879
          %2456 = vst [vmem:[#allocation2 + $0xd40] sm:$0xff] %v1880
          %2457 = vst [vmem:[#allocation2 + $0xd48] sm:$0xff] %v1881
          %2458 = vst [vmem:[#allocation2 + $0xd50] sm:$0xff] %v1882
          %2459 = vst [vmem:[#allocation2 + $0xd58] sm:$0xff] %v1883
          %2460 = vst [vmem:[#allocation2 + $0xd60] sm:$0xff] %v1884
          %2461 = vst [vmem:[#allocation2 + $0xd68] sm:$0xff] %v1885
          %2462 = vst [vmem:[#allocation2 + $0xd70] sm:$0xff] %v1886
          %2463 = vst [vmem:[#allocation2 + $0xd78] sm:$0xff] %v1887
          %2464 = vst [vmem:[#allocation2 + $0xd80] sm:$0xff] %v1888
          %2465 = vst [vmem:[#allocation2 + $0xd88] sm:$0xff] %v1889
          %2466 = vst [vmem:[#allocation2 + $0xd90] sm:$0xff] %v1890
          %2467 = vst [vmem:[#allocation2 + $0xd98] sm:$0xff] %v1891
          %2468 = vst [vmem:[#allocation2 + $0xda0] sm:$0xff] %v1892
          %2469 = vst [vmem:[#allocation2 + $0xda8] sm:$0xff] %v1893
          %2470 = vst [vmem:[#allocation2 + $0xdb0] sm:$0xff] %v1894
          %2471 = vst [vmem:[#allocation2 + $0xdb8] sm:$0xff] %v1895
          %2472 = vst [vmem:[#allocation2 + $0xdc0] sm:$0xff] %v1896
          %2473 = vst [vmem:[#allocation2 + $0xdc8] sm:$0xff] %v1897
          %2474 = vst [vmem:[#allocation2 + $0xdd0] sm:$0xff] %v1898
          %2475 = vst [vmem:[#allocation2 + $0xdd8] sm:$0xff] %v1899
          %2476 = vst [vmem:[#allocation2 + $0xde0] sm:$0xff] %v1900
          %2477 = vst [vmem:[#allocation2 + $0xde8] sm:$0xff] %v1901
          %2478 = vst [vmem:[#allocation2 + $0xdf0] sm:$0xff] %v1902
          %2479 = vst [vmem:[#allocation2 + $0xdf8] sm:$0xff] %v1903
          %2480 = vst [vmem:[#allocation2 + $0xe00] sm:$0xff] %v1904
          %2481 = vst [vmem:[#allocation2 + $0xe08] sm:$0xff] %v1905
          %2482 = vst [vmem:[#allocation2 + $0xe10] sm:$0xff] %v1906
          %2483 = vst [vmem:[#allocation2 + $0xe18] sm:$0xff] %v1907
          %2484 = vst [vmem:[#allocation2 + $0xe20] sm:$0xff] %v1908
          %2485 = vst [vmem:[#allocation2 + $0xe28] sm:$0xff] %v1909
          %2486 = vst [vmem:[#allocation2 + $0xe30] sm:$0xff] %v1910
          %2487 = vst [vmem:[#allocation2 + $0xe38] sm:$0xff] %v1911
          %2488 = vst [vmem:[#allocation2 + $0xe40] sm:$0xff] %v1912
          %2489 = vst [vmem:[#allocation2 + $0xe48] sm:$0xff] %v1913
          %2490 = vst [vmem:[#allocation2 + $0xe50] sm:$0xff] %v1914
          %2491 = vst [vmem:[#allocation2 + $0xe58] sm:$0xff] %v1915
          %2492 = vst [vmem:[#allocation2 + $0xe60] sm:$0xff] %v1916
          %2493 = vst [vmem:[#allocation2 + $0xe68] sm:$0xff] %v1917
          %2494 = vst [vmem:[#allocation2 + $0xe70] sm:$0xff] %v1918
          %2495 = vst [vmem:[#allocation2 + $0xe78] sm:$0xff] %v1919
          %2496 = vst [vmem:[#allocation2 + $0xe80] sm:$0xff] %v1920
          %2497 = vst [vmem:[#allocation2 + $0xe88] sm:$0xff] %v1921
          %2498 = vst [vmem:[#allocation2 + $0xe90] sm:$0xff] %v1922
          %2499 = vst [vmem:[#allocation2 + $0xe98] sm:$0xff] %v1923
          %2500 = vst [vmem:[#allocation2 + $0xea0] sm:$0xff] %v1924
          %2501 = vst [vmem:[#allocation2 + $0xea8] sm:$0xff] %v1925
          %2502 = vst [vmem:[#allocation2 + $0xeb0] sm:$0xff] %v1926
          %2503 = vst [vmem:[#allocation2 + $0xeb8] sm:$0xff] %v1927
          %2504 = vst [vmem:[#allocation2 + $0xec0] sm:$0xff] %v1928
          %2505 = vst [vmem:[#allocation2 + $0xec8] sm:$0xff] %v1929
          %2506 = vst [vmem:[#allocation2 + $0xed0] sm:$0xff] %v1930
          %2507 = vst [vmem:[#allocation2 + $0xed8] sm:$0xff] %v1931
          %2508 = vst [vmem:[#allocation2 + $0xee0] sm:$0xff] %v1932
          %2509 = vst [vmem:[#allocation2 + $0xee8] sm:$0xff] %v1933
          %2510 = vst [vmem:[#allocation2 + $0xef0] sm:$0xff] %v1934
          %2511 = vst [vmem:[#allocation2 + $0xef8] sm:$0xff] %v1935
          %2512 = vst [vmem:[#allocation2 + $0xf00] sm:$0xff] %v1936
          %2513 = vst [vmem:[#allocation2 + $0xf08] sm:$0xff] %v1937
          %2514 = vst [vmem:[#allocation2 + $0xf10] sm:$0xff] %v1938
          %2515 = vst [vmem:[#allocation2 + $0xf18] sm:$0xff] %v1939
          %2516 = vst [vmem:[#allocation2 + $0xf20] sm:$0xff] %v1940
          %2517 = vst [vmem:[#allocation2 + $0xf28] sm:$0xff] %v1941
          %2518 = vst [vmem:[#allocation2 + $0xf30] sm:$0xff] %v1942
          %2519 = vst [vmem:[#allocation2 + $0xf38] sm:$0xff] %v1943
          %2520 = vst [vmem:[#allocation2 + $0xf40] sm:$0xff] %v1944
          %2521 = vst [vmem:[#allocation2 + $0xf48] sm:$0xff] %v1945
          %2522 = vst [vmem:[#allocation2 + $0xf50] sm:$0xff] %v1946
          %2523 = vst [vmem:[#allocation2 + $0xf58] sm:$0xff] %v1947
          %2524 = vst [vmem:[#allocation2 + $0xf60] sm:$0xff] %v1948
          %2525 = vst [vmem:[#allocation2 + $0xf68] sm:$0xff] %v1949
          %2526 = vst [vmem:[#allocation2 + $0xf70] sm:$0xff] %v1950
          %2527 = vst [vmem:[#allocation2 + $0xf78] sm:$0xff] %v1951
          %2528 = vst [vmem:[#allocation2 + $0xf80] sm:$0xff] %v1952
          %2529 = vst [vmem:[#allocation2 + $0xf88] sm:$0xff] %v1953
          %2530 = vst [vmem:[#allocation2 + $0xf90] sm:$0xff] %v1954
          %2531 = vst [vmem:[#allocation2 + $0xf98] sm:$0xff] %v1955
          %2532 = vst [vmem:[#allocation2 + $0xfa0] sm:$0xff] %v1956
          %2533 = vst [vmem:[#allocation2 + $0xfa8] sm:$0xff] %v1957
          %2534 = vst [vmem:[#allocation2 + $0xfb0] sm:$0xff] %v1958
          %2535 = vst [vmem:[#allocation2 + $0xfb8] sm:$0xff] %v1959
          %2536 = vst [vmem:[#allocation2 + $0xfc0] sm:$0xff] %v1960
          %2537 = vst [vmem:[#allocation2 + $0xfc8] sm:$0xff] %v1961
          %2538 = vst [vmem:[#allocation2 + $0xfd0] sm:$0xff] %v1962
          %2539 = vst [vmem:[#allocation2 + $0xfd8] sm:$0xff] %v1963
          %2540 = vst [vmem:[#allocation2 + $0xfe0] sm:$0xff] %v1964
          %2541 = vst [vmem:[#allocation2 + $0xfe8] sm:$0xff] %v1965
          %2542 = vst [vmem:[#allocation2 + $0xff0] sm:$0xff] %v1966
          %2543 = vst [vmem:[#allocation2 + $0xff8] sm:$0xff] %v1967
          %2544 = vst [vmem:[#allocation2 + $0x1000] sm:$0xff] %v1968
          %2545 = vst [vmem:[#allocation2 + $0x1008] sm:$0xff] %v1969
          %2546 = vst [vmem:[#allocation2 + $0x1010] sm:$0xff] %v1970
          %2547 = vst [vmem:[#allocation2 + $0x1018] sm:$0xff] %v1971
          %2548 = vst [vmem:[#allocation2 + $0x1020] sm:$0xff] %v1972
          %2549 = vst [vmem:[#allocation2 + $0x1028] sm:$0xff] %v1973
          %2550 = vst [vmem:[#allocation2 + $0x1030] sm:$0xff] %v1974
          %2551 = vst [vmem:[#allocation2 + $0x1038] sm:$0xff] %v1975
          %2552 = vst [vmem:[#allocation2 + $0x1040] sm:$0xff] %v1976
          %2553 = vst [vmem:[#allocation2 + $0x1048] sm:$0xff] %v1977
          %2554 = vst [vmem:[#allocation2 + $0x1050] sm:$0xff] %v1978
          %2555 = vst [vmem:[#allocation2 + $0x1058] sm:$0xff] %v1979
          %2556 = vst [vmem:[#allocation2 + $0x1060] sm:$0xff] %v1980
          %2557 = vst [vmem:[#allocation2 + $0x1068] sm:$0xff] %v1981
          %2558 = vst [vmem:[#allocation2 + $0x1070] sm:$0xff] %v1982
          %2559 = vst [vmem:[#allocation2 + $0x1078] sm:$0xff] %v1983
          %2560 = vst [vmem:[#allocation2 + $0x1080] sm:$0xff] %v1984
          %2561 = vst [vmem:[#allocation2 + $0x1088] sm:$0xff] %v1985
          %2562 = vst [vmem:[#allocation2 + $0x1090] sm:$0xff] %v1986
          %2563 = vst [vmem:[#allocation2 + $0x1098] sm:$0xff] %v1987
          %2564 = vst [vmem:[#allocation2 + $0x10a0] sm:$0xff] %v1988
          %2565 = vst [vmem:[#allocation2 + $0x10a8] sm:$0xff] %v1989
          %2566 = vst [vmem:[#allocation2 + $0x10b0] sm:$0xff] %v1990
          %2567 = vst [vmem:[#allocation2 + $0x10b8] sm:$0xff] %v1991
          %2568 = vst [vmem:[#allocation2 + $0x10c0] sm:$0xff] %v1992
          %2569 = vst [vmem:[#allocation2 + $0x10c8] sm:$0xff] %v1993
          %2570 = vst [vmem:[#allocation2 + $0x10d0] sm:$0xff] %v1994
          %2571 = vst [vmem:[#allocation2 + $0x10d8] sm:$0xff] %v1995
          %2572 = vst [vmem:[#allocation2 + $0x10e0] sm:$0xff] %v1996
          %2573 = vst [vmem:[#allocation2 + $0x10e8] sm:$0xff] %v1997
          %2574 = vst [vmem:[#allocation2 + $0x10f0] sm:$0xff] %v1998
          %2575 = vst [vmem:[#allocation2 + $0x10f8] sm:$0xff] %v1999
          %2576 = vst [vmem:[#allocation2 + $0x1100] sm:$0xff] %v2000
          %2577 = vst [vmem:[#allocation2 + $0x1108] sm:$0xff] %v2001
          %2578 = vst [vmem:[#allocation2 + $0x1110] sm:$0xff] %v2002
          %2579 = vst [vmem:[#allocation2 + $0x1118] sm:$0xff] %v2003
          %2580 = vst [vmem:[#allocation2 + $0x1120] sm:$0xff] %v2004
          %2581 = vst [vmem:[#allocation2 + $0x1128] sm:$0xff] %v2005
          %2582 = vst [vmem:[#allocation2 + $0x1130] sm:$0xff] %v2006
          %2583 = vst [vmem:[#allocation2 + $0x1138] sm:$0xff] %v2007
          %2584 = vst [vmem:[#allocation2 + $0x1140] sm:$0xff] %v2008
          %2585 = vst [vmem:[#allocation2 + $0x1148] sm:$0xff] %v2009
          %2586 = vst [vmem:[#allocation2 + $0x1150] sm:$0xff] %v2010
          %2587 = vst [vmem:[#allocation2 + $0x1158] sm:$0xff] %v2011
          %2588 = vst [vmem:[#allocation2 + $0x1160] sm:$0xff] %v2012
          %2589 = vst [vmem:[#allocation2 + $0x1168] sm:$0xff] %v2013
          %2590 = vst [vmem:[#allocation2 + $0x1170] sm:$0xff] %v2014
          %2591 = vst [vmem:[#allocation2 + $0x1178] sm:$0xff] %v2015
          %2592 = vst [vmem:[#allocation2 + $0x1180] sm:$0xff] %v2016
          %2593 = vst [vmem:[#allocation2 + $0x1188] sm:$0xff] %v2017
          %2594 = vst [vmem:[#allocation2 + $0x1190] sm:$0xff] %v2018
          %2595 = vst [vmem:[#allocation2 + $0x1198] sm:$0xff] %v2019
          %2596 = vst [vmem:[#allocation2 + $0x11a0] sm:$0xff] %v2020
          %2597 = vst [vmem:[#allocation2 + $0x11a8] sm:$0xff] %v2021
          %2598 = vst [vmem:[#allocation2 + $0x11b0] sm:$0xff] %v2022
          %2599 = vst [vmem:[#allocation2 + $0x11b8] sm:$0xff] %v2023
          %2600 = vst [vmem:[#allocation2 + $0x11c0] sm:$0xff] %v2024
          %2601 = vst [vmem:[#allocation2 + $0x11c8] sm:$0xff] %v2025
          %2602 = vst [vmem:[#allocation2 + $0x11d0] sm:$0xff] %v2026
          %2603 = vst [vmem:[#allocation2 + $0x11d8] sm:$0xff] %v2027
          %2604 = vst [vmem:[#allocation2 + $0x11e0] sm:$0xff] %v2028
          %2605 = vst [vmem:[#allocation2 + $0x11e8] sm:$0xff] %v2029
          %2606 = vst [vmem:[#allocation2 + $0x11f0] sm:$0xff] %v2030
          %2607 = vst [vmem:[#allocation2 + $0x11f8] sm:$0xff] %v2031
        $region40: #{tpu_custom_call.1} parent=27 // pred_fallthru
          _
        %v2608 = vld [vmem:[%s172] sm:$0xff]
        %v2609 = vld [vmem:[%s172 + $0x8] sm:$0xff]
        %v2610 = vld [vmem:[%s172 + $0x10] sm:$0xff]
        %v2611 = vld [vmem:[%s172 + $0x18] sm:$0xff]
        %v2612 = vld [vmem:[%s172 + $0x20] sm:$0xff]
        %v2613 = vld [vmem:[%s172 + $0x28] sm:$0xff]
        %v2614 = vld [vmem:[#allocation2] sm:$0xff]
        %v2615 = vld [vmem:[#allocation2 + $0x8] sm:$0xff]
        %v2616 = vld [vmem:[#allocation2 + $0x10] sm:$0xff]
        %v2617 = vld [vmem:[#allocation2 + $0x18] sm:$0xff]
        %v2618 = vld [vmem:[#allocation2 + $0x20] sm:$0xff]
        %v2619 = vld [vmem:[#allocation2 + $0x28] sm:$0xff]
        %v2620 = vld [vmem:[#allocation2 + $0x30] sm:$0xff]
        %v2621 = vld [vmem:[#allocation2 + $0x38] sm:$0xff]
        %v2622 = vld [vmem:[#allocation2 + $0x40] sm:$0xff]
        %v2623 = vld [vmem:[#allocation2 + $0x48] sm:$0xff]
        %v2624 = vld [vmem:[#allocation2 + $0x50] sm:$0xff]
        %v2625 = vld [vmem:[#allocation2 + $0x58] sm:$0xff]
        %v2626 = vld [vmem:[#allocation2 + $0x60] sm:$0xff]
        %v2627 = vld [vmem:[#allocation2 + $0x68] sm:$0xff]
        %v2628 = vld [vmem:[#allocation2 + $0x70] sm:$0xff]
        %v2629 = vld [vmem:[#allocation2 + $0x78] sm:$0xff]
        %v2630 = vld [vmem:[#allocation2 + $0x80] sm:$0xff]
        %v2631 = vld [vmem:[#allocation2 + $0x88] sm:$0xff]
        %v2632 = vld [vmem:[#allocation2 + $0x90] sm:$0xff]
        %v2633 = vld [vmem:[#allocation2 + $0x98] sm:$0xff]
        %v2634 = vld [vmem:[#allocation2 + $0xa0] sm:$0xff]
        %v2635 = vld [vmem:[#allocation2 + $0xa8] sm:$0xff]
        %v2636 = vld [vmem:[#allocation2 + $0xb0] sm:$0xff]
        %v2637 = vld [vmem:[#allocation2 + $0xb8] sm:$0xff]
        %v2638 = vld [vmem:[#allocation2 + $0xc0] sm:$0xff]
        %v2639 = vld [vmem:[#allocation2 + $0xc8] sm:$0xff]
        %v2640 = vld [vmem:[#allocation2 + $0xd0] sm:$0xff]
        %v2641 = vld [vmem:[#allocation2 + $0xd8] sm:$0xff]
        %v2642 = vld [vmem:[#allocation2 + $0xe0] sm:$0xff]
        %v2643 = vld [vmem:[#allocation2 + $0xe8] sm:$0xff]
        %v2644 = vld [vmem:[#allocation2 + $0xf0] sm:$0xff]
        %v2645 = vld [vmem:[#allocation2 + $0xf8] sm:$0xff]
        %v2646 = vld [vmem:[#allocation2 + $0x100] sm:$0xff]
        %v2647 = vld [vmem:[#allocation2 + $0x108] sm:$0xff]
        %v2648 = vld [vmem:[#allocation2 + $0x110] sm:$0xff]
        %v2649 = vld [vmem:[#allocation2 + $0x118] sm:$0xff]
        %v2650 = vld [vmem:[#allocation2 + $0x120] sm:$0xff]
        %v2651 = vld [vmem:[#allocation2 + $0x128] sm:$0xff]
        %v2652 = vld [vmem:[#allocation2 + $0x130] sm:$0xff]
        %v2653 = vld [vmem:[#allocation2 + $0x138] sm:$0xff]
        %v2654 = vld [vmem:[#allocation2 + $0x140] sm:$0xff]
        %v2655 = vld [vmem:[#allocation2 + $0x148] sm:$0xff]
        %v2656 = vld [vmem:[#allocation2 + $0x150] sm:$0xff]
        %v2657 = vld [vmem:[#allocation2 + $0x158] sm:$0xff]
        %v2658 = vld [vmem:[#allocation2 + $0x160] sm:$0xff]
        %v2659 = vld [vmem:[#allocation2 + $0x168] sm:$0xff]
        %v2660 = vld [vmem:[#allocation2 + $0x170] sm:$0xff]
        %v2661 = vld [vmem:[#allocation2 + $0x178] sm:$0xff]
        %v2662 = vld [vmem:[#allocation2 + $0x180] sm:$0xff]
        %v2663 = vld [vmem:[#allocation2 + $0x188] sm:$0xff]
        %v2664 = vld [vmem:[#allocation2 + $0x190] sm:$0xff]
        %v2665 = vld [vmem:[#allocation2 + $0x198] sm:$0xff]
        %v2666 = vld [vmem:[#allocation2 + $0x1a0] sm:$0xff]
        %v2667 = vld [vmem:[#allocation2 + $0x1a8] sm:$0xff]
        %v2668 = vld [vmem:[#allocation2 + $0x1b0] sm:$0xff]
        %v2669 = vld [vmem:[#allocation2 + $0x1b8] sm:$0xff]
        %v2670 = vld [vmem:[#allocation2 + $0x1c0] sm:$0xff]
        %v2671 = vld [vmem:[#allocation2 + $0x1c8] sm:$0xff]
        %v2672 = vld [vmem:[#allocation2 + $0x1d0] sm:$0xff]
        %v2673 = vld [vmem:[#allocation2 + $0x1d8] sm:$0xff]
        %v2674 = vld [vmem:[#allocation2 + $0x1e0] sm:$0xff]
        %v2675 = vld [vmem:[#allocation2 + $0x1e8] sm:$0xff]
        %v2676 = vld [vmem:[#allocation2 + $0x1f0] sm:$0xff]
        %v2677 = vld [vmem:[#allocation2 + $0x1f8] sm:$0xff]
        %v2678 = vld [vmem:[#allocation2 + $0x200] sm:$0xff]
        %v2679 = vld [vmem:[#allocation2 + $0x208] sm:$0xff]
        %v2680 = vld [vmem:[#allocation2 + $0x210] sm:$0xff]
        %v2681 = vld [vmem:[#allocation2 + $0x218] sm:$0xff]
        %v2682 = vld [vmem:[#allocation2 + $0x220] sm:$0xff]
        %v2683 = vld [vmem:[#allocation2 + $0x228] sm:$0xff]
        %v2684 = vld [vmem:[#allocation2 + $0x230] sm:$0xff]
        %v2685 = vld [vmem:[#allocation2 + $0x238] sm:$0xff]
        %v2686 = vld [vmem:[#allocation2 + $0x240] sm:$0xff]
        %v2687 = vld [vmem:[#allocation2 + $0x248] sm:$0xff]
        %v2688 = vld [vmem:[#allocation2 + $0x250] sm:$0xff]
        %v2689 = vld [vmem:[#allocation2 + $0x258] sm:$0xff]
        %v2690 = vld [vmem:[#allocation2 + $0x260] sm:$0xff]
        %v2691 = vld [vmem:[#allocation2 + $0x268] sm:$0xff]
        %v2692 = vld [vmem:[#allocation2 + $0x270] sm:$0xff]
        %v2693 = vld [vmem:[#allocation2 + $0x278] sm:$0xff]
        %v2694 = vld [vmem:[#allocation2 + $0x280] sm:$0xff]
        %v2695 = vld [vmem:[#allocation2 + $0x288] sm:$0xff]
        %v2696 = vld [vmem:[#allocation2 + $0x290] sm:$0xff]
        %v2697 = vld [vmem:[#allocation2 + $0x298] sm:$0xff]
        %v2698 = vld [vmem:[#allocation2 + $0x2a0] sm:$0xff]
        %v2699 = vld [vmem:[#allocation2 + $0x2a8] sm:$0xff]
        %v2700 = vld [vmem:[#allocation2 + $0x2b0] sm:$0xff]
        %v2701 = vld [vmem:[#allocation2 + $0x2b8] sm:$0xff]
        %v2702 = vld [vmem:[#allocation2 + $0x2c0] sm:$0xff]
        %v2703 = vld [vmem:[#allocation2 + $0x2c8] sm:$0xff]
        %v2704 = vld [vmem:[#allocation2 + $0x2d0] sm:$0xff]
        %v2705 = vld [vmem:[#allocation2 + $0x2d8] sm:$0xff]
        %v2706 = vld [vmem:[#allocation2 + $0x2e0] sm:$0xff]
        %v2707 = vld [vmem:[#allocation2 + $0x2e8] sm:$0xff]
        %v2708 = vld [vmem:[#allocation2 + $0x2f0] sm:$0xff]
        %v2709 = vld [vmem:[#allocation2 + $0x2f8] sm:$0xff]
        %v2710 = vld [vmem:[#allocation2 + $0x300] sm:$0xff]
        %v2711 = vld [vmem:[#allocation2 + $0x308] sm:$0xff]
        %v2712 = vld [vmem:[#allocation2 + $0x310] sm:$0xff]
        %v2713 = vld [vmem:[#allocation2 + $0x318] sm:$0xff]
        %v2714 = vld [vmem:[#allocation2 + $0x320] sm:$0xff]
        %v2715 = vld [vmem:[#allocation2 + $0x328] sm:$0xff]
        %v2716 = vld [vmem:[#allocation2 + $0x330] sm:$0xff]
        %v2717 = vld [vmem:[#allocation2 + $0x338] sm:$0xff]
        %v2718 = vld [vmem:[#allocation2 + $0x340] sm:$0xff]
        %v2719 = vld [vmem:[#allocation2 + $0x348] sm:$0xff]
        %v2720 = vld [vmem:[#allocation2 + $0x350] sm:$0xff]
        %v2721 = vld [vmem:[#allocation2 + $0x358] sm:$0xff]
        %v2722 = vld [vmem:[#allocation2 + $0x360] sm:$0xff]
        %v2723 = vld [vmem:[#allocation2 + $0x368] sm:$0xff]
        %v2724 = vld [vmem:[#allocation2 + $0x370] sm:$0xff]
        %v2725 = vld [vmem:[#allocation2 + $0x378] sm:$0xff]
        %v2726 = vld [vmem:[#allocation2 + $0x380] sm:$0xff]
        %v2727 = vld [vmem:[#allocation2 + $0x388] sm:$0xff]
        %v2728 = vld [vmem:[#allocation2 + $0x390] sm:$0xff]
        %v2729 = vld [vmem:[#allocation2 + $0x398] sm:$0xff]
        %v2730 = vld [vmem:[#allocation2 + $0x3a0] sm:$0xff]
        %v2731 = vld [vmem:[#allocation2 + $0x3a8] sm:$0xff]
        %v2732 = vld [vmem:[#allocation2 + $0x3b0] sm:$0xff]
        %v2733 = vld [vmem:[#allocation2 + $0x3b8] sm:$0xff]
        %v2734 = vld [vmem:[#allocation2 + $0x3c0] sm:$0xff]
        %v2735 = vld [vmem:[#allocation2 + $0x3c8] sm:$0xff]
        %v2736 = vld [vmem:[#allocation2 + $0x3d0] sm:$0xff]
        %v2737 = vld [vmem:[#allocation2 + $0x3d8] sm:$0xff]
        %v2738 = vld [vmem:[#allocation2 + $0x3e0] sm:$0xff]
        %v2739 = vld [vmem:[#allocation2 + $0x3e8] sm:$0xff]
        %v2740 = vld [vmem:[#allocation2 + $0x3f0] sm:$0xff]
        %v2741 = vld [vmem:[#allocation2 + $0x3f8] sm:$0xff]
        %v2742 = vld [vmem:[#allocation2 + $0x400] sm:$0xff]
        %v2743 = vld [vmem:[#allocation2 + $0x408] sm:$0xff]
        %v2744 = vld [vmem:[#allocation2 + $0x410] sm:$0xff]
        %v2745 = vld [vmem:[#allocation2 + $0x418] sm:$0xff]
        %v2746 = vld [vmem:[#allocation2 + $0x420] sm:$0xff]
        %v2747 = vld [vmem:[#allocation2 + $0x428] sm:$0xff]
        %v2748 = vld [vmem:[#allocation2 + $0x430] sm:$0xff]
        %v2749 = vld [vmem:[#allocation2 + $0x438] sm:$0xff]
        %v2750 = vld [vmem:[#allocation2 + $0x440] sm:$0xff]
        %v2751 = vld [vmem:[#allocation2 + $0x448] sm:$0xff]
        %v2752 = vld [vmem:[#allocation2 + $0x450] sm:$0xff]
        %v2753 = vld [vmem:[#allocation2 + $0x458] sm:$0xff]
        %v2754 = vld [vmem:[#allocation2 + $0x460] sm:$0xff]
        %v2755 = vld [vmem:[#allocation2 + $0x468] sm:$0xff]
        %v2756 = vld [vmem:[#allocation2 + $0x470] sm:$0xff]
        %v2757 = vld [vmem:[#allocation2 + $0x478] sm:$0xff]
        %v2758 = vld [vmem:[#allocation2 + $0x480] sm:$0xff]
        %v2759 = vld [vmem:[#allocation2 + $0x488] sm:$0xff]
        %v2760 = vld [vmem:[#allocation2 + $0x490] sm:$0xff]
        %v2761 = vld [vmem:[#allocation2 + $0x498] sm:$0xff]
        %v2762 = vld [vmem:[#allocation2 + $0x4a0] sm:$0xff]
        %v2763 = vld [vmem:[#allocation2 + $0x4a8] sm:$0xff]
        %v2764 = vld [vmem:[#allocation2 + $0x4b0] sm:$0xff]
        %v2765 = vld [vmem:[#allocation2 + $0x4b8] sm:$0xff]
        %v2766 = vld [vmem:[#allocation2 + $0x4c0] sm:$0xff]
        %v2767 = vld [vmem:[#allocation2 + $0x4c8] sm:$0xff]
        %v2768 = vld [vmem:[#allocation2 + $0x4d0] sm:$0xff]
        %v2769 = vld [vmem:[#allocation2 + $0x4d8] sm:$0xff]
        %v2770 = vld [vmem:[#allocation2 + $0x4e0] sm:$0xff]
        %v2771 = vld [vmem:[#allocation2 + $0x4e8] sm:$0xff]
        %v2772 = vld [vmem:[#allocation2 + $0x4f0] sm:$0xff]
        %v2773 = vld [vmem:[#allocation2 + $0x4f8] sm:$0xff]
        %v2774 = vld [vmem:[#allocation2 + $0x500] sm:$0xff]
        %v2775 = vld [vmem:[#allocation2 + $0x508] sm:$0xff]
        %v2776 = vld [vmem:[#allocation2 + $0x510] sm:$0xff]
        %v2777 = vld [vmem:[#allocation2 + $0x518] sm:$0xff]
        %v2778 = vld [vmem:[#allocation2 + $0x520] sm:$0xff]
        %v2779 = vld [vmem:[#allocation2 + $0x528] sm:$0xff]
        %v2780 = vld [vmem:[#allocation2 + $0x530] sm:$0xff]
        %v2781 = vld [vmem:[#allocation2 + $0x538] sm:$0xff]
        %v2782 = vld [vmem:[#allocation2 + $0x540] sm:$0xff]
        %v2783 = vld [vmem:[#allocation2 + $0x548] sm:$0xff]
        %v2784 = vld [vmem:[#allocation2 + $0x550] sm:$0xff]
        %v2785 = vld [vmem:[#allocation2 + $0x558] sm:$0xff]
        %v2786 = vld [vmem:[#allocation2 + $0x560] sm:$0xff]
        %v2787 = vld [vmem:[#allocation2 + $0x568] sm:$0xff]
        %v2788 = vld [vmem:[#allocation2 + $0x570] sm:$0xff]
        %v2789 = vld [vmem:[#allocation2 + $0x578] sm:$0xff]
        %v2790 = vld [vmem:[#allocation2 + $0x580] sm:$0xff]
        %v2791 = vld [vmem:[#allocation2 + $0x588] sm:$0xff]
        %v2792 = vld [vmem:[#allocation2 + $0x590] sm:$0xff]
        %v2793 = vld [vmem:[#allocation2 + $0x598] sm:$0xff]
        %v2794 = vld [vmem:[#allocation2 + $0x5a0] sm:$0xff]
        %v2795 = vld [vmem:[#allocation2 + $0x5a8] sm:$0xff]
        %v2796 = vld [vmem:[#allocation2 + $0x5b0] sm:$0xff]
        %v2797 = vld [vmem:[#allocation2 + $0x5b8] sm:$0xff]
        %v2798 = vld [vmem:[#allocation2 + $0x5c0] sm:$0xff]
        %v2799 = vld [vmem:[#allocation2 + $0x5c8] sm:$0xff]
        %v2800 = vld [vmem:[#allocation2 + $0x5d0] sm:$0xff]
        %v2801 = vld [vmem:[#allocation2 + $0x5d8] sm:$0xff]
        %v2802 = vld [vmem:[#allocation2 + $0x5e0] sm:$0xff]
        %v2803 = vld [vmem:[#allocation2 + $0x5e8] sm:$0xff]
        %v2804 = vld [vmem:[#allocation2 + $0x5f0] sm:$0xff]
        %v2805 = vld [vmem:[#allocation2 + $0x5f8] sm:$0xff]
        %v2806 = vld [vmem:[#allocation2 + $0x600] sm:$0xff]
        %v2807 = vld [vmem:[#allocation2 + $0x608] sm:$0xff]
        %v2808 = vld [vmem:[#allocation2 + $0x610] sm:$0xff]
        %v2809 = vld [vmem:[#allocation2 + $0x618] sm:$0xff]
        %v2810 = vld [vmem:[#allocation2 + $0x620] sm:$0xff]
        %v2811 = vld [vmem:[#allocation2 + $0x628] sm:$0xff]
        %v2812 = vld [vmem:[#allocation2 + $0x630] sm:$0xff]
        %v2813 = vld [vmem:[#allocation2 + $0x638] sm:$0xff]
        %v2814 = vld [vmem:[#allocation2 + $0x640] sm:$0xff]
        %v2815 = vld [vmem:[#allocation2 + $0x648] sm:$0xff]
        %v2816 = vld [vmem:[#allocation2 + $0x650] sm:$0xff]
        %v2817 = vld [vmem:[#allocation2 + $0x658] sm:$0xff]
        %v2818 = vld [vmem:[#allocation2 + $0x660] sm:$0xff]
        %v2819 = vld [vmem:[#allocation2 + $0x668] sm:$0xff]
        %v2820 = vld [vmem:[#allocation2 + $0x670] sm:$0xff]
        %v2821 = vld [vmem:[#allocation2 + $0x678] sm:$0xff]
        %v2822 = vld [vmem:[#allocation2 + $0x680] sm:$0xff]
        %v2823 = vld [vmem:[#allocation2 + $0x688] sm:$0xff]
        %v2824 = vld [vmem:[#allocation2 + $0x690] sm:$0xff]
        %v2825 = vld [vmem:[#allocation2 + $0x698] sm:$0xff]
        %v2826 = vld [vmem:[#allocation2 + $0x6a0] sm:$0xff]
        %v2827 = vld [vmem:[#allocation2 + $0x6a8] sm:$0xff]
        %v2828 = vld [vmem:[#allocation2 + $0x6b0] sm:$0xff]
        %v2829 = vld [vmem:[#allocation2 + $0x6b8] sm:$0xff]
        %v2830 = vld [vmem:[#allocation2 + $0x6c0] sm:$0xff]
        %v2831 = vld [vmem:[#allocation2 + $0x6c8] sm:$0xff]
        %v2832 = vld [vmem:[#allocation2 + $0x6d0] sm:$0xff]
        %v2833 = vld [vmem:[#allocation2 + $0x6d8] sm:$0xff]
        %v2834 = vld [vmem:[#allocation2 + $0x6e0] sm:$0xff]
        %v2835 = vld [vmem:[#allocation2 + $0x6e8] sm:$0xff]
        %v2836 = vld [vmem:[#allocation2 + $0x6f0] sm:$0xff]
        %v2837 = vld [vmem:[#allocation2 + $0x6f8] sm:$0xff]
        %v2838 = vld [vmem:[#allocation2 + $0x700] sm:$0xff]
        %v2839 = vld [vmem:[#allocation2 + $0x708] sm:$0xff]
        %v2840 = vld [vmem:[#allocation2 + $0x710] sm:$0xff]
        %v2841 = vld [vmem:[#allocation2 + $0x718] sm:$0xff]
        %v2842 = vld [vmem:[#allocation2 + $0x720] sm:$0xff]
        %v2843 = vld [vmem:[#allocation2 + $0x728] sm:$0xff]
        %v2844 = vld [vmem:[#allocation2 + $0x730] sm:$0xff]
        %v2845 = vld [vmem:[#allocation2 + $0x738] sm:$0xff]
        %v2846 = vld [vmem:[#allocation2 + $0x740] sm:$0xff]
        %v2847 = vld [vmem:[#allocation2 + $0x748] sm:$0xff]
        %v2848 = vld [vmem:[#allocation2 + $0x750] sm:$0xff]
        %v2849 = vld [vmem:[#allocation2 + $0x758] sm:$0xff]
        %v2850 = vld [vmem:[#allocation2 + $0x760] sm:$0xff]
        %v2851 = vld [vmem:[#allocation2 + $0x768] sm:$0xff]
        %v2852 = vld [vmem:[#allocation2 + $0x770] sm:$0xff]
        %v2853 = vld [vmem:[#allocation2 + $0x778] sm:$0xff]
        %v2854 = vld [vmem:[#allocation2 + $0x780] sm:$0xff]
        %v2855 = vld [vmem:[#allocation2 + $0x788] sm:$0xff]
        %v2856 = vld [vmem:[#allocation2 + $0x790] sm:$0xff]
        %v2857 = vld [vmem:[#allocation2 + $0x798] sm:$0xff]
        %v2858 = vld [vmem:[#allocation2 + $0x7a0] sm:$0xff]
        %v2859 = vld [vmem:[#allocation2 + $0x7a8] sm:$0xff]
        %v2860 = vld [vmem:[#allocation2 + $0x7b0] sm:$0xff]
        %v2861 = vld [vmem:[#allocation2 + $0x7b8] sm:$0xff]
        %v2862 = vld [vmem:[#allocation2 + $0x7c0] sm:$0xff]
        %v2863 = vld [vmem:[#allocation2 + $0x7c8] sm:$0xff]
        %v2864 = vld [vmem:[#allocation2 + $0x7d0] sm:$0xff]
        %v2865 = vld [vmem:[#allocation2 + $0x7d8] sm:$0xff]
        %v2866 = vld [vmem:[#allocation2 + $0x7e0] sm:$0xff]
        %v2867 = vld [vmem:[#allocation2 + $0x7e8] sm:$0xff]
        %v2868 = vld [vmem:[#allocation2 + $0x7f0] sm:$0xff]
        %v2869 = vld [vmem:[#allocation2 + $0x7f8] sm:$0xff]
        %v2870 = vld [vmem:[#allocation2 + $0x800] sm:$0xff]
        %v2871 = vld [vmem:[#allocation2 + $0x808] sm:$0xff]
        %v2872 = vld [vmem:[#allocation2 + $0x810] sm:$0xff]
        %v2873 = vld [vmem:[#allocation2 + $0x818] sm:$0xff]
        %v2874 = vld [vmem:[#allocation2 + $0x820] sm:$0xff]
        %v2875 = vld [vmem:[#allocation2 + $0x828] sm:$0xff]
        %v2876 = vld [vmem:[#allocation2 + $0x830] sm:$0xff]
        %v2877 = vld [vmem:[#allocation2 + $0x838] sm:$0xff]
        %v2878 = vld [vmem:[#allocation2 + $0x840] sm:$0xff]
        %v2879 = vld [vmem:[#allocation2 + $0x848] sm:$0xff]
        %v2880 = vld [vmem:[#allocation2 + $0x850] sm:$0xff]
        %v2881 = vld [vmem:[#allocation2 + $0x858] sm:$0xff]
        %v2882 = vld [vmem:[#allocation2 + $0x860] sm:$0xff]
        %v2883 = vld [vmem:[#allocation2 + $0x868] sm:$0xff]
        %v2884 = vld [vmem:[#allocation2 + $0x870] sm:$0xff]
        %v2885 = vld [vmem:[#allocation2 + $0x878] sm:$0xff]
        %v2886 = vld [vmem:[#allocation2 + $0x880] sm:$0xff]
        %v2887 = vld [vmem:[#allocation2 + $0x888] sm:$0xff]
        %v2888 = vld [vmem:[#allocation2 + $0x890] sm:$0xff]
        %v2889 = vld [vmem:[#allocation2 + $0x898] sm:$0xff]
        %v2890 = vld [vmem:[#allocation2 + $0x8a0] sm:$0xff]
        %v2891 = vld [vmem:[#allocation2 + $0x8a8] sm:$0xff]
        %v2892 = vld [vmem:[#allocation2 + $0x8b0] sm:$0xff]
        %v2893 = vld [vmem:[#allocation2 + $0x8b8] sm:$0xff]
        %v2894 = vld [vmem:[#allocation2 + $0x8c0] sm:$0xff]
        %v2895 = vld [vmem:[#allocation2 + $0x8c8] sm:$0xff]
        %v2896 = vld [vmem:[#allocation2 + $0x8d0] sm:$0xff]
        %v2897 = vld [vmem:[#allocation2 + $0x8d8] sm:$0xff]
        %v2898 = vld [vmem:[#allocation2 + $0x8e0] sm:$0xff]
        %v2899 = vld [vmem:[#allocation2 + $0x8e8] sm:$0xff]
        %v2900 = vld [vmem:[#allocation2 + $0x8f0] sm:$0xff]
        %v2901 = vld [vmem:[#allocation2 + $0x8f8] sm:$0xff]
        %v2902 = vld [vmem:[#allocation2 + $0x900] sm:$0xff]
        %v2903 = vld [vmem:[#allocation2 + $0x908] sm:$0xff]
        %v2904 = vld [vmem:[#allocation2 + $0x910] sm:$0xff]
        %v2905 = vld [vmem:[#allocation2 + $0x918] sm:$0xff]
        %v2906 = vld [vmem:[#allocation2 + $0x920] sm:$0xff]
        %v2907 = vld [vmem:[#allocation2 + $0x928] sm:$0xff]
        %v2908 = vld [vmem:[#allocation2 + $0x930] sm:$0xff]
        %v2909 = vld [vmem:[#allocation2 + $0x938] sm:$0xff]
        %v2910 = vld [vmem:[#allocation2 + $0x940] sm:$0xff]
        %v2911 = vld [vmem:[#allocation2 + $0x948] sm:$0xff]
        %v2912 = vld [vmem:[#allocation2 + $0x950] sm:$0xff]
        %v2913 = vld [vmem:[#allocation2 + $0x958] sm:$0xff]
        %v2914 = vld [vmem:[#allocation2 + $0x960] sm:$0xff]
        %v2915 = vld [vmem:[#allocation2 + $0x968] sm:$0xff]
        %v2916 = vld [vmem:[#allocation2 + $0x970] sm:$0xff]
        %v2917 = vld [vmem:[#allocation2 + $0x978] sm:$0xff]
        %v2918 = vld [vmem:[#allocation2 + $0x980] sm:$0xff]
        %v2919 = vld [vmem:[#allocation2 + $0x988] sm:$0xff]
        %v2920 = vld [vmem:[#allocation2 + $0x990] sm:$0xff]
        %v2921 = vld [vmem:[#allocation2 + $0x998] sm:$0xff]
        %v2922 = vld [vmem:[#allocation2 + $0x9a0] sm:$0xff]
        %v2923 = vld [vmem:[#allocation2 + $0x9a8] sm:$0xff]
        %v2924 = vld [vmem:[#allocation2 + $0x9b0] sm:$0xff]
        %v2925 = vld [vmem:[#allocation2 + $0x9b8] sm:$0xff]
        %v2926 = vld [vmem:[#allocation2 + $0x9c0] sm:$0xff]
        %v2927 = vld [vmem:[#allocation2 + $0x9c8] sm:$0xff]
        %v2928 = vld [vmem:[#allocation2 + $0x9d0] sm:$0xff]
        %v2929 = vld [vmem:[#allocation2 + $0x9d8] sm:$0xff]
        %v2930 = vld [vmem:[#allocation2 + $0x9e0] sm:$0xff]
        %v2931 = vld [vmem:[#allocation2 + $0x9e8] sm:$0xff]
        %v2932 = vld [vmem:[#allocation2 + $0x9f0] sm:$0xff]
        %v2933 = vld [vmem:[#allocation2 + $0x9f8] sm:$0xff]
        %v2934 = vld [vmem:[#allocation2 + $0xa00] sm:$0xff]
        %v2935 = vld [vmem:[#allocation2 + $0xa08] sm:$0xff]
        %v2936 = vld [vmem:[#allocation2 + $0xa10] sm:$0xff]
        %v2937 = vld [vmem:[#allocation2 + $0xa18] sm:$0xff]
        %v2938 = vld [vmem:[#allocation2 + $0xa20] sm:$0xff]
        %v2939 = vld [vmem:[#allocation2 + $0xa28] sm:$0xff]
        %v2940 = vld [vmem:[#allocation2 + $0xa30] sm:$0xff]
        %v2941 = vld [vmem:[#allocation2 + $0xa38] sm:$0xff]
        %v2942 = vld [vmem:[#allocation2 + $0xa40] sm:$0xff]
        %v2943 = vld [vmem:[#allocation2 + $0xa48] sm:$0xff]
        %v2944 = vld [vmem:[#allocation2 + $0xa50] sm:$0xff]
        %v2945 = vld [vmem:[#allocation2 + $0xa58] sm:$0xff]
        %v2946 = vld [vmem:[#allocation2 + $0xa60] sm:$0xff]
        %v2947 = vld [vmem:[#allocation2 + $0xa68] sm:$0xff]
        %v2948 = vld [vmem:[#allocation2 + $0xa70] sm:$0xff]
        %v2949 = vld [vmem:[#allocation2 + $0xa78] sm:$0xff]
        %v2950 = vld [vmem:[#allocation2 + $0xa80] sm:$0xff]
        %v2951 = vld [vmem:[#allocation2 + $0xa88] sm:$0xff]
        %v2952 = vld [vmem:[#allocation2 + $0xa90] sm:$0xff]
        %v2953 = vld [vmem:[#allocation2 + $0xa98] sm:$0xff]
        %v2954 = vld [vmem:[#allocation2 + $0xaa0] sm:$0xff]
        %v2955 = vld [vmem:[#allocation2 + $0xaa8] sm:$0xff]
        %v2956 = vld [vmem:[#allocation2 + $0xab0] sm:$0xff]
        %v2957 = vld [vmem:[#allocation2 + $0xab8] sm:$0xff]
        %v2958 = vld [vmem:[#allocation2 + $0xac0] sm:$0xff]
        %v2959 = vld [vmem:[#allocation2 + $0xac8] sm:$0xff]
        %v2960 = vld [vmem:[#allocation2 + $0xad0] sm:$0xff]
        %v2961 = vld [vmem:[#allocation2 + $0xad8] sm:$0xff]
        %v2962 = vld [vmem:[#allocation2 + $0xae0] sm:$0xff]
        %v2963 = vld [vmem:[#allocation2 + $0xae8] sm:$0xff]
        %v2964 = vld [vmem:[#allocation2 + $0xaf0] sm:$0xff]
        %v2965 = vld [vmem:[#allocation2 + $0xaf8] sm:$0xff]
        %v2966 = vld [vmem:[#allocation2 + $0xb00] sm:$0xff]
        %v2967 = vld [vmem:[#allocation2 + $0xb08] sm:$0xff]
        %v2968 = vld [vmem:[#allocation2 + $0xb10] sm:$0xff]
        %v2969 = vld [vmem:[#allocation2 + $0xb18] sm:$0xff]
        %v2970 = vld [vmem:[#allocation2 + $0xb20] sm:$0xff]
        %v2971 = vld [vmem:[#allocation2 + $0xb28] sm:$0xff]
        %v2972 = vld [vmem:[#allocation2 + $0xb30] sm:$0xff]
        %v2973 = vld [vmem:[#allocation2 + $0xb38] sm:$0xff]
        %v2974 = vld [vmem:[#allocation2 + $0xb40] sm:$0xff]
        %v2975 = vld [vmem:[#allocation2 + $0xb48] sm:$0xff]
        %v2976 = vld [vmem:[#allocation2 + $0xb50] sm:$0xff]
        %v2977 = vld [vmem:[#allocation2 + $0xb58] sm:$0xff]
        %v2978 = vld [vmem:[#allocation2 + $0xb60] sm:$0xff]
        %v2979 = vld [vmem:[#allocation2 + $0xb68] sm:$0xff]
        %v2980 = vld [vmem:[#allocation2 + $0xb70] sm:$0xff]
        %v2981 = vld [vmem:[#allocation2 + $0xb78] sm:$0xff]
        %v2982 = vld [vmem:[#allocation2 + $0xb80] sm:$0xff]
        %v2983 = vld [vmem:[#allocation2 + $0xb88] sm:$0xff]
        %v2984 = vld [vmem:[#allocation2 + $0xb90] sm:$0xff]
        %v2985 = vld [vmem:[#allocation2 + $0xb98] sm:$0xff]
        %v2986 = vld [vmem:[#allocation2 + $0xba0] sm:$0xff]
        %v2987 = vld [vmem:[#allocation2 + $0xba8] sm:$0xff]
        %v2988 = vld [vmem:[#allocation2 + $0xbb0] sm:$0xff]
        %v2989 = vld [vmem:[#allocation2 + $0xbb8] sm:$0xff]
        %v2990 = vld [vmem:[#allocation2 + $0xbc0] sm:$0xff]
        %v2991 = vld [vmem:[#allocation2 + $0xbc8] sm:$0xff]
        %v2992 = vld [vmem:[#allocation2 + $0xbd0] sm:$0xff]
        %v2993 = vld [vmem:[#allocation2 + $0xbd8] sm:$0xff]
        %v2994 = vld [vmem:[#allocation2 + $0xbe0] sm:$0xff]
        %v2995 = vld [vmem:[#allocation2 + $0xbe8] sm:$0xff]
        %v2996 = vld [vmem:[#allocation2 + $0xbf0] sm:$0xff]
        %v2997 = vld [vmem:[#allocation2 + $0xbf8] sm:$0xff]
        %v2998 = vld [vmem:[#allocation2 + $0xc00] sm:$0xff]
        %v2999 = vld [vmem:[#allocation2 + $0xc08] sm:$0xff]
        %v3000 = vld [vmem:[#allocation2 + $0xc10] sm:$0xff]
        %v3001 = vld [vmem:[#allocation2 + $0xc18] sm:$0xff]
        %v3002 = vld [vmem:[#allocation2 + $0xc20] sm:$0xff]
        %v3003 = vld [vmem:[#allocation2 + $0xc28] sm:$0xff]
        %v3004 = vld [vmem:[#allocation2 + $0xc30] sm:$0xff]
        %v3005 = vld [vmem:[#allocation2 + $0xc38] sm:$0xff]
        %v3006 = vld [vmem:[#allocation2 + $0xc40] sm:$0xff]
        %v3007 = vld [vmem:[#allocation2 + $0xc48] sm:$0xff]
        %v3008 = vld [vmem:[#allocation2 + $0xc50] sm:$0xff]
        %v3009 = vld [vmem:[#allocation2 + $0xc58] sm:$0xff]
        %v3010 = vld [vmem:[#allocation2 + $0xc60] sm:$0xff]
        %v3011 = vld [vmem:[#allocation2 + $0xc68] sm:$0xff]
        %v3012 = vld [vmem:[#allocation2 + $0xc70] sm:$0xff]
        %v3013 = vld [vmem:[#allocation2 + $0xc78] sm:$0xff]
        %v3014 = vld [vmem:[#allocation2 + $0xc80] sm:$0xff]
        %v3015 = vld [vmem:[#allocation2 + $0xc88] sm:$0xff]
        %v3016 = vld [vmem:[#allocation2 + $0xc90] sm:$0xff]
        %v3017 = vld [vmem:[#allocation2 + $0xc98] sm:$0xff]
        %v3018 = vld [vmem:[#allocation2 + $0xca0] sm:$0xff]
        %v3019 = vld [vmem:[#allocation2 + $0xca8] sm:$0xff]
        %v3020 = vld [vmem:[#allocation2 + $0xcb0] sm:$0xff]
        %v3021 = vld [vmem:[#allocation2 + $0xcb8] sm:$0xff]
        %v3022 = vld [vmem:[#allocation2 + $0xcc0] sm:$0xff]
        %v3023 = vld [vmem:[#allocation2 + $0xcc8] sm:$0xff]
        %v3024 = vld [vmem:[#allocation2 + $0xcd0] sm:$0xff]
        %v3025 = vld [vmem:[#allocation2 + $0xcd8] sm:$0xff]
        %v3026 = vld [vmem:[#allocation2 + $0xce0] sm:$0xff]
        %v3027 = vld [vmem:[#allocation2 + $0xce8] sm:$0xff]
        %v3028 = vld [vmem:[#allocation2 + $0xcf0] sm:$0xff]
        %v3029 = vld [vmem:[#allocation2 + $0xcf8] sm:$0xff]
        %v3030 = vld [vmem:[#allocation2 + $0xd00] sm:$0xff]
        %v3031 = vld [vmem:[#allocation2 + $0xd08] sm:$0xff]
        %v3032 = vld [vmem:[#allocation2 + $0xd10] sm:$0xff]
        %v3033 = vld [vmem:[#allocation2 + $0xd18] sm:$0xff]
        %v3034 = vld [vmem:[#allocation2 + $0xd20] sm:$0xff]
        %v3035 = vld [vmem:[#allocation2 + $0xd28] sm:$0xff]
        %v3036 = vld [vmem:[#allocation2 + $0xd30] sm:$0xff]
        %v3037 = vld [vmem:[#allocation2 + $0xd38] sm:$0xff]
        %v3038 = vld [vmem:[#allocation2 + $0xd40] sm:$0xff]
        %v3039 = vld [vmem:[#allocation2 + $0xd48] sm:$0xff]
        %v3040 = vld [vmem:[#allocation2 + $0xd50] sm:$0xff]
        %v3041 = vld [vmem:[#allocation2 + $0xd58] sm:$0xff]
        %v3042 = vld [vmem:[#allocation2 + $0xd60] sm:$0xff]
        %v3043 = vld [vmem:[#allocation2 + $0xd68] sm:$0xff]
        %v3044 = vld [vmem:[#allocation2 + $0xd70] sm:$0xff]
        %v3045 = vld [vmem:[#allocation2 + $0xd78] sm:$0xff]
        %v3046 = vld [vmem:[#allocation2 + $0xd80] sm:$0xff]
        %v3047 = vld [vmem:[#allocation2 + $0xd88] sm:$0xff]
        %v3048 = vld [vmem:[#allocation2 + $0xd90] sm:$0xff]
        %v3049 = vld [vmem:[#allocation2 + $0xd98] sm:$0xff]
        %v3050 = vld [vmem:[#allocation2 + $0xda0] sm:$0xff]
        %v3051 = vld [vmem:[#allocation2 + $0xda8] sm:$0xff]
        %v3052 = vld [vmem:[#allocation2 + $0xdb0] sm:$0xff]
        %v3053 = vld [vmem:[#allocation2 + $0xdb8] sm:$0xff]
        %v3054 = vld [vmem:[#allocation2 + $0xdc0] sm:$0xff]
        %v3055 = vld [vmem:[#allocation2 + $0xdc8] sm:$0xff]
        %v3056 = vld [vmem:[#allocation2 + $0xdd0] sm:$0xff]
        %v3057 = vld [vmem:[#allocation2 + $0xdd8] sm:$0xff]
        %v3058 = vld [vmem:[#allocation2 + $0xde0] sm:$0xff]
        %v3059 = vld [vmem:[#allocation2 + $0xde8] sm:$0xff]
        %v3060 = vld [vmem:[#allocation2 + $0xdf0] sm:$0xff]
        %v3061 = vld [vmem:[#allocation2 + $0xdf8] sm:$0xff]
        %v3062 = vld [vmem:[#allocation2 + $0xe00] sm:$0xff]
        %v3063 = vld [vmem:[#allocation2 + $0xe08] sm:$0xff]
        %v3064 = vld [vmem:[#allocation2 + $0xe10] sm:$0xff]
        %v3065 = vld [vmem:[#allocation2 + $0xe18] sm:$0xff]
        %v3066 = vld [vmem:[#allocation2 + $0xe20] sm:$0xff]
        %v3067 = vld [vmem:[#allocation2 + $0xe28] sm:$0xff]
        %v3068 = vld [vmem:[#allocation2 + $0xe30] sm:$0xff]
        %v3069 = vld [vmem:[#allocation2 + $0xe38] sm:$0xff]
        %v3070 = vld [vmem:[#allocation2 + $0xe40] sm:$0xff]
        %v3071 = vld [vmem:[#allocation2 + $0xe48] sm:$0xff]
        %v3072 = vld [vmem:[#allocation2 + $0xe50] sm:$0xff]
        %v3073 = vld [vmem:[#allocation2 + $0xe58] sm:$0xff]
        %v3074 = vld [vmem:[#allocation2 + $0xe60] sm:$0xff]
        %v3075 = vld [vmem:[#allocation2 + $0xe68] sm:$0xff]
        %v3076 = vld [vmem:[#allocation2 + $0xe70] sm:$0xff]
        %v3077 = vld [vmem:[#allocation2 + $0xe78] sm:$0xff]
        %v3078 = vld [vmem:[#allocation2 + $0xe80] sm:$0xff]
        %v3079 = vld [vmem:[#allocation2 + $0xe88] sm:$0xff]
        %v3080 = vld [vmem:[#allocation2 + $0xe90] sm:$0xff]
        %v3081 = vld [vmem:[#allocation2 + $0xe98] sm:$0xff]
        %v3082 = vld [vmem:[#allocation2 + $0xea0] sm:$0xff]
        %v3083 = vld [vmem:[#allocation2 + $0xea8] sm:$0xff]
        %v3084 = vld [vmem:[#allocation2 + $0xeb0] sm:$0xff]
        %v3085 = vld [vmem:[#allocation2 + $0xeb8] sm:$0xff]
        %v3086 = vld [vmem:[#allocation2 + $0xec0] sm:$0xff]
        %v3087 = vld [vmem:[#allocation2 + $0xec8] sm:$0xff]
        %v3088 = vld [vmem:[#allocation2 + $0xed0] sm:$0xff]
        %v3089 = vld [vmem:[#allocation2 + $0xed8] sm:$0xff]
        %v3090 = vld [vmem:[#allocation2 + $0xee0] sm:$0xff]
        %v3091 = vld [vmem:[#allocation2 + $0xee8] sm:$0xff]
        %v3092 = vld [vmem:[#allocation2 + $0xef0] sm:$0xff]
        %v3093 = vld [vmem:[#allocation2 + $0xef8] sm:$0xff]
        %v3094 = vld [vmem:[#allocation2 + $0xf00] sm:$0xff]
        %v3095 = vld [vmem:[#allocation2 + $0xf08] sm:$0xff]
        %v3096 = vld [vmem:[#allocation2 + $0xf10] sm:$0xff]
        %v3097 = vld [vmem:[#allocation2 + $0xf18] sm:$0xff]
        %v3098 = vld [vmem:[#allocation2 + $0xf20] sm:$0xff]
        %v3099 = vld [vmem:[#allocation2 + $0xf28] sm:$0xff]
        %v3100 = vld [vmem:[#allocation2 + $0xf30] sm:$0xff]
        %v3101 = vld [vmem:[#allocation2 + $0xf38] sm:$0xff]
        %v3102 = vld [vmem:[#allocation2 + $0xf40] sm:$0xff]
        %v3103 = vld [vmem:[#allocation2 + $0xf48] sm:$0xff]
        %v3104 = vld [vmem:[#allocation2 + $0xf50] sm:$0xff]
        %v3105 = vld [vmem:[#allocation2 + $0xf58] sm:$0xff]
        %v3106 = vld [vmem:[#allocation2 + $0xf60] sm:$0xff]
        %v3107 = vld [vmem:[#allocation2 + $0xf68] sm:$0xff]
        %v3108 = vld [vmem:[#allocation2 + $0xf70] sm:$0xff]
        %v3109 = vld [vmem:[#allocation2 + $0xf78] sm:$0xff]
        %v3110 = vld [vmem:[#allocation2 + $0xf80] sm:$0xff]
        %v3111 = vld [vmem:[#allocation2 + $0xf88] sm:$0xff]
        %v3112 = vld [vmem:[#allocation2 + $0xf90] sm:$0xff]
        %v3113 = vld [vmem:[#allocation2 + $0xf98] sm:$0xff]
        %v3114 = vld [vmem:[#allocation2 + $0xfa0] sm:$0xff]
        %v3115 = vld [vmem:[#allocation2 + $0xfa8] sm:$0xff]
        %v3116 = vld [vmem:[#allocation2 + $0xfb0] sm:$0xff]
        %v3117 = vld [vmem:[#allocation2 + $0xfb8] sm:$0xff]
        %v3118 = vld [vmem:[#allocation2 + $0xfc0] sm:$0xff]
        %v3119 = vld [vmem:[#allocation2 + $0xfc8] sm:$0xff]
        %v3120 = vld [vmem:[#allocation2 + $0xfd0] sm:$0xff]
        %v3121 = vld [vmem:[#allocation2 + $0xfd8] sm:$0xff]
        %v3122 = vld [vmem:[#allocation2 + $0xfe0] sm:$0xff]
        %v3123 = vld [vmem:[#allocation2 + $0xfe8] sm:$0xff]
        %v3124 = vld [vmem:[#allocation2 + $0xff0] sm:$0xff]
        %v3125 = vld [vmem:[#allocation2 + $0xff8] sm:$0xff]
        %v3126 = vld [vmem:[#allocation2 + $0x1000] sm:$0xff]
        %v3127 = vld [vmem:[#allocation2 + $0x1008] sm:$0xff]
        %v3128 = vld [vmem:[#allocation2 + $0x1010] sm:$0xff]
        %v3129 = vld [vmem:[#allocation2 + $0x1018] sm:$0xff]
        %v3130 = vld [vmem:[#allocation2 + $0x1020] sm:$0xff]
        %v3131 = vld [vmem:[#allocation2 + $0x1028] sm:$0xff]
        %v3132 = vld [vmem:[#allocation2 + $0x1030] sm:$0xff]
        %v3133 = vld [vmem:[#allocation2 + $0x1038] sm:$0xff]
        %v3134 = vld [vmem:[#allocation2 + $0x1040] sm:$0xff]
        %v3135 = vld [vmem:[#allocation2 + $0x1048] sm:$0xff]
        %v3136 = vld [vmem:[#allocation2 + $0x1050] sm:$0xff]
        %v3137 = vld [vmem:[#allocation2 + $0x1058] sm:$0xff]
        %v3138 = vld [vmem:[#allocation2 + $0x1060] sm:$0xff]
        %v3139 = vld [vmem:[#allocation2 + $0x1068] sm:$0xff]
        %v3140 = vld [vmem:[#allocation2 + $0x1070] sm:$0xff]
        %v3141 = vld [vmem:[#allocation2 + $0x1078] sm:$0xff]
        %v3142 = vld [vmem:[#allocation2 + $0x1080] sm:$0xff]
        %v3143 = vld [vmem:[#allocation2 + $0x1088] sm:$0xff]
        %v3144 = vld [vmem:[#allocation2 + $0x1090] sm:$0xff]
        %v3145 = vld [vmem:[#allocation2 + $0x1098] sm:$0xff]
        %v3146 = vld [vmem:[#allocation2 + $0x10a0] sm:$0xff]
        %v3147 = vld [vmem:[#allocation2 + $0x10a8] sm:$0xff]
        %v3148 = vld [vmem:[#allocation2 + $0x10b0] sm:$0xff]
        %v3149 = vld [vmem:[#allocation2 + $0x10b8] sm:$0xff]
        %v3150 = vld [vmem:[#allocation2 + $0x10c0] sm:$0xff]
        %v3151 = vld [vmem:[#allocation2 + $0x10c8] sm:$0xff]
        %v3152 = vld [vmem:[#allocation2 + $0x10d0] sm:$0xff]
        %v3153 = vld [vmem:[#allocation2 + $0x10d8] sm:$0xff]
        %v3154 = vld [vmem:[#allocation2 + $0x10e0] sm:$0xff]
        %v3155 = vld [vmem:[#allocation2 + $0x10e8] sm:$0xff]
        %v3156 = vld [vmem:[#allocation2 + $0x10f0] sm:$0xff]
        %v3157 = vld [vmem:[#allocation2 + $0x10f8] sm:$0xff]
        %v3158 = vld [vmem:[#allocation2 + $0x1100] sm:$0xff]
        %v3159 = vld [vmem:[#allocation2 + $0x1108] sm:$0xff]
        %v3160 = vld [vmem:[#allocation2 + $0x1110] sm:$0xff]
        %v3161 = vld [vmem:[#allocation2 + $0x1118] sm:$0xff]
        %v3162 = vld [vmem:[#allocation2 + $0x1120] sm:$0xff]
        %v3163 = vld [vmem:[#allocation2 + $0x1128] sm:$0xff]
        %v3164 = vld [vmem:[#allocation2 + $0x1130] sm:$0xff]
        %v3165 = vld [vmem:[#allocation2 + $0x1138] sm:$0xff]
        %v3166 = vld [vmem:[#allocation2 + $0x1140] sm:$0xff]
        %v3167 = vld [vmem:[#allocation2 + $0x1148] sm:$0xff]
        %v3168 = vld [vmem:[#allocation2 + $0x1150] sm:$0xff]
        %v3169 = vld [vmem:[#allocation2 + $0x1158] sm:$0xff]
        %v3170 = vld [vmem:[#allocation2 + $0x1160] sm:$0xff]
        %v3171 = vld [vmem:[#allocation2 + $0x1168] sm:$0xff]
        %v3172 = vld [vmem:[#allocation2 + $0x1170] sm:$0xff]
        %v3173 = vld [vmem:[#allocation2 + $0x1178] sm:$0xff]
        %v3174 = vld [vmem:[#allocation2 + $0x1180] sm:$0xff]
        %v3175 = vld [vmem:[#allocation2 + $0x1188] sm:$0xff]
        %v3176 = vld [vmem:[#allocation2 + $0x1190] sm:$0xff]
        %v3177 = vld [vmem:[#allocation2 + $0x1198] sm:$0xff]
        %v3178 = vld [vmem:[#allocation2 + $0x11a0] sm:$0xff]
        %v3179 = vld [vmem:[#allocation2 + $0x11a8] sm:$0xff]
        %v3180 = vld [vmem:[#allocation2 + $0x11b0] sm:$0xff]
        %v3181 = vld [vmem:[#allocation2 + $0x11b8] sm:$0xff]
        %v3182 = vld [vmem:[#allocation2 + $0x11c0] sm:$0xff]
        %v3183 = vld [vmem:[#allocation2 + $0x11c8] sm:$0xff]
        %v3184 = vld [vmem:[#allocation2 + $0x11d0] sm:$0xff]
        %v3185 = vld [vmem:[#allocation2 + $0x11d8] sm:$0xff]
        %v3186 = vld [vmem:[#allocation2 + $0x11e0] sm:$0xff]
        %v3187 = vld [vmem:[#allocation2 + $0x11e8] sm:$0xff]
        %v3188 = vld [vmem:[#allocation2 + $0x11f0] sm:$0xff]
        %v3189 = vld [vmem:[#allocation2 + $0x11f8] sm:$0xff]
        %3190 = vmatpush.msra.mxu0 %v2704
        %3191 = vmatpush.msra.mxu0 %v2698
        %3192 = vmatpush.msra.mxu0 %v2692
        %3193 = vmatpush.msra.mxu0 %v2686
        %3194 = vmatpush.msra.mxu0 %v2680
        %3195 = vmatpush.msra.mxu0 %v2674
        %3196 = vmatpush.msra.mxu0 %v2668
        %3197 = vmatpush.msra.mxu0 %v2662
        %3198 = vmatpush.msra.mxu0 %v2656
        %3199 = vmatpush.msra.mxu0 %v2650
        %3200 = vmatpush.msra.mxu0 %v2644
        %3201 = vmatpush.msra.mxu0 %v2638
        %3202 = vmatpush.msra.mxu0 %v2632
        %3203 = vmatpush.msra.mxu0 %v2626
        %3204 = vmatpush.msra.mxu0 %v2620
        %3205 = vmatpush.msra.mxu0 %v2614
        %3206 = vmatmul.f32.gmra.mxu0 %v2608
        %v3207 = vpop.f32.mrf.mxu0
        %v3208 = vadd.f32 0.0, %v3207
        %3209 = vdwg.mxu0
        %3210 = vmatpush.msra.mxu0 %v2800
        %3211 = vmatpush.msra.mxu0 %v2794
        %3212 = vmatpush.msra.mxu0 %v2788
        %3213 = vmatpush.msra.mxu0 %v2782
        %3214 = vmatpush.msra.mxu0 %v2776
        %3215 = vmatpush.msra.mxu0 %v2770
        %3216 = vmatpush.msra.mxu0 %v2764
        %3217 = vmatpush.msra.mxu0 %v2758
        %3218 = vmatpush.msra.mxu0 %v2752
        %3219 = vmatpush.msra.mxu0 %v2746
        %3220 = vmatpush.msra.mxu0 %v2740
        %3221 = vmatpush.msra.mxu0 %v2734
        %3222 = vmatpush.msra.mxu0 %v2728
        %3223 = vmatpush.msra.mxu0 %v2722
        %3224 = vmatpush.msra.mxu0 %v2716
        %3225 = vmatpush.msra.mxu0 %v2710
        %3226 = vmatmul.f32.gmra.mxu0 %v2609
        %v3227 = vpop.f32.mrf.mxu0
        %v3228 = vadd.f32 %v3208, %v3227
        %3229 = vdwg.mxu0
        %3230 = vmatpush.msra.mxu0 %v2896
        %3231 = vmatpush.msra.mxu0 %v2890
        %3232 = vmatpush.msra.mxu0 %v2884
        %3233 = vmatpush.msra.mxu0 %v2878
        %3234 = vmatpush.msra.mxu0 %v2872
        %3235 = vmatpush.msra.mxu0 %v2866
        %3236 = vmatpush.msra.mxu0 %v2860
        %3237 = vmatpush.msra.mxu0 %v2854
        %3238 = vmatpush.msra.mxu0 %v2848
        %3239 = vmatpush.msra.mxu0 %v2842
        %3240 = vmatpush.msra.mxu0 %v2836
        %3241 = vmatpush.msra.mxu0 %v2830
        %3242 = vmatpush.msra.mxu0 %v2824
        %3243 = vmatpush.msra.mxu0 %v2818
        %3244 = vmatpush.msra.mxu0 %v2812
        %3245 = vmatpush.msra.mxu0 %v2806
        %3246 = vmatmul.f32.gmra.mxu0 %v2610
        %v3247 = vpop.f32.mrf.mxu0
        %v3248 = vadd.f32 %v3228, %v3247
        %3249 = vdwg.mxu0
        %3250 = vmatpush.msra.mxu0 %v2992
        %3251 = vmatpush.msra.mxu0 %v2986
        %3252 = vmatpush.msra.mxu0 %v2980
        %3253 = vmatpush.msra.mxu0 %v2974
        %3254 = vmatpush.msra.mxu0 %v2968
        %3255 = vmatpush.msra.mxu0 %v2962
        %3256 = vmatpush.msra.mxu0 %v2956
        %3257 = vmatpush.msra.mxu0 %v2950
        %3258 = vmatpush.msra.mxu0 %v2944
        %3259 = vmatpush.msra.mxu0 %v2938
        %3260 = vmatpush.msra.mxu0 %v2932
        %3261 = vmatpush.msra.mxu0 %v2926
        %3262 = vmatpush.msra.mxu0 %v2920
        %3263 = vmatpush.msra.mxu0 %v2914
        %3264 = vmatpush.msra.mxu0 %v2908
        %3265 = vmatpush.msra.mxu0 %v2902
        %3266 = vmatmul.f32.gmra.mxu0 %v2611
        %v3267 = vpop.f32.mrf.mxu0
        %v3268 = vadd.f32 %v3248, %v3267
        %3269 = vdwg.mxu0
        %3270 = vmatpush.msra.mxu0 %v3088
        %3271 = vmatpush.msra.mxu0 %v3082
        %3272 = vmatpush.msra.mxu0 %v3076
        %3273 = vmatpush.msra.mxu0 %v3070
        %3274 = vmatpush.msra.mxu0 %v3064
        %3275 = vmatpush.msra.mxu0 %v3058
        %3276 = vmatpush.msra.mxu0 %v3052
        %3277 = vmatpush.msra.mxu0 %v3046
        %3278 = vmatpush.msra.mxu0 %v3040
        %3279 = vmatpush.msra.mxu0 %v3034
        %3280 = vmatpush.msra.mxu0 %v3028
        %3281 = vmatpush.msra.mxu0 %v3022
        %3282 = vmatpush.msra.mxu0 %v3016
        %3283 = vmatpush.msra.mxu0 %v3010
        %3284 = vmatpush.msra.mxu0 %v3004
        %3285 = vmatpush.msra.mxu0 %v2998
        %3286 = vmatmul.f32.gmra.mxu0 %v2612
        %v3287 = vpop.f32.mrf.mxu0
        %v3288 = vadd.f32 %v3268, %v3287
        %3289 = vdwg.mxu0
        %3290 = vmatpush.msra.mxu0 %v3184
        %3291 = vmatpush.msra.mxu0 %v3178
        %3292 = vmatpush.msra.mxu0 %v3172
        %3293 = vmatpush.msra.mxu0 %v3166
        %3294 = vmatpush.msra.mxu0 %v3160
        %3295 = vmatpush.msra.mxu0 %v3154
        %3296 = vmatpush.msra.mxu0 %v3148
        %3297 = vmatpush.msra.mxu0 %v3142
        %3298 = vmatpush.msra.mxu0 %v3136
        %3299 = vmatpush.msra.mxu0 %v3130
        %3300 = vmatpush.msra.mxu0 %v3124
        %3301 = vmatpush.msra.mxu0 %v3118
        %3302 = vmatpush.msra.mxu0 %v3112
        %3303 = vmatpush.msra.mxu0 %v3106
        %3304 = vmatpush.msra.mxu0 %v3100
        %3305 = vmatpush.msra.mxu0 %v3094
        %3306 = vmatmul.f32.gmra.mxu0 %v2613
        %v3307 = vpop.f32.mrf.mxu0
        %v3308 = vadd.f32 %v3288, %v3307
        %3309 = vdwg.mxu0
        %3310 = vmatpush.msra.mxu0 %v2705
        %3311 = vmatpush.msra.mxu0 %v2699
        %3312 = vmatpush.msra.mxu0 %v2693
        %3313 = vmatpush.msra.mxu0 %v2687
        %3314 = vmatpush.msra.mxu0 %v2681
        %3315 = vmatpush.msra.mxu0 %v2675
        %3316 = vmatpush.msra.mxu0 %v2669
        %3317 = vmatpush.msra.mxu0 %v2663
        %3318 = vmatpush.msra.mxu0 %v2657
        %3319 = vmatpush.msra.mxu0 %v2651
        %3320 = vmatpush.msra.mxu0 %v2645
        %3321 = vmatpush.msra.mxu0 %v2639
        %3322 = vmatpush.msra.mxu0 %v2633
        %3323 = vmatpush.msra.mxu0 %v2627
        %3324 = vmatpush.msra.mxu0 %v2621
        %3325 = vmatpush.msra.mxu0 %v2615
        %3326 = vmatmul.f32.gmra.mxu0 %v2608
        %v3327 = vpop.f32.mrf.mxu0
        %v3328 = vadd.f32 0.0, %v3327
        %3329 = vdwg.mxu0
        %3330 = vmatpush.msra.mxu0 %v2801
        %3331 = vmatpush.msra.mxu0 %v2795
        %3332 = vmatpush.msra.mxu0 %v2789
        %3333 = vmatpush.msra.mxu0 %v2783
        %3334 = vmatpush.msra.mxu0 %v2777
        %3335 = vmatpush.msra.mxu0 %v2771
        %3336 = vmatpush.msra.mxu0 %v2765
        %3337 = vmatpush.msra.mxu0 %v2759
        %3338 = vmatpush.msra.mxu0 %v2753
        %3339 = vmatpush.msra.mxu0 %v2747
        %3340 = vmatpush.msra.mxu0 %v2741
        %3341 = vmatpush.msra.mxu0 %v2735
        %3342 = vmatpush.msra.mxu0 %v2729
        %3343 = vmatpush.msra.mxu0 %v2723
        %3344 = vmatpush.msra.mxu0 %v2717
        %3345 = vmatpush.msra.mxu0 %v2711
        %3346 = vmatmul.f32.gmra.mxu0 %v2609
        %v3347 = vpop.f32.mrf.mxu0
        %v3348 = vadd.f32 %v3328, %v3347
        %3349 = vdwg.mxu0
        %3350 = vmatpush.msra.mxu0 %v2897
        %3351 = vmatpush.msra.mxu0 %v2891
        %3352 = vmatpush.msra.mxu0 %v2885
        %3353 = vmatpush.msra.mxu0 %v2879
        %3354 = vmatpush.msra.mxu0 %v2873
        %3355 = vmatpush.msra.mxu0 %v2867
        %3356 = vmatpush.msra.mxu0 %v2861
        %3357 = vmatpush.msra.mxu0 %v2855
        %3358 = vmatpush.msra.mxu0 %v2849
        %3359 = vmatpush.msra.mxu0 %v2843
        %3360 = vmatpush.msra.mxu0 %v2837
        %3361 = vmatpush.msra.mxu0 %v2831
        %3362 = vmatpush.msra.mxu0 %v2825
        %3363 = vmatpush.msra.mxu0 %v2819
        %3364 = vmatpush.msra.mxu0 %v2813
        %3365 = vmatpush.msra.mxu0 %v2807
        %3366 = vmatmul.f32.gmra.mxu0 %v2610
        %v3367 = vpop.f32.mrf.mxu0
        %v3368 = vadd.f32 %v3348, %v3367
        %3369 = vdwg.mxu0
        %3370 = vmatpush.msra.mxu0 %v2993
        %3371 = vmatpush.msra.mxu0 %v2987
        %3372 = vmatpush.msra.mxu0 %v2981
        %3373 = vmatpush.msra.mxu0 %v2975
        %3374 = vmatpush.msra.mxu0 %v2969
        %3375 = vmatpush.msra.mxu0 %v2963
        %3376 = vmatpush.msra.mxu0 %v2957
        %3377 = vmatpush.msra.mxu0 %v2951
        %3378 = vmatpush.msra.mxu0 %v2945
        %3379 = vmatpush.msra.mxu0 %v2939
        %3380 = vmatpush.msra.mxu0 %v2933
        %3381 = vmatpush.msra.mxu0 %v2927
        %3382 = vmatpush.msra.mxu0 %v2921
        %3383 = vmatpush.msra.mxu0 %v2915
        %3384 = vmatpush.msra.mxu0 %v2909
        %3385 = vmatpush.msra.mxu0 %v2903
        %3386 = vmatmul.f32.gmra.mxu0 %v2611
        %v3387 = vpop.f32.mrf.mxu0
        %v3388 = vadd.f32 %v3368, %v3387
        %3389 = vdwg.mxu0
        %3390 = vmatpush.msra.mxu0 %v3089
        %3391 = vmatpush.msra.mxu0 %v3083
        %3392 = vmatpush.msra.mxu0 %v3077
        %3393 = vmatpush.msra.mxu0 %v3071
        %3394 = vmatpush.msra.mxu0 %v3065
        %3395 = vmatpush.msra.mxu0 %v3059
        %3396 = vmatpush.msra.mxu0 %v3053
        %3397 = vmatpush.msra.mxu0 %v3047
        %3398 = vmatpush.msra.mxu0 %v3041
        %3399 = vmatpush.msra.mxu0 %v3035
        %3400 = vmatpush.msra.mxu0 %v3029
        %3401 = vmatpush.msra.mxu0 %v3023
        %3402 = vmatpush.msra.mxu0 %v3017
        %3403 = vmatpush.msra.mxu0 %v3011
        %3404 = vmatpush.msra.mxu0 %v3005
        %3405 = vmatpush.msra.mxu0 %v2999
        %3406 = vmatmul.f32.gmra.mxu0 %v2612
        %v3407 = vpop.f32.mrf.mxu0
        %v3408 = vadd.f32 %v3388, %v3407
        %3409 = vdwg.mxu0
        %3410 = vmatpush.msra.mxu0 %v3185
        %3411 = vmatpush.msra.mxu0 %v3179
        %3412 = vmatpush.msra.mxu0 %v3173
        %3413 = vmatpush.msra.mxu0 %v3167
        %3414 = vmatpush.msra.mxu0 %v3161
        %3415 = vmatpush.msra.mxu0 %v3155
        %3416 = vmatpush.msra.mxu0 %v3149
        %3417 = vmatpush.msra.mxu0 %v3143
        %3418 = vmatpush.msra.mxu0 %v3137
        %3419 = vmatpush.msra.mxu0 %v3131
        %3420 = vmatpush.msra.mxu0 %v3125
        %3421 = vmatpush.msra.mxu0 %v3119
        %3422 = vmatpush.msra.mxu0 %v3113
        %3423 = vmatpush.msra.mxu0 %v3107
        %3424 = vmatpush.msra.mxu0 %v3101
        %3425 = vmatpush.msra.mxu0 %v3095
        %3426 = vmatmul.f32.gmra.mxu0 %v2613
        %v3427 = vpop.f32.mrf.mxu0
        %v3428 = vadd.f32 %v3408, %v3427
        %3429 = vdwg.mxu0
        %3430 = vmatpush.msra.mxu0 %v2706
        %3431 = vmatpush.msra.mxu0 %v2700
        %3432 = vmatpush.msra.mxu0 %v2694
        %3433 = vmatpush.msra.mxu0 %v2688
        %3434 = vmatpush.msra.mxu0 %v2682
        %3435 = vmatpush.msra.mxu0 %v2676
        %3436 = vmatpush.msra.mxu0 %v2670
        %3437 = vmatpush.msra.mxu0 %v2664
        %3438 = vmatpush.msra.mxu0 %v2658
        %3439 = vmatpush.msra.mxu0 %v2652
        %3440 = vmatpush.msra.mxu0 %v2646
        %3441 = vmatpush.msra.mxu0 %v2640
        %3442 = vmatpush.msra.mxu0 %v2634
        %3443 = vmatpush.msra.mxu0 %v2628
        %3444 = vmatpush.msra.mxu0 %v2622
        %3445 = vmatpush.msra.mxu0 %v2616
        %3446 = vmatmul.f32.gmra.mxu0 %v2608
        %v3447 = vpop.f32.mrf.mxu0
        %v3448 = vadd.f32 0.0, %v3447
        %3449 = vdwg.mxu0
        %3450 = vmatpush.msra.mxu0 %v2802
        %3451 = vmatpush.msra.mxu0 %v2796
        %3452 = vmatpush.msra.mxu0 %v2790
        %3453 = vmatpush.msra.mxu0 %v2784
        %3454 = vmatpush.msra.mxu0 %v2778
        %3455 = vmatpush.msra.mxu0 %v2772
        %3456 = vmatpush.msra.mxu0 %v2766
        %3457 = vmatpush.msra.mxu0 %v2760
        %3458 = vmatpush.msra.mxu0 %v2754
        %3459 = vmatpush.msra.mxu0 %v2748
        %3460 = vmatpush.msra.mxu0 %v2742
        %3461 = vmatpush.msra.mxu0 %v2736
        %3462 = vmatpush.msra.mxu0 %v2730
        %3463 = vmatpush.msra.mxu0 %v2724
        %3464 = vmatpush.msra.mxu0 %v2718
        %3465 = vmatpush.msra.mxu0 %v2712
        %3466 = vmatmul.f32.gmra.mxu0 %v2609
        %v3467 = vpop.f32.mrf.mxu0
        %v3468 = vadd.f32 %v3448, %v3467
        %3469 = vdwg.mxu0
        %3470 = vmatpush.msra.mxu0 %v2898
        %3471 = vmatpush.msra.mxu0 %v2892
        %3472 = vmatpush.msra.mxu0 %v2886
        %3473 = vmatpush.msra.mxu0 %v2880
        %3474 = vmatpush.msra.mxu0 %v2874
        %3475 = vmatpush.msra.mxu0 %v2868
        %3476 = vmatpush.msra.mxu0 %v2862
        %3477 = vmatpush.msra.mxu0 %v2856
        %3478 = vmatpush.msra.mxu0 %v2850
        %3479 = vmatpush.msra.mxu0 %v2844
        %3480 = vmatpush.msra.mxu0 %v2838
        %3481 = vmatpush.msra.mxu0 %v2832
        %3482 = vmatpush.msra.mxu0 %v2826
        %3483 = vmatpush.msra.mxu0 %v2820
        %3484 = vmatpush.msra.mxu0 %v2814
        %3485 = vmatpush.msra.mxu0 %v2808
        %3486 = vmatmul.f32.gmra.mxu0 %v2610
        %v3487 = vpop.f32.mrf.mxu0
        %v3488 = vadd.f32 %v3468, %v3487
        %3489 = vdwg.mxu0
        %3490 = vmatpush.msra.mxu0 %v2994
        %3491 = vmatpush.msra.mxu0 %v2988
        %3492 = vmatpush.msra.mxu0 %v2982
        %3493 = vmatpush.msra.mxu0 %v2976
        %3494 = vmatpush.msra.mxu0 %v2970
        %3495 = vmatpush.msra.mxu0 %v2964
        %3496 = vmatpush.msra.mxu0 %v2958
        %3497 = vmatpush.msra.mxu0 %v2952
        %3498 = vmatpush.msra.mxu0 %v2946
        %3499 = vmatpush.msra.mxu0 %v2940
        %3500 = vmatpush.msra.mxu0 %v2934
        %3501 = vmatpush.msra.mxu0 %v2928
        %3502 = vmatpush.msra.mxu0 %v2922
        %3503 = vmatpush.msra.mxu0 %v2916
        %3504 = vmatpush.msra.mxu0 %v2910
        %3505 = vmatpush.msra.mxu0 %v2904
        %3506 = vmatmul.f32.gmra.mxu0 %v2611
        %v3507 = vpop.f32.mrf.mxu0
        %v3508 = vadd.f32 %v3488, %v3507
        %3509 = vdwg.mxu0
        %3510 = vmatpush.msra.mxu0 %v3090
        %3511 = vmatpush.msra.mxu0 %v3084
        %3512 = vmatpush.msra.mxu0 %v3078
        %3513 = vmatpush.msra.mxu0 %v3072
        %3514 = vmatpush.msra.mxu0 %v3066
        %3515 = vmatpush.msra.mxu0 %v3060
        %3516 = vmatpush.msra.mxu0 %v3054
        %3517 = vmatpush.msra.mxu0 %v3048
        %3518 = vmatpush.msra.mxu0 %v3042
        %3519 = vmatpush.msra.mxu0 %v3036
        %3520 = vmatpush.msra.mxu0 %v3030
        %3521 = vmatpush.msra.mxu0 %v3024
        %3522 = vmatpush.msra.mxu0 %v3018
        %3523 = vmatpush.msra.mxu0 %v3012
        %3524 = vmatpush.msra.mxu0 %v3006
        %3525 = vmatpush.msra.mxu0 %v3000
        %3526 = vmatmul.f32.gmra.mxu0 %v2612
        %v3527 = vpop.f32.mrf.mxu0
        %v3528 = vadd.f32 %v3508, %v3527
        %3529 = vdwg.mxu0
        %3530 = vmatpush.msra.mxu0 %v3186
        %3531 = vmatpush.msra.mxu0 %v3180
        %3532 = vmatpush.msra.mxu0 %v3174
        %3533 = vmatpush.msra.mxu0 %v3168
        %3534 = vmatpush.msra.mxu0 %v3162
        %3535 = vmatpush.msra.mxu0 %v3156
        %3536 = vmatpush.msra.mxu0 %v3150
        %3537 = vmatpush.msra.mxu0 %v3144
        %3538 = vmatpush.msra.mxu0 %v3138
        %3539 = vmatpush.msra.mxu0 %v3132
        %3540 = vmatpush.msra.mxu0 %v3126
        %3541 = vmatpush.msra.mxu0 %v3120
        %3542 = vmatpush.msra.mxu0 %v3114
        %3543 = vmatpush.msra.mxu0 %v3108
        %3544 = vmatpush.msra.mxu0 %v3102
        %3545 = vmatpush.msra.mxu0 %v3096
        %3546 = vmatmul.f32.gmra.mxu0 %v2613
        %v3547 = vpop.f32.mrf.mxu0
        %v3548 = vadd.f32 %v3528, %v3547
        %3549 = vdwg.mxu0
        %3550 = vmatpush.msra.mxu0 %v2707
        %3551 = vmatpush.msra.mxu0 %v2701
        %3552 = vmatpush.msra.mxu0 %v2695
        %3553 = vmatpush.msra.mxu0 %v2689
        %3554 = vmatpush.msra.mxu0 %v2683
        %3555 = vmatpush.msra.mxu0 %v2677
        %3556 = vmatpush.msra.mxu0 %v2671
        %3557 = vmatpush.msra.mxu0 %v2665
        %3558 = vmatpush.msra.mxu0 %v2659
        %3559 = vmatpush.msra.mxu0 %v2653
        %3560 = vmatpush.msra.mxu0 %v2647
        %3561 = vmatpush.msra.mxu0 %v2641
        %3562 = vmatpush.msra.mxu0 %v2635
        %3563 = vmatpush.msra.mxu0 %v2629
        %3564 = vmatpush.msra.mxu0 %v2623
        %3565 = vmatpush.msra.mxu0 %v2617
        %3566 = vmatmul.f32.gmra.mxu0 %v2608
        %v3567 = vpop.f32.mrf.mxu0
        %v3568 = vadd.f32 0.0, %v3567
        %3569 = vdwg.mxu0
        %3570 = vmatpush.msra.mxu0 %v2803
        %3571 = vmatpush.msra.mxu0 %v2797
        %3572 = vmatpush.msra.mxu0 %v2791
        %3573 = vmatpush.msra.mxu0 %v2785
        %3574 = vmatpush.msra.mxu0 %v2779
        %3575 = vmatpush.msra.mxu0 %v2773
        %3576 = vmatpush.msra.mxu0 %v2767
        %3577 = vmatpush.msra.mxu0 %v2761
        %3578 = vmatpush.msra.mxu0 %v2755
        %3579 = vmatpush.msra.mxu0 %v2749
        %3580 = vmatpush.msra.mxu0 %v2743
        %3581 = vmatpush.msra.mxu0 %v2737
        %3582 = vmatpush.msra.mxu0 %v2731
        %3583 = vmatpush.msra.mxu0 %v2725
        %3584 = vmatpush.msra.mxu0 %v2719
        %3585 = vmatpush.msra.mxu0 %v2713
        %3586 = vmatmul.f32.gmra.mxu0 %v2609
        %v3587 = vpop.f32.mrf.mxu0
        %v3588 = vadd.f32 %v3568, %v3587
        %3589 = vdwg.mxu0
        %3590 = vmatpush.msra.mxu0 %v2899
        %3591 = vmatpush.msra.mxu0 %v2893
        %3592 = vmatpush.msra.mxu0 %v2887
        %3593 = vmatpush.msra.mxu0 %v2881
        %3594 = vmatpush.msra.mxu0 %v2875
        %3595 = vmatpush.msra.mxu0 %v2869
        %3596 = vmatpush.msra.mxu0 %v2863
        %3597 = vmatpush.msra.mxu0 %v2857
        %3598 = vmatpush.msra.mxu0 %v2851
        %3599 = vmatpush.msra.mxu0 %v2845
        %3600 = vmatpush.msra.mxu0 %v2839
        %3601 = vmatpush.msra.mxu0 %v2833
        %3602 = vmatpush.msra.mxu0 %v2827
        %3603 = vmatpush.msra.mxu0 %v2821
        %3604 = vmatpush.msra.mxu0 %v2815
        %3605 = vmatpush.msra.mxu0 %v2809
        %3606 = vmatmul.f32.gmra.mxu0 %v2610
        %v3607 = vpop.f32.mrf.mxu0
        %v3608 = vadd.f32 %v3588, %v3607
        %3609 = vdwg.mxu0
        %3610 = vmatpush.msra.mxu0 %v2995
        %3611 = vmatpush.msra.mxu0 %v2989
        %3612 = vmatpush.msra.mxu0 %v2983
        %3613 = vmatpush.msra.mxu0 %v2977
        %3614 = vmatpush.msra.mxu0 %v2971
        %3615 = vmatpush.msra.mxu0 %v2965
        %3616 = vmatpush.msra.mxu0 %v2959
        %3617 = vmatpush.msra.mxu0 %v2953
        %3618 = vmatpush.msra.mxu0 %v2947
        %3619 = vmatpush.msra.mxu0 %v2941
        %3620 = vmatpush.msra.mxu0 %v2935
        %3621 = vmatpush.msra.mxu0 %v2929
        %3622 = vmatpush.msra.mxu0 %v2923
        %3623 = vmatpush.msra.mxu0 %v2917
        %3624 = vmatpush.msra.mxu0 %v2911
        %3625 = vmatpush.msra.mxu0 %v2905
        %3626 = vmatmul.f32.gmra.mxu0 %v2611
        %v3627 = vpop.f32.mrf.mxu0
        %v3628 = vadd.f32 %v3608, %v3627
        %3629 = vdwg.mxu0
        %3630 = vmatpush.msra.mxu0 %v3091
        %3631 = vmatpush.msra.mxu0 %v3085
        %3632 = vmatpush.msra.mxu0 %v3079
        %3633 = vmatpush.msra.mxu0 %v3073
        %3634 = vmatpush.msra.mxu0 %v3067
        %3635 = vmatpush.msra.mxu0 %v3061
        %3636 = vmatpush.msra.mxu0 %v3055
        %3637 = vmatpush.msra.mxu0 %v3049
        %3638 = vmatpush.msra.mxu0 %v3043
        %3639 = vmatpush.msra.mxu0 %v3037
        %3640 = vmatpush.msra.mxu0 %v3031
        %3641 = vmatpush.msra.mxu0 %v3025
        %3642 = vmatpush.msra.mxu0 %v3019
        %3643 = vmatpush.msra.mxu0 %v3013
        %3644 = vmatpush.msra.mxu0 %v3007
        %3645 = vmatpush.msra.mxu0 %v3001
        %3646 = vmatmul.f32.gmra.mxu0 %v2612
        %v3647 = vpop.f32.mrf.mxu0
        %v3648 = vadd.f32 %v3628, %v3647
        %3649 = vdwg.mxu0
        %3650 = vmatpush.msra.mxu0 %v3187
        %3651 = vmatpush.msra.mxu0 %v3181
        %3652 = vmatpush.msra.mxu0 %v3175
        %3653 = vmatpush.msra.mxu0 %v3169
        %3654 = vmatpush.msra.mxu0 %v3163
        %3655 = vmatpush.msra.mxu0 %v3157
        %3656 = vmatpush.msra.mxu0 %v3151
        %3657 = vmatpush.msra.mxu0 %v3145
        %3658 = vmatpush.msra.mxu0 %v3139
        %3659 = vmatpush.msra.mxu0 %v3133
        %3660 = vmatpush.msra.mxu0 %v3127
        %3661 = vmatpush.msra.mxu0 %v3121
        %3662 = vmatpush.msra.mxu0 %v3115
        %3663 = vmatpush.msra.mxu0 %v3109
        %3664 = vmatpush.msra.mxu0 %v3103
        %3665 = vmatpush.msra.mxu0 %v3097
        %3666 = vmatmul.f32.gmra.mxu0 %v2613
        %v3667 = vpop.f32.mrf.mxu0
        %v3668 = vadd.f32 %v3648, %v3667
        %3669 = vdwg.mxu0
        %3670 = vmatpush.msra.mxu0 %v2708
        %3671 = vmatpush.msra.mxu0 %v2702
        %3672 = vmatpush.msra.mxu0 %v2696
        %3673 = vmatpush.msra.mxu0 %v2690
        %3674 = vmatpush.msra.mxu0 %v2684
        %3675 = vmatpush.msra.mxu0 %v2678
        %3676 = vmatpush.msra.mxu0 %v2672
        %3677 = vmatpush.msra.mxu0 %v2666
        %3678 = vmatpush.msra.mxu0 %v2660
        %3679 = vmatpush.msra.mxu0 %v2654
        %3680 = vmatpush.msra.mxu0 %v2648
        %3681 = vmatpush.msra.mxu0 %v2642
        %3682 = vmatpush.msra.mxu0 %v2636
        %3683 = vmatpush.msra.mxu0 %v2630
        %3684 = vmatpush.msra.mxu0 %v2624
        %3685 = vmatpush.msra.mxu0 %v2618
        %3686 = vmatmul.f32.gmra.mxu0 %v2608
        %v3687 = vpop.f32.mrf.mxu0
        %v3688 = vadd.f32 0.0, %v3687
        %3689 = vdwg.mxu0
        %3690 = vmatpush.msra.mxu0 %v2804
        %3691 = vmatpush.msra.mxu0 %v2798
        %3692 = vmatpush.msra.mxu0 %v2792
        %3693 = vmatpush.msra.mxu0 %v2786
        %3694 = vmatpush.msra.mxu0 %v2780
        %3695 = vmatpush.msra.mxu0 %v2774
        %3696 = vmatpush.msra.mxu0 %v2768
        %3697 = vmatpush.msra.mxu0 %v2762
        %3698 = vmatpush.msra.mxu0 %v2756
        %3699 = vmatpush.msra.mxu0 %v2750
        %3700 = vmatpush.msra.mxu0 %v2744
        %3701 = vmatpush.msra.mxu0 %v2738
        %3702 = vmatpush.msra.mxu0 %v2732
        %3703 = vmatpush.msra.mxu0 %v2726
        %3704 = vmatpush.msra.mxu0 %v2720
        %3705 = vmatpush.msra.mxu0 %v2714
        %3706 = vmatmul.f32.gmra.mxu0 %v2609
        %v3707 = vpop.f32.mrf.mxu0
        %v3708 = vadd.f32 %v3688, %v3707
        %3709 = vdwg.mxu0
        %3710 = vmatpush.msra.mxu0 %v2900
        %3711 = vmatpush.msra.mxu0 %v2894
        %3712 = vmatpush.msra.mxu0 %v2888
        %3713 = vmatpush.msra.mxu0 %v2882
        %3714 = vmatpush.msra.mxu0 %v2876
        %3715 = vmatpush.msra.mxu0 %v2870
        %3716 = vmatpush.msra.mxu0 %v2864
        %3717 = vmatpush.msra.mxu0 %v2858
        %3718 = vmatpush.msra.mxu0 %v2852
        %3719 = vmatpush.msra.mxu0 %v2846
        %3720 = vmatpush.msra.mxu0 %v2840
        %3721 = vmatpush.msra.mxu0 %v2834
        %3722 = vmatpush.msra.mxu0 %v2828
        %3723 = vmatpush.msra.mxu0 %v2822
        %3724 = vmatpush.msra.mxu0 %v2816
        %3725 = vmatpush.msra.mxu0 %v2810
        %3726 = vmatmul.f32.gmra.mxu0 %v2610
        %v3727 = vpop.f32.mrf.mxu0
        %v3728 = vadd.f32 %v3708, %v3727
        %3729 = vdwg.mxu0
        %3730 = vmatpush.msra.mxu0 %v2996
        %3731 = vmatpush.msra.mxu0 %v2990
        %3732 = vmatpush.msra.mxu0 %v2984
        %3733 = vmatpush.msra.mxu0 %v2978
        %3734 = vmatpush.msra.mxu0 %v2972
        %3735 = vmatpush.msra.mxu0 %v2966
        %3736 = vmatpush.msra.mxu0 %v2960
        %3737 = vmatpush.msra.mxu0 %v2954
        %3738 = vmatpush.msra.mxu0 %v2948
        %3739 = vmatpush.msra.mxu0 %v2942
        %3740 = vmatpush.msra.mxu0 %v2936
        %3741 = vmatpush.msra.mxu0 %v2930
        %3742 = vmatpush.msra.mxu0 %v2924
        %3743 = vmatpush.msra.mxu0 %v2918
        %3744 = vmatpush.msra.mxu0 %v2912
        %3745 = vmatpush.msra.mxu0 %v2906
        %3746 = vmatmul.f32.gmra.mxu0 %v2611
        %v3747 = vpop.f32.mrf.mxu0
        %v3748 = vadd.f32 %v3728, %v3747
        %3749 = vdwg.mxu0
        %3750 = vmatpush.msra.mxu0 %v3092
        %3751 = vmatpush.msra.mxu0 %v3086
        %3752 = vmatpush.msra.mxu0 %v3080
        %3753 = vmatpush.msra.mxu0 %v3074
        %3754 = vmatpush.msra.mxu0 %v3068
        %3755 = vmatpush.msra.mxu0 %v3062
        %3756 = vmatpush.msra.mxu0 %v3056
        %3757 = vmatpush.msra.mxu0 %v3050
        %3758 = vmatpush.msra.mxu0 %v3044
        %3759 = vmatpush.msra.mxu0 %v3038
        %3760 = vmatpush.msra.mxu0 %v3032
        %3761 = vmatpush.msra.mxu0 %v3026
        %3762 = vmatpush.msra.mxu0 %v3020
        %3763 = vmatpush.msra.mxu0 %v3014
        %3764 = vmatpush.msra.mxu0 %v3008
        %3765 = vmatpush.msra.mxu0 %v3002
        %3766 = vmatmul.f32.gmra.mxu0 %v2612
        %v3767 = vpop.f32.mrf.mxu0
        %v3768 = vadd.f32 %v3748, %v3767
        %3769 = vdwg.mxu0
        %3770 = vmatpush.msra.mxu0 %v3188
        %3771 = vmatpush.msra.mxu0 %v3182
        %3772 = vmatpush.msra.mxu0 %v3176
        %3773 = vmatpush.msra.mxu0 %v3170
        %3774 = vmatpush.msra.mxu0 %v3164
        %3775 = vmatpush.msra.mxu0 %v3158
        %3776 = vmatpush.msra.mxu0 %v3152
        %3777 = vmatpush.msra.mxu0 %v3146
        %3778 = vmatpush.msra.mxu0 %v3140
        %3779 = vmatpush.msra.mxu0 %v3134
        %3780 = vmatpush.msra.mxu0 %v3128
        %3781 = vmatpush.msra.mxu0 %v3122
        %3782 = vmatpush.msra.mxu0 %v3116
        %3783 = vmatpush.msra.mxu0 %v3110
        %3784 = vmatpush.msra.mxu0 %v3104
        %3785 = vmatpush.msra.mxu0 %v3098
        %3786 = vmatmul.f32.gmra.mxu0 %v2613
        %v3787 = vpop.f32.mrf.mxu0
        %v3788 = vadd.f32 %v3768, %v3787
        %3789 = vdwg.mxu0
        %3790 = vmatpush.msra.mxu0 %v2709
        %3791 = vmatpush.msra.mxu0 %v2703
        %3792 = vmatpush.msra.mxu0 %v2697
        %3793 = vmatpush.msra.mxu0 %v2691
        %3794 = vmatpush.msra.mxu0 %v2685
        %3795 = vmatpush.msra.mxu0 %v2679
        %3796 = vmatpush.msra.mxu0 %v2673
        %3797 = vmatpush.msra.mxu0 %v2667
        %3798 = vmatpush.msra.mxu0 %v2661
        %3799 = vmatpush.msra.mxu0 %v2655
        %3800 = vmatpush.msra.mxu0 %v2649
        %3801 = vmatpush.msra.mxu0 %v2643
        %3802 = vmatpush.msra.mxu0 %v2637
        %3803 = vmatpush.msra.mxu0 %v2631
        %3804 = vmatpush.msra.mxu0 %v2625
        %3805 = vmatpush.msra.mxu0 %v2619
        %3806 = vmatmul.f32.gmra.mxu0 %v2608
        %v3807 = vpop.f32.mrf.mxu0
        %v3808 = vadd.f32 0.0, %v3807
        %3809 = vdwg.mxu0
        %3810 = vmatpush.msra.mxu0 %v2805
        %3811 = vmatpush.msra.mxu0 %v2799
        %3812 = vmatpush.msra.mxu0 %v2793
        %3813 = vmatpush.msra.mxu0 %v2787
        %3814 = vmatpush.msra.mxu0 %v2781
        %3815 = vmatpush.msra.mxu0 %v2775
        %3816 = vmatpush.msra.mxu0 %v2769
        %3817 = vmatpush.msra.mxu0 %v2763
        %3818 = vmatpush.msra.mxu0 %v2757
        %3819 = vmatpush.msra.mxu0 %v2751
        %3820 = vmatpush.msra.mxu0 %v2745
        %3821 = vmatpush.msra.mxu0 %v2739
        %3822 = vmatpush.msra.mxu0 %v2733
        %3823 = vmatpush.msra.mxu0 %v2727
        %3824 = vmatpush.msra.mxu0 %v2721
        %3825 = vmatpush.msra.mxu0 %v2715
        %3826 = vmatmul.f32.gmra.mxu0 %v2609
        %v3827 = vpop.f32.mrf.mxu0
        %v3828 = vadd.f32 %v3808, %v3827
        %3829 = vdwg.mxu0
        %3830 = vmatpush.msra.mxu0 %v2901
        %3831 = vmatpush.msra.mxu0 %v2895
        %3832 = vmatpush.msra.mxu0 %v2889
        %3833 = vmatpush.msra.mxu0 %v2883
        %3834 = vmatpush.msra.mxu0 %v2877
        %3835 = vmatpush.msra.mxu0 %v2871
        %3836 = vmatpush.msra.mxu0 %v2865
        %3837 = vmatpush.msra.mxu0 %v2859
        %3838 = vmatpush.msra.mxu0 %v2853
        %3839 = vmatpush.msra.mxu0 %v2847
        %3840 = vmatpush.msra.mxu0 %v2841
        %3841 = vmatpush.msra.mxu0 %v2835
        %3842 = vmatpush.msra.mxu0 %v2829
        %3843 = vmatpush.msra.mxu0 %v2823
        %3844 = vmatpush.msra.mxu0 %v2817
        %3845 = vmatpush.msra.mxu0 %v2811
        %3846 = vmatmul.f32.gmra.mxu0 %v2610
        %v3847 = vpop.f32.mrf.mxu0
        %v3848 = vadd.f32 %v3828, %v3847
        %3849 = vdwg.mxu0
        %3850 = vmatpush.msra.mxu0 %v2997
        %3851 = vmatpush.msra.mxu0 %v2991
        %3852 = vmatpush.msra.mxu0 %v2985
        %3853 = vmatpush.msra.mxu0 %v2979
        %3854 = vmatpush.msra.mxu0 %v2973
        %3855 = vmatpush.msra.mxu0 %v2967
        %3856 = vmatpush.msra.mxu0 %v2961
        %3857 = vmatpush.msra.mxu0 %v2955
        %3858 = vmatpush.msra.mxu0 %v2949
        %3859 = vmatpush.msra.mxu0 %v2943
        %3860 = vmatpush.msra.mxu0 %v2937
        %3861 = vmatpush.msra.mxu0 %v2931
        %3862 = vmatpush.msra.mxu0 %v2925
        %3863 = vmatpush.msra.mxu0 %v2919
        %3864 = vmatpush.msra.mxu0 %v2913
        %3865 = vmatpush.msra.mxu0 %v2907
        %3866 = vmatmul.f32.gmra.mxu0 %v2611
        %v3867 = vpop.f32.mrf.mxu0
        %v3868 = vadd.f32 %v3848, %v3867
        %3869 = vdwg.mxu0
        %3870 = vmatpush.msra.mxu0 %v3093
        %3871 = vmatpush.msra.mxu0 %v3087
        %3872 = vmatpush.msra.mxu0 %v3081
        %3873 = vmatpush.msra.mxu0 %v3075
        %3874 = vmatpush.msra.mxu0 %v3069
        %3875 = vmatpush.msra.mxu0 %v3063
        %3876 = vmatpush.msra.mxu0 %v3057
        %3877 = vmatpush.msra.mxu0 %v3051
        %3878 = vmatpush.msra.mxu0 %v3045
        %3879 = vmatpush.msra.mxu0 %v3039
        %3880 = vmatpush.msra.mxu0 %v3033
        %3881 = vmatpush.msra.mxu0 %v3027
        %3882 = vmatpush.msra.mxu0 %v3021
        %3883 = vmatpush.msra.mxu0 %v3015
        %3884 = vmatpush.msra.mxu0 %v3009
        %3885 = vmatpush.msra.mxu0 %v3003
        %3886 = vmatmul.f32.gmra.mxu0 %v2612
        %v3887 = vpop.f32.mrf.mxu0
        %v3888 = vadd.f32 %v3868, %v3887
        %3889 = vdwg.mxu0
        %3890 = vmatpush.msra.mxu0 %v3189
        %3891 = vmatpush.msra.mxu0 %v3183
        %3892 = vmatpush.msra.mxu0 %v3177
        %3893 = vmatpush.msra.mxu0 %v3171
        %3894 = vmatpush.msra.mxu0 %v3165
        %3895 = vmatpush.msra.mxu0 %v3159
        %3896 = vmatpush.msra.mxu0 %v3153
        %3897 = vmatpush.msra.mxu0 %v3147
        %3898 = vmatpush.msra.mxu0 %v3141
        %3899 = vmatpush.msra.mxu0 %v3135
        %3900 = vmatpush.msra.mxu0 %v3129
        %3901 = vmatpush.msra.mxu0 %v3123
        %3902 = vmatpush.msra.mxu0 %v3117
        %3903 = vmatpush.msra.mxu0 %v3111
        %3904 = vmatpush.msra.mxu0 %v3105
        %3905 = vmatpush.msra.mxu0 %v3099
        %3906 = vmatmul.f32.gmra.mxu0 %v2613
        %v3907 = vpop.f32.mrf.mxu0
        %v3908 = vadd.f32 %v3888, %v3907
        %3909 = vdwg.mxu0
        %3910 = vst [vmem:[%s193] sm:$0xff] %v3308
        %3911 = vst [vmem:[%s193 + $0x8] sm:$0xff] %v3428
        %3912 = vst [vmem:[%s193 + $0x10] sm:$0xff] %v3548
        %3913 = vst [vmem:[%s193 + $0x18] sm:$0xff] %v3668
        %3914 = vst [vmem:[%s193 + $0x20] sm:$0xff] %v3788
        %3915 = vst [vmem:[%s193 + $0x28] sm:$0xff] %v3908
        %s3916 = sand.u32 %s91, 1
        %s3917 = scalar_lea.sflag [#allocation5], %s3916
        %s3918 = sand.u32 %s91, 1
        %s3919 = smul.addr %s3918, 48
        %s3920 = scalar_lea.vmem [#allocation8], %s3919
        // Predicated region
        $region41: #{tpu_custom_call.1} parent=27 // pred_check
          %p3921 = pneg %p101
        $region42: #{tpu_custom_call.1} parent=27 // pred_check_branch
          %3923 = sbr.rel (%p3921) target = $region44
        $region43: #{tpu_custom_call.1} parent=27 // pred_region
          %s3924 = sadd.s32 %s24, %s25
          %3926 = vsyncadd %s3917, 0
          %s3927 = smul.addr %s3924, 6
          %s3928 = smul.addr %s3927, 8
          %s3929 = scalar_lea.hbm %s2, %s3928
          %s3931 = sshll.u32 %s3920, 4
          %s3932 = int_to_ptr.vmem [resolvable:$true] %s3931
          %s3933 = sshll.u32 %s3929, 4
          %s3934 = int_to_ptr.hbm [resolvable:$true] %s3933
          %3936 = dma.vmem_to_hbm [thread:$0]  %s3932, 768, %s3934, %s3917
        $region44: #{tpu_custom_call.1} parent=27 // pred_fallthru
          _
      $region28: #{tpu_custom_call.1} parent=5 // pred_fallthru
        _
      %p3937 = scmp.le.s32.totalorder 2, %s15
      // Predicated region
      $region45: #{tpu_custom_call.1} parent=5 // pred_check
        %p3938 = pneg %p3937
      $region46: #{tpu_custom_call.1} parent=5 // pred_check_branch
        %3940 = sbr.rel (%p3938) target = $region48
      $region47: #{tpu_custom_call.1} parent=5 // pred_region
        %s3941 = ssub.s32 %s15, 2
        // Predicated region
        $region49: #{tpu_custom_call.1} parent=47 // pred_check
          %p3942 = pneg %p107
        $region50: #{tpu_custom_call.1} parent=47 // pred_check_branch
          %3944 = sbr.rel (%p3942) target = $region52
        $region51: #{tpu_custom_call.1} parent=47 // pred_region
          %s3945 = sand.u32 %s92, 1
          %s3946 = scalar_lea.sflag [#allocation5], %s3945
          %s3947 = sand.u32 %s92, 1
          %s3948 = smul.addr %s3947, 48
          %s3949 = scalar_lea.vmem [#allocation8], %s3948
          %3951 = dma.done %s3946, 768
        $region52: #{tpu_custom_call.1} parent=47 // pred_fallthru
          _
      $region48: #{tpu_custom_call.1} parent=5 // pred_fallthru
        _
    $region6: #{tpu_custom_call.1} parent=1 // loop_footer
      %s19 = sadd.s32 1, %s15
    $region7: #{tpu_custom_call.1} parent=1 // loop_footer_branch
      %14 = sbr.rel target = $region3
    $region8: #{tpu_custom_call.1} parent=1 // loop_exit
      _
    %3952 = vsyncpa [#allocation4], 1
    %s3953 = scalar_lea.sflag [#allocation4], 1
    %3954 = vsyncpa %s3953, 1
    %3955 = vsyncpa [#allocation7], 1
    %s3956 = scalar_lea.sflag [#allocation7], 1
    %3957 = vsyncpa %s3956, 1
    %3958 = vsyncpa [#allocation5], 1
    %s3959 = scalar_lea.sflag [#allocation5], 1
    %3960 = vsyncpa %s3959, 1

</llo_original>
